<compile_context>
chip_gen: v6e
topology: v6e:2x2x1
jax: 0.10.0
libtpu: 0.0.40
codegen_flags: <defaults>
</compile_context>

<pallas_src>
import functools

import jax
import jax.numpy as jnp
from jax.experimental import pallas as pl
from jax.experimental.pallas import tpu as pltpu


LANE = 128


def _round_up(n, m):
    return ((n + m - 1) // m) * m


def _default_mish_dtype():
    """bf16 Mish on chips with bf16 VPU/EUP (v6e, v7x); f32 elsewhere (v4/v5)."""
    try:
        kind = jax.devices()[0].device_kind.lower()
    except Exception:
        return jnp.float32
    if ("v6" in kind) or ("v7" in kind) or ("7x" in kind):
        return jnp.bfloat16
    return jnp.float32


def _mish(z, compute_dtype):
    """Mish(z) = z * tanh(softplus(z)), single-exp form.

    With t = exp(z): tanh(log(1+t)) = t*(t+2) / (t*(t+2) + 2)
    -> 1 exp + 1 approx reciprocal on the EUP; ~5 VALU ops per element.
    The exp argument is clamped at 20 (for z > 20 the ratio u/(u+2) is 1 to within
    f32 precision, so the result is already == z; no compare/select needed).
    Returns bf16 (MXU-native operand for the next matmul).
    """
    zc = z.astype(compute_dtype)
    t = jnp.exp(jnp.minimum(zc, 20.0))
    u = t * (t + 2.0)
    # Approx reciprocal always in f32 (always-supported EUP lowering).
    r = pl.reciprocal((u + 2.0).astype(jnp.float32), approx=True)
    y = zc * (u * r.astype(compute_dtype))
    return y.astype(jnp.bfloat16)


def _autoencoder_kernel(
    x_ref,
    w1_ref, b1_ref,
    w2_ref, b2_ref,
    w3_ref, b3_ref,
    w4_ref, b4_ref,
    w5_ref, b5_ref,
    o_ref,
    *,
    mish_dtype,
):
    # Split the batch tile into two independent halves and emit each layer for both
    # halves. The halves have no cross-dependencies, so the scheduler can overlap
    # the MXU matmul of one half with the VPU/EUP Mish of the other.
    half = x_ref.shape[0] // 2
    ha = x_ref[:half, :]   # bf16 (half, in_pad)
    hb = x_ref[half:, :]

    hidden_layers = ((w1_ref, b1_ref), (w2_ref, b2_ref),
                     (w3_ref, b3_ref), (w4_ref, b4_ref))
    for w_ref, b_ref in hidden_layers:
        w = w_ref[...]
        b = b_ref[...]
        za = jnp.dot(ha, w, preferred_element_type=jnp.float32) + b
        zb = jnp.dot(hb, w, preferred_element_type=jnp.float32) + b
        ha = _mish(za, mish_dtype)
        hb = _mish(zb, mish_dtype)

    w5 = w5_ref[...]
    b5 = b5_ref[...]
    oa = jnp.dot(ha, w5, preferred_element_type=jnp.float32) + b5
    ob = jnp.dot(hb, w5, preferred_element_type=jnp.float32) + b5
    o_ref[:half, :] = oa.astype(o_ref.dtype)
    o_ref[half:, :] = ob.astype(o_ref.dtype)


def autoencoder_forward(x, params, *, batch_tile=1024, mish_dtype=None):
    """x: (B, input_dim) f32.  params: list of (W_t, b) with W_t shaped (in, out)."""
    B, input_dim = x.shape
    out_dim = params[-1][0].shape[1]
    assert out_dim == input_dim

    if mish_dtype is None:
        mish_dtype = _default_mish_dtype()

    # ---- Prepare operands: bf16 weights, f32 biases, lane-padded (x128) widths.
    # Padding is inert: padded bias columns are 0 -> pre-act 0 -> Mish(0) = 0, and
    # the corresponding padded weight rows of the next layer are 0.
    in_dim_pad = _round_up(input_dim, LANE)   # pad x columns too -> lane-dense loads
    flat = []
    in_pad = in_dim_pad
    for w_t, b in params:
        fi, fo = w_t.shape
        fo_pad = _round_up(fo, LANE)
        w_p = jnp.zeros((in_pad, fo_pad), jnp.bfloat16).at[:fi, :fo].set(
            w_t.astype(jnp.bfloat16))
        b_p = jnp.zeros((1, fo_pad), jnp.float32).at[:, :fo].set(
            b.astype(jnp.float32))
        flat += [w_p, b_p]
        in_pad = fo_pad
    out_pad = in_pad  # padded width of the final layer (>= 128, unmasked stores)

    # ---- Batch tiling: big tiles amortize per-step overhead, but keep the grid
    # at >= 2 steps (and a multiple-of-32 tile so the in-kernel halves stay
    # sublane-aligned for bf16).  v7x shards the parallel grid axis over 2 TCs.
    bt = min(batch_tile, _round_up(pl.cdiv(B, 2), 32))
    bt = max(32, (bt // 32) * 32)
    Bp = _round_up(B, bt)

    xb = x.astype(jnp.bfloat16)
    if Bp != B or in_dim_pad != input_dim:
        xb = jnp.pad(xb, ((0, Bp - B), (0, in_dim_pad - input_dim)))

    in_specs = [pl.BlockSpec((bt, in_dim_pad), lambda i: (i, 0))]
    # Weights/biases: whole-array VMEM residents (constant across the grid -> no
    # double-buffering, no per-step DMA descriptors).
    in_specs += [pl.BlockSpec(memory_space=pltpu.MemorySpace.VMEM) for _ in flat]
    out_spec = pl.BlockSpec((bt, out_pad), lambda i: (i, 0))

    # Advisory cost estimate for XLA's surrounding scheduling.
    weights = flat[0::2]
    flops = 2 * Bp * sum(int(w.shape[0]) * int(w.shape[1]) for w in weights)
    transcendentals = 2 * Bp * sum(int(w.shape[1]) for w in weights[:-1])  # exp + recip
    bytes_accessed = (xb.size * 2 + Bp * out_pad * 4
                      + sum(int(a.size) * a.dtype.itemsize for a in flat))

    kernel = functools.partial(_autoencoder_kernel, mish_dtype=mish_dtype)

    out = pl.pallas_call(
        kernel,
        out_shape=jax.ShapeDtypeStruct((Bp, out_pad), jnp.float32),
        grid_spec=pltpu.PrefetchScalarGridSpec(
            num_scalar_prefetch=0,
            grid=(Bp // bt,),
            in_specs=in_specs,
            out_specs=out_spec,
        ),
        compiler_params=pltpu.CompilerParams(
            dimension_semantics=("parallel",),
        ),
        cost_estimate=pl.CostEstimate(
            flops=flops,
            transcendentals=transcendentals,
            bytes_accessed=bytes_accessed,
        ),
    )(xb, *flat)

    return out[:B, :input_dim]


def init_params(key, input_dim, latent_dim=32):
    """Deterministic init matching the nn.Sequential layer shapes.

    PyTorch Linear weight is (out, in); we store the transpose (in, out)."""
    dims = [input_dim, 512, 256, 128, latent_dim, input_dim]
    params = []
    for i in range(len(dims) - 1):
        fan_in, fan_out = dims[i], dims[i + 1]
        key, wk, bk = jax.random.split(key, 3)
        bound = 1.0 / jnp.sqrt(jnp.float32(fan_in))
        w_t = jax.random.uniform(wk, (fan_in, fan_out), jnp.float32, -bound, bound)
        b = jax.random.uniform(bk, (fan_out,), jnp.float32, -bound, bound)
        params.append((w_t, b))
    return params


def _reference_forward(x, params):
    # Pure f32 reference with exact Mish (x * tanh(softplus(x))).
    h = x
    n = len(params)
    for i, (w_t, b) in enumerate(params):
        h = h @ w_t + b
        if i < n - 1:
            h = h * jnp.tanh(jax.nn.softplus(h))
    return h


if __name__ == "__main__":
    key = jax.random.PRNGKey(0)
    k_param, k_x = jax.random.split(key)

    batch, input_dim, latent_dim = 512, 64, 32   # -> tile 256, grid of 2 steps
    params = init_params(k_param, input_dim, latent_dim)
    x = jax.random.normal(k_x, (batch, input_dim), jnp.float32)

    fwd = jax.jit(functools.partial(autoencoder_forward, batch_tile=1024))
    y = fwd(x, params)
    jax.block_until_ready(y)

    y_ref = _reference_forward(x, params)
    assert y.shape == (batch, input_dim)
    # Tolerance accounts for bf16 MXU operands (+ bf16 Mish on v6e/v7x) and the
    # approx-reciprocal in Mish.
    max_err = float(jnp.max(jnp.abs(y - y_ref)))
    assert jnp.allclose(y, y_ref, atol=5e-2, rtol=5e-2), max_err

    print("KERNEL_OK")
</pallas_src>

<mosaic_0001>
module attributes {stable_mosaic.version = 11 : i64} {
  func.func @_autoencoder_kernel(%arg0: i32, %arg1: memref<256x128xbf16, #tpu.memory_space<vmem>>, %arg2: memref<128x512xbf16, #tpu.memory_space<vmem>>, %arg3: memref<1x512xf32, #tpu.memory_space<vmem>>, %arg4: memref<512x256xbf16, #tpu.memory_space<vmem>>, %arg5: memref<1x256xf32, #tpu.memory_space<vmem>>, %arg6: memref<256x128xbf16, #tpu.memory_space<vmem>>, %arg7: memref<1x128xf32, #tpu.memory_space<vmem>>, %arg8: memref<128x128xbf16, #tpu.memory_space<vmem>>, %arg9: memref<1x128xf32, #tpu.memory_space<vmem>>, %arg10: memref<128x128xbf16, #tpu.memory_space<vmem>>, %arg11: memref<1x128xf32, #tpu.memory_space<vmem>>, %arg12: memref<256x128xf32, #tpu.memory_space<vmem>>) attributes {dimension_semantics = [#tpu.dimension_semantics<parallel>], iteration_bounds = array<i64: 2>, scalar_prefetch = 0 : i64, scratch_operands = 0 : i64, tpu.core_type = #tpu.core_type<tc>, window_params = [{transform_indices = @transform_0, window_bounds = array<i64: 256, 128>}, {pipeline_mode = #tpu.pipeline_mode<synchronous>, transform_indices = @transform_1, window_bounds = array<i64: 128, 512>}, {pipeline_mode = #tpu.pipeline_mode<synchronous>, transform_indices = @transform_2, window_bounds = array<i64: 1, 512>}, {pipeline_mode = #tpu.pipeline_mode<synchronous>, transform_indices = @transform_3, window_bounds = array<i64: 512, 256>}, {pipeline_mode = #tpu.pipeline_mode<synchronous>, transform_indices = @transform_4, window_bounds = array<i64: 1, 256>}, {pipeline_mode = #tpu.pipeline_mode<synchronous>, transform_indices = @transform_5, window_bounds = array<i64: 256, 128>}, {pipeline_mode = #tpu.pipeline_mode<synchronous>, transform_indices = @transform_6, window_bounds = array<i64: 1, 128>}, {pipeline_mode = #tpu.pipeline_mode<synchronous>, transform_indices = @transform_7, window_bounds = array<i64: 128, 128>}, {pipeline_mode = #tpu.pipeline_mode<synchronous>, transform_indices = @transform_8, window_bounds = array<i64: 1, 128>}, {pipeline_mode = #tpu.pipeline_mode<synchronous>, transform_indices = @transform_9, window_bounds = array<i64: 128, 128>}, {pipeline_mode = #tpu.pipeline_mode<synchronous>, transform_indices = @transform_10, window_bounds = array<i64: 1, 128>}, {transform_indices = @transform_11, window_bounds = array<i64: 256, 128>}]} {
    %c0 = arith.constant 0 : index
    %c0_0 = arith.constant 0 : index
    %0 = vector.load %arg1[%c0, %c0_0] : memref<256x128xbf16, #tpu.memory_space<vmem>>, vector<128x128xbf16>
    %c128 = arith.constant 128 : index
    %c0_1 = arith.constant 0 : index
    %1 = vector.load %arg1[%c128, %c0_1] : memref<256x128xbf16, #tpu.memory_space<vmem>>, vector<128x128xbf16>
    %c0_2 = arith.constant 0 : index
    %c0_3 = arith.constant 0 : index
    %2 = vector.load %arg2[%c0_2, %c0_3] : memref<128x512xbf16, #tpu.memory_space<vmem>>, vector<128x512xbf16>
    %c0_4 = arith.constant 0 : index
    %c0_5 = arith.constant 0 : index
    %3 = vector.load %arg3[%c0_4, %c0_5] : memref<1x512xf32, #tpu.memory_space<vmem>>, vector<1x512xf32>
    %cst = arith.constant dense<0.000000e+00> : vector<128x512xf32>
    %4 = tpu.matmul %0, %2, %cst {dimension_numbers = #tpu.dot_dimension_numbers<[1], [0], [0], [1], [0, 0, 1, 1], [], []>} : vector<128x128xbf16>, vector<128x512xbf16>, vector<128x512xf32> -> vector<128x512xf32>
    %5 = vector.broadcast %3 : vector<1x512xf32> to vector<128x512xf32>
    %6 = arith.addf %4, %5 : vector<128x512xf32>
    %cst_6 = arith.constant dense<0.000000e+00> : vector<128x512xf32>
    %7 = tpu.matmul %1, %2, %cst_6 {dimension_numbers = #tpu.dot_dimension_numbers<[1], [0], [0], [1], [0, 0, 1, 1], [], []>} : vector<128x128xbf16>, vector<128x512xbf16>, vector<128x512xf32> -> vector<128x512xf32>
    %8 = vector.broadcast %3 : vector<1x512xf32> to vector<128x512xf32>
    %9 = arith.addf %7, %8 : vector<128x512xf32>
    %cst_7 = arith.constant 2.000000e+01 : f32
    %10 = vector.broadcast %cst_7 : f32 to vector<128x512xf32>
    %11 = arith.minimumf %6, %10 : vector<128x512xf32>
    %12 = math.exp %11 : vector<128x512xf32>
    %cst_8 = arith.constant 2.000000e+00 : f32
    %13 = vector.broadcast %cst_8 : f32 to vector<128x512xf32>
    %14 = arith.addf %12, %13 : vector<128x512xf32>
    %15 = arith.mulf %12, %14 : vector<128x512xf32>
    %cst_9 = arith.constant 2.000000e+00 : f32
    %16 = vector.broadcast %cst_9 : f32 to vector<128x512xf32>
    %17 = arith.addf %15, %16 : vector<128x512xf32>
    %18 = tpu.reciprocal %17 {approx = true} : vector<128x512xf32> -> vector<128x512xf32>
    %19 = arith.mulf %15, %18 : vector<128x512xf32>
    %20 = arith.mulf %6, %19 : vector<128x512xf32>
    %21 = arith.truncf %20 : vector<128x512xf32> to vector<128x512xbf16>
    %cst_10 = arith.constant 2.000000e+01 : f32
    %22 = vector.broadcast %cst_10 : f32 to vector<128x512xf32>
    %23 = arith.minimumf %9, %22 : vector<128x512xf32>
    %24 = math.exp %23 : vector<128x512xf32>
    %cst_11 = arith.constant 2.000000e+00 : f32
    %25 = vector.broadcast %cst_11 : f32 to vector<128x512xf32>
    %26 = arith.addf %24, %25 : vector<128x512xf32>
    %27 = arith.mulf %24, %26 : vector<128x512xf32>
    %cst_12 = arith.constant 2.000000e+00 : f32
    %28 = vector.broadcast %cst_12 : f32 to vector<128x512xf32>
    %29 = arith.addf %27, %28 : vector<128x512xf32>
    %30 = tpu.reciprocal %29 {approx = true} : vector<128x512xf32> -> vector<128x512xf32>
    %31 = arith.mulf %27, %30 : vector<128x512xf32>
    %32 = arith.mulf %9, %31 : vector<128x512xf32>
    %33 = arith.truncf %32 : vector<128x512xf32> to vector<128x512xbf16>
    %c0_13 = arith.constant 0 : index
    %c0_14 = arith.constant 0 : index
    %34 = vector.load %arg4[%c0_13, %c0_14] : memref<512x256xbf16, #tpu.memory_space<vmem>>, vector<512x256xbf16>
    %c0_15 = arith.constant 0 : index
    %c0_16 = arith.constant 0 : index
    %35 = vector.load %arg5[%c0_15, %c0_16] : memref<1x256xf32, #tpu.memory_space<vmem>>, vector<1x256xf32>
    %cst_17 = arith.constant dense<0.000000e+00> : vector<128x256xf32>
    %36 = tpu.matmul %21, %34, %cst_17 {dimension_numbers = #tpu.dot_dimension_numbers<[1], [0], [0], [1], [0, 0, 1, 1], [], []>} : vector<128x512xbf16>, vector<512x256xbf16>, vector<128x256xf32> -> vector<128x256xf32>
    %37 = vector.broadcast %35 : vector<1x256xf32> to vector<128x256xf32>
    %38 = arith.addf %36, %37 : vector<128x256xf32>
    %cst_18 = arith.constant dense<0.000000e+00> : vector<128x256xf32>
    %39 = tpu.matmul %33, %34, %cst_18 {dimension_numbers = #tpu.dot_dimension_numbers<[1], [0], [0], [1], [0, 0, 1, 1], [], []>} : vector<128x512xbf16>, vector<512x256xbf16>, vector<128x256xf32> -> vector<128x256xf32>
    %40 = vector.broadcast %35 : vector<1x256xf32> to vector<128x256xf32>
    %41 = arith.addf %39, %40 : vector<128x256xf32>
    %cst_19 = arith.constant 2.000000e+01 : f32
    %42 = vector.broadcast %cst_19 : f32 to vector<128x256xf32>
    %43 = arith.minimumf %38, %42 : vector<128x256xf32>
    %44 = math.exp %43 : vector<128x256xf32>
    %cst_20 = arith.constant 2.000000e+00 : f32
    %45 = vector.broadcast %cst_20 : f32 to vector<128x256xf32>
    %46 = arith.addf %44, %45 : vector<128x256xf32>
    %47 = arith.mulf %44, %46 : vector<128x256xf32>
    %cst_21 = arith.constant 2.000000e+00 : f32
    %48 = vector.broadcast %cst_21 : f32 to vector<128x256xf32>
    %49 = arith.addf %47, %48 : vector<128x256xf32>
    %50 = tpu.reciprocal %49 {approx = true} : vector<128x256xf32> -> vector<128x256xf32>
    %51 = arith.mulf %47, %50 : vector<128x256xf32>
    %52 = arith.mulf %38, %51 : vector<128x256xf32>
    %53 = arith.truncf %52 : vector<128x256xf32> to vector<128x256xbf16>
    %cst_22 = arith.constant 2.000000e+01 : f32
    %54 = vector.broadcast %cst_22 : f32 to vector<128x256xf32>
    %55 = arith.minimumf %41, %54 : vector<128x256xf32>
    %56 = math.exp %55 : vector<128x256xf32>
    %cst_23 = arith.constant 2.000000e+00 : f32
    %57 = vector.broadcast %cst_23 : f32 to vector<128x256xf32>
    %58 = arith.addf %56, %57 : vector<128x256xf32>
    %59 = arith.mulf %56, %58 : vector<128x256xf32>
    %cst_24 = arith.constant 2.000000e+00 : f32
    %60 = vector.broadcast %cst_24 : f32 to vector<128x256xf32>
    %61 = arith.addf %59, %60 : vector<128x256xf32>
    %62 = tpu.reciprocal %61 {approx = true} : vector<128x256xf32> -> vector<128x256xf32>
    %63 = arith.mulf %59, %62 : vector<128x256xf32>
    %64 = arith.mulf %41, %63 : vector<128x256xf32>
    %65 = arith.truncf %64 : vector<128x256xf32> to vector<128x256xbf16>
    %c0_25 = arith.constant 0 : index
    %c0_26 = arith.constant 0 : index
    %66 = vector.load %arg6[%c0_25, %c0_26] : memref<256x128xbf16, #tpu.memory_space<vmem>>, vector<256x128xbf16>
    %c0_27 = arith.constant 0 : index
    %c0_28 = arith.constant 0 : index
    %67 = vector.load %arg7[%c0_27, %c0_28] : memref<1x128xf32, #tpu.memory_space<vmem>>, vector<1x128xf32>
    %cst_29 = arith.constant dense<0.000000e+00> : vector<128x128xf32>
    %68 = tpu.matmul %53, %66, %cst_29 {dimension_numbers = #tpu.dot_dimension_numbers<[1], [0], [0], [1], [0, 0, 1, 1], [], []>} : vector<128x256xbf16>, vector<256x128xbf16>, vector<128x128xf32> -> vector<128x128xf32>
    %69 = vector.broadcast %67 : vector<1x128xf32> to vector<128x128xf32>
    %70 = arith.addf %68, %69 : vector<128x128xf32>
    %cst_30 = arith.constant dense<0.000000e+00> : vector<128x128xf32>
    %71 = tpu.matmul %65, %66, %cst_30 {dimension_numbers = #tpu.dot_dimension_numbers<[1], [0], [0], [1], [0, 0, 1, 1], [], []>} : vector<128x256xbf16>, vector<256x128xbf16>, vector<128x128xf32> -> vector<128x128xf32>
    %72 = vector.broadcast %67 : vector<1x128xf32> to vector<128x128xf32>
    %73 = arith.addf %71, %72 : vector<128x128xf32>
    %cst_31 = arith.constant 2.000000e+01 : f32
    %74 = vector.broadcast %cst_31 : f32 to vector<128x128xf32>
    %75 = arith.minimumf %70, %74 : vector<128x128xf32>
    %76 = math.exp %75 : vector<128x128xf32>
    %cst_32 = arith.constant 2.000000e+00 : f32
    %77 = vector.broadcast %cst_32 : f32 to vector<128x128xf32>
    %78 = arith.addf %76, %77 : vector<128x128xf32>
    %79 = arith.mulf %76, %78 : vector<128x128xf32>
    %cst_33 = arith.constant 2.000000e+00 : f32
    %80 = vector.broadcast %cst_33 : f32 to vector<128x128xf32>
    %81 = arith.addf %79, %80 : vector<128x128xf32>
    %82 = tpu.reciprocal %81 {approx = true} : vector<128x128xf32> -> vector<128x128xf32>
    %83 = arith.mulf %79, %82 : vector<128x128xf32>
    %84 = arith.mulf %70, %83 : vector<128x128xf32>
    %85 = arith.truncf %84 : vector<128x128xf32> to vector<128x128xbf16>
    %cst_34 = arith.constant 2.000000e+01 : f32
    %86 = vector.broadcast %cst_34 : f32 to vector<128x128xf32>
    %87 = arith.minimumf %73, %86 : vector<128x128xf32>
    %88 = math.exp %87 : vector<128x128xf32>
    %cst_35 = arith.constant 2.000000e+00 : f32
    %89 = vector.broadcast %cst_35 : f32 to vector<128x128xf32>
    %90 = arith.addf %88, %89 : vector<128x128xf32>
    %91 = arith.mulf %88, %90 : vector<128x128xf32>
    %cst_36 = arith.constant 2.000000e+00 : f32
    %92 = vector.broadcast %cst_36 : f32 to vector<128x128xf32>
    %93 = arith.addf %91, %92 : vector<128x128xf32>
    %94 = tpu.reciprocal %93 {approx = true} : vector<128x128xf32> -> vector<128x128xf32>
    %95 = arith.mulf %91, %94 : vector<128x128xf32>
    %96 = arith.mulf %73, %95 : vector<128x128xf32>
    %97 = arith.truncf %96 : vector<128x128xf32> to vector<128x128xbf16>
    %c0_37 = arith.constant 0 : index
    %c0_38 = arith.constant 0 : index
    %98 = vector.load %arg8[%c0_37, %c0_38] : memref<128x128xbf16, #tpu.memory_space<vmem>>, vector<128x128xbf16>
    %c0_39 = arith.constant 0 : index
    %c0_40 = arith.constant 0 : index
    %99 = vector.load %arg9[%c0_39, %c0_40] : memref<1x128xf32, #tpu.memory_space<vmem>>, vector<1x128xf32>
    %cst_41 = arith.constant dense<0.000000e+00> : vector<128x128xf32>
    %100 = tpu.matmul %85, %98, %cst_41 {dimension_numbers = #tpu.dot_dimension_numbers<[1], [0], [0], [1], [0, 0, 1, 1], [], []>} : vector<128x128xbf16>, vector<128x128xbf16>, vector<128x128xf32> -> vector<128x128xf32>
    %101 = vector.broadcast %99 : vector<1x128xf32> to vector<128x128xf32>
    %102 = arith.addf %100, %101 : vector<128x128xf32>
    %cst_42 = arith.constant dense<0.000000e+00> : vector<128x128xf32>
    %103 = tpu.matmul %97, %98, %cst_42 {dimension_numbers = #tpu.dot_dimension_numbers<[1], [0], [0], [1], [0, 0, 1, 1], [], []>} : vector<128x128xbf16>, vector<128x128xbf16>, vector<128x128xf32> -> vector<128x128xf32>
    %104 = vector.broadcast %99 : vector<1x128xf32> to vector<128x128xf32>
    %105 = arith.addf %103, %104 : vector<128x128xf32>
    %cst_43 = arith.constant 2.000000e+01 : f32
    %106 = vector.broadcast %cst_43 : f32 to vector<128x128xf32>
    %107 = arith.minimumf %102, %106 : vector<128x128xf32>
    %108 = math.exp %107 : vector<128x128xf32>
    %cst_44 = arith.constant 2.000000e+00 : f32
    %109 = vector.broadcast %cst_44 : f32 to vector<128x128xf32>
    %110 = arith.addf %108, %109 : vector<128x128xf32>
    %111 = arith.mulf %108, %110 : vector<128x128xf32>
    %cst_45 = arith.constant 2.000000e+00 : f32
    %112 = vector.broadcast %cst_45 : f32 to vector<128x128xf32>
    %113 = arith.addf %111, %112 : vector<128x128xf32>
    %114 = tpu.reciprocal %113 {approx = true} : vector<128x128xf32> -> vector<128x128xf32>
    %115 = arith.mulf %111, %114 : vector<128x128xf32>
    %116 = arith.mulf %102, %115 : vector<128x128xf32>
    %117 = arith.truncf %116 : vector<128x128xf32> to vector<128x128xbf16>
    %cst_46 = arith.constant 2.000000e+01 : f32
    %118 = vector.broadcast %cst_46 : f32 to vector<128x128xf32>
    %119 = arith.minimumf %105, %118 : vector<128x128xf32>
    %120 = math.exp %119 : vector<128x128xf32>
    %cst_47 = arith.constant 2.000000e+00 : f32
    %121 = vector.broadcast %cst_47 : f32 to vector<128x128xf32>
    %122 = arith.addf %120, %121 : vector<128x128xf32>
    %123 = arith.mulf %120, %122 : vector<128x128xf32>
    %cst_48 = arith.constant 2.000000e+00 : f32
    %124 = vector.broadcast %cst_48 : f32 to vector<128x128xf32>
    %125 = arith.addf %123, %124 : vector<128x128xf32>
    %126 = tpu.reciprocal %125 {approx = true} : vector<128x128xf32> -> vector<128x128xf32>
    %127 = arith.mulf %123, %126 : vector<128x128xf32>
    %128 = arith.mulf %105, %127 : vector<128x128xf32>
    %129 = arith.truncf %128 : vector<128x128xf32> to vector<128x128xbf16>
    %c0_49 = arith.constant 0 : index
    %c0_50 = arith.constant 0 : index
    %130 = vector.load %arg10[%c0_49, %c0_50] : memref<128x128xbf16, #tpu.memory_space<vmem>>, vector<128x128xbf16>
    %c0_51 = arith.constant 0 : index
    %c0_52 = arith.constant 0 : index
    %131 = vector.load %arg11[%c0_51, %c0_52] : memref<1x128xf32, #tpu.memory_space<vmem>>, vector<1x128xf32>
    %cst_53 = arith.constant dense<0.000000e+00> : vector<128x128xf32>
    %132 = tpu.matmul %117, %130, %cst_53 {dimension_numbers = #tpu.dot_dimension_numbers<[1], [0], [0], [1], [0, 0, 1, 1], [], []>} : vector<128x128xbf16>, vector<128x128xbf16>, vector<128x128xf32> -> vector<128x128xf32>
    %133 = vector.broadcast %131 : vector<1x128xf32> to vector<128x128xf32>
    %134 = arith.addf %132, %133 : vector<128x128xf32>
    %cst_54 = arith.constant dense<0.000000e+00> : vector<128x128xf32>
    %135 = tpu.matmul %129, %130, %cst_54 {dimension_numbers = #tpu.dot_dimension_numbers<[1], [0], [0], [1], [0, 0, 1, 1], [], []>} : vector<128x128xbf16>, vector<128x128xbf16>, vector<128x128xf32> -> vector<128x128xf32>
    %136 = vector.broadcast %131 : vector<1x128xf32> to vector<128x128xf32>
    %137 = arith.addf %135, %136 : vector<128x128xf32>
    %c0_55 = arith.constant 0 : index
    %c0_56 = arith.constant 0 : index
    %138 = vector.load %arg12[%c0_55, %c0_56] : memref<256x128xf32, #tpu.memory_space<vmem>>, vector<128x128xf32>
    tpu.vector_store %arg12[%c0_55, %c0_56], %134 {strides = array<i32>} : memref<256x128xf32, #tpu.memory_space<vmem>>, vector<128x128xf32>,
    %c128_57 = arith.constant 128 : index
    %c0_58 = arith.constant 0 : index
    %139 = vector.load %arg12[%c128_57, %c0_58] : memref<256x128xf32, #tpu.memory_space<vmem>>, vector<128x128xf32>
    tpu.vector_store %arg12[%c128_57, %c0_58], %137 {strides = array<i32>} : memref<256x128xf32, #tpu.memory_space<vmem>>, vector<128x128xf32>,
    return
  }
  func.func @transform_0(%arg0: i32) -> (i32, i32) {
    %c0_i32 = arith.constant 0 : i32
    %c0_i32_0 = arith.constant 0 : i32
    return %arg0, %c0_i32 : i32, i32
  }
  func.func @transform_1(%arg0: i32) -> (i32, i32) {
    %c0_i32 = arith.constant 0 : i32
    %c0_i32_0 = arith.constant 0 : i32
    %c0_i32_1 = arith.constant 0 : i32
    return %c0_i32, %c0_i32_0 : i32, i32
  }
  func.func @transform_2(%arg0: i32) -> (i32, i32) {
    %c0_i32 = arith.constant 0 : i32
    %c0_i32_0 = arith.constant 0 : i32
    %c0_i32_1 = arith.constant 0 : i32
    return %c0_i32, %c0_i32_0 : i32, i32
  }
  func.func @transform_3(%arg0: i32) -> (i32, i32) {
    %c0_i32 = arith.constant 0 : i32
    %c0_i32_0 = arith.constant 0 : i32
    %c0_i32_1 = arith.constant 0 : i32
    return %c0_i32, %c0_i32_0 : i32, i32
  }
  func.func @transform_4(%arg0: i32) -> (i32, i32) {
    %c0_i32 = arith.constant 0 : i32
    %c0_i32_0 = arith.constant 0 : i32
    %c0_i32_1 = arith.constant 0 : i32
    return %c0_i32, %c0_i32_0 : i32, i32
  }
  func.func @transform_5(%arg0: i32) -> (i32, i32) {
    %c0_i32 = arith.constant 0 : i32
    %c0_i32_0 = arith.constant 0 : i32
    %c0_i32_1 = arith.constant 0 : i32
    return %c0_i32, %c0_i32_0 : i32, i32
  }
  func.func @transform_6(%arg0: i32) -> (i32, i32) {
    %c0_i32 = arith.constant 0 : i32
    %c0_i32_0 = arith.constant 0 : i32
    %c0_i32_1 = arith.constant 0 : i32
    return %c0_i32, %c0_i32_0 : i32, i32
  }
  func.func @transform_7(%arg0: i32) -> (i32, i32) {
    %c0_i32 = arith.constant 0 : i32
    %c0_i32_0 = arith.constant 0 : i32
    %c0_i32_1 = arith.constant 0 : i32
    return %c0_i32, %c0_i32_0 : i32, i32
  }
  func.func @transform_8(%arg0: i32) -> (i32, i32) {
    %c0_i32 = arith.constant 0 : i32
    %c0_i32_0 = arith.constant 0 : i32
    %c0_i32_1 = arith.constant 0 : i32
    return %c0_i32, %c0_i32_0 : i32, i32
  }
  func.func @transform_9(%arg0: i32) -> (i32, i32) {
    %c0_i32 = arith.constant 0 : i32
    %c0_i32_0 = arith.constant 0 : i32
    %c0_i32_1 = arith.constant 0 : i32
    return %c0_i32, %c0_i32_0 : i32, i32
  }
  func.func @transform_10(%arg0: i32) -> (i32, i32) {
    %c0_i32 = arith.constant 0 : i32
    %c0_i32_0 = arith.constant 0 : i32
    %c0_i32_1 = arith.constant 0 : i32
    return %c0_i32, %c0_i32_0 : i32, i32
  }
  func.func @transform_11(%arg0: i32) -> (i32, i32) {
    %c0_i32 = arith.constant 0 : i32
    %c0_i32_0 = arith.constant 0 : i32
    return %arg0, %c0_i32 : i32, i32
  }
}

</mosaic_0001>

<llo_original>
// kernel: autoencoder_forward.1
$region0: #{autoencoder_forward.1}
  #allocation0 [shape = 'u32[]', space=smem, size = 0x4, offset = 0x4, fixed_abs, tag = 'smem constant byte address 0x4 - core index']
  #allocation1 [shape = 'u32[144,128]{1,0:T(1,128)}', space=vmem, size = 0x12000, scoped, tag = 'internal scratch']
  %s0 = inlined_call_operand.vmem [shape: bf16[512,128], index: 0, kind: input, shape index: {}]
  %s1 = inlined_call_operand.vmem [shape: bf16[128,512], index: 1, kind: input, shape index: {}]
  %s2 = inlined_call_operand.vmem [shape: f32[1,512], index: 2, kind: input, shape index: {}]
  %s3 = inlined_call_operand.vmem [shape: bf16[512,256], index: 3, kind: input, shape index: {}]
  %s4 = inlined_call_operand.vmem [shape: f32[1,256], index: 4, kind: input, shape index: {}]
  %s5 = inlined_call_operand.vmem [shape: bf16[256,128], index: 5, kind: input, shape index: {}]
  %s6 = inlined_call_operand.vmem [shape: f32[1,128], index: 6, kind: input, shape index: {}]
  %s7 = inlined_call_operand.vmem [shape: bf16[128,128], index: 7, kind: input, shape index: {}]
  %s8 = inlined_call_operand.vmem [shape: f32[1,128], index: 8, kind: input, shape index: {}]
  %s9 = inlined_call_operand.vmem [shape: bf16[128,128], index: 9, kind: input, shape index: {}]
  %s10 = inlined_call_operand.vmem [shape: f32[1,128], index: 10, kind: input, shape index: {}]
  %s11 = inlined_call_operand.vmem [shape: f32[512,128], index: 11, kind: output, shape index: {}]
  %s12 = sld [smem:[#allocation0]]
  $region77: #{autoencoder_forward.1} parent=0
    _
  %s14 = ssub.s32 1, %s12
  %s15 = scalar_select 0, %s14, %s12
  loop: start=0, step=1, limit=4
  $region2: #{autoencoder_forward.1} parent=0 // loop_pre_header
    _
  $region3: #{autoencoder_forward.1} parent=0 // loop_header
    %s17 = sphi 0, %s21
    %p18 = scmp.ge.s32.totalorder %s17, 4
    %s27 = sphi 0, %s29
    %s30 = sphi 0, %s27
    %s31 = sphi 0, %s30
    %s47 = sphi 0, %s31
    %s51 = sphi 0, %s51
    %s53 = sphi 0, %s51
    %s54 = sphi 0, %s53
    %s68 = sphi 0, %s54
    %s72 = sphi 0, %s72
    %s74 = sphi 0, %s72
    %s75 = sphi 0, %s74
    %s89 = sphi 0, %s75
    %s93 = sphi 0, %s93
    %s95 = sphi 0, %s93
    %s96 = sphi 0, %s95
    %s110 = sphi 0, %s96
    %s114 = sphi 0, %s114
    %s116 = sphi 0, %s114
    %s117 = sphi 0, %s116
    %s131 = sphi 0, %s117
    %s135 = sphi 0, %s135
    %s137 = sphi 0, %s135
    %s138 = sphi 0, %s137
    %s152 = sphi 0, %s138
    %s156 = sphi 0, %s156
    %s158 = sphi 0, %s156
    %s159 = sphi 0, %s158
    %s173 = sphi 0, %s159
    %s177 = sphi 0, %s177
    %s179 = sphi 0, %s177
    %s180 = sphi 0, %s179
    %s194 = sphi 0, %s180
    %s198 = sphi 0, %s198
    %s200 = sphi 0, %s198
    %s201 = sphi 0, %s200
    %s215 = sphi 0, %s201
    %s219 = sphi 0, %s219
    %s221 = sphi 0, %s219
    %s222 = sphi 0, %s221
    %s236 = sphi 0, %s222
    %s240 = sphi 0, %s240
    %s242 = sphi 0, %s240
    %s243 = sphi 0, %s242
    %s257 = sphi 0, %s243
    %s263 = sphi 0, %s265
    %s266 = sphi 0, %s263
    %s267 = sphi 0, %s266
    %s283 = sphi 0, %s267
  $region4: #{autoencoder_forward.1} parent=0 // loop_header_branch
    %20 = sbr.rel (%p18) target = $region8
  $region5: #{autoencoder_forward.1} parent=0 // loop_body
    %s22 = ssub.s32 %s17, 1
    %s23 = ssub.s32 %s17, 2
    %s24 = sadd.s32 %s17, 1
    %s25 = ssub.s32 %s17, %s24
    %p26 = scmp.eq.s32.totalorder %s25, 0
    %s28 = sadd.s32 %s27, 1
    %s29 = scalar_select %p26, %s27, %s28
    %p32 = pneg %p26
    %p33 = scmp.eq.s32.totalorder %s17, 1
    %p34 = por %p32, %p33
    %p35 = scmp.ne.s32.totalorder %s27, %s30
    %p36 = scmp.eq.s32.totalorder %s17, 0
    %p37 = por %p35, %p36
    %p38 = scmp.ne.s32.totalorder %s27, %s30
    %p39 = scmp.eq.s32.totalorder %s22, 1
    %p40 = por %p38, %p39
    %p41 = scmp.ne.s32.totalorder %s30, %s31
    %p42 = scmp.eq.s32.totalorder %s22, 0
    %p43 = por %p41, %p42
    %p44 = scmp.ne.s32.totalorder %s30, %s31
    %p45 = scmp.eq.s32.totalorder %s23, 1
    %p46 = por %p44, %p45
    %p48 = scmp.ne.s32.totalorder %s31, %s47
    %p49 = scmp.eq.s32.totalorder %s23, 0
    %p50 = por %p48, %p49
    %s52 = sadd.s32 %s51, 1
    %p55 = scmp.eq.s32.totalorder %s17, 1
    %p56 = scmp.ne.s32.totalorder %s51, %s53
    %p57 = scmp.eq.s32.totalorder %s17, 0
    %p58 = por %p56, %p57
    %p59 = scmp.ne.s32.totalorder %s51, %s53
    %p60 = scmp.eq.s32.totalorder %s22, 1
    %p61 = por %p59, %p60
    %p62 = scmp.ne.s32.totalorder %s53, %s54
    %p63 = scmp.eq.s32.totalorder %s22, 0
    %p64 = por %p62, %p63
    %p65 = scmp.ne.s32.totalorder %s53, %s54
    %p66 = scmp.eq.s32.totalorder %s23, 1
    %p67 = por %p65, %p66
    %p69 = scmp.ne.s32.totalorder %s54, %s68
    %p70 = scmp.eq.s32.totalorder %s23, 0
    %p71 = por %p69, %p70
    %s73 = sadd.s32 %s72, 1
    %p76 = scmp.eq.s32.totalorder %s17, 1
    %p77 = scmp.ne.s32.totalorder %s72, %s74
    %p78 = scmp.eq.s32.totalorder %s17, 0
    %p79 = por %p77, %p78
    %p80 = scmp.ne.s32.totalorder %s72, %s74
    %p81 = scmp.eq.s32.totalorder %s22, 1
    %p82 = por %p80, %p81
    %p83 = scmp.ne.s32.totalorder %s74, %s75
    %p84 = scmp.eq.s32.totalorder %s22, 0
    %p85 = por %p83, %p84
    %p86 = scmp.ne.s32.totalorder %s74, %s75
    %p87 = scmp.eq.s32.totalorder %s23, 1
    %p88 = por %p86, %p87
    %p90 = scmp.ne.s32.totalorder %s75, %s89
    %p91 = scmp.eq.s32.totalorder %s23, 0
    %p92 = por %p90, %p91
    %s94 = sadd.s32 %s93, 1
    %p97 = scmp.eq.s32.totalorder %s17, 1
    %p98 = scmp.ne.s32.totalorder %s93, %s95
    %p99 = scmp.eq.s32.totalorder %s17, 0
    %p100 = por %p98, %p99
    %p101 = scmp.ne.s32.totalorder %s93, %s95
    %p102 = scmp.eq.s32.totalorder %s22, 1
    %p103 = por %p101, %p102
    %p104 = scmp.ne.s32.totalorder %s95, %s96
    %p105 = scmp.eq.s32.totalorder %s22, 0
    %p106 = por %p104, %p105
    %p107 = scmp.ne.s32.totalorder %s95, %s96
    %p108 = scmp.eq.s32.totalorder %s23, 1
    %p109 = por %p107, %p108
    %p111 = scmp.ne.s32.totalorder %s96, %s110
    %p112 = scmp.eq.s32.totalorder %s23, 0
    %p113 = por %p111, %p112
    %s115 = sadd.s32 %s114, 1
    %p118 = scmp.eq.s32.totalorder %s17, 1
    %p119 = scmp.ne.s32.totalorder %s114, %s116
    %p120 = scmp.eq.s32.totalorder %s17, 0
    %p121 = por %p119, %p120
    %p122 = scmp.ne.s32.totalorder %s114, %s116
    %p123 = scmp.eq.s32.totalorder %s22, 1
    %p124 = por %p122, %p123
    %p125 = scmp.ne.s32.totalorder %s116, %s117
    %p126 = scmp.eq.s32.totalorder %s22, 0
    %p127 = por %p125, %p126
    %p128 = scmp.ne.s32.totalorder %s116, %s117
    %p129 = scmp.eq.s32.totalorder %s23, 1
    %p130 = por %p128, %p129
    %p132 = scmp.ne.s32.totalorder %s117, %s131
    %p133 = scmp.eq.s32.totalorder %s23, 0
    %p134 = por %p132, %p133
    %s136 = sadd.s32 %s135, 1
    %p139 = scmp.eq.s32.totalorder %s17, 1
    %p140 = scmp.ne.s32.totalorder %s135, %s137
    %p141 = scmp.eq.s32.totalorder %s17, 0
    %p142 = por %p140, %p141
    %p143 = scmp.ne.s32.totalorder %s135, %s137
    %p144 = scmp.eq.s32.totalorder %s22, 1
    %p145 = por %p143, %p144
    %p146 = scmp.ne.s32.totalorder %s137, %s138
    %p147 = scmp.eq.s32.totalorder %s22, 0
    %p148 = por %p146, %p147
    %p149 = scmp.ne.s32.totalorder %s137, %s138
    %p150 = scmp.eq.s32.totalorder %s23, 1
    %p151 = por %p149, %p150
    %p153 = scmp.ne.s32.totalorder %s138, %s152
    %p154 = scmp.eq.s32.totalorder %s23, 0
    %p155 = por %p153, %p154
    %s157 = sadd.s32 %s156, 1
    %p160 = scmp.eq.s32.totalorder %s17, 1
    %p161 = scmp.ne.s32.totalorder %s156, %s158
    %p162 = scmp.eq.s32.totalorder %s17, 0
    %p163 = por %p161, %p162
    %p164 = scmp.ne.s32.totalorder %s156, %s158
    %p165 = scmp.eq.s32.totalorder %s22, 1
    %p166 = por %p164, %p165
    %p167 = scmp.ne.s32.totalorder %s158, %s159
    %p168 = scmp.eq.s32.totalorder %s22, 0
    %p169 = por %p167, %p168
    %p170 = scmp.ne.s32.totalorder %s158, %s159
    %p171 = scmp.eq.s32.totalorder %s23, 1
    %p172 = por %p170, %p171
    %p174 = scmp.ne.s32.totalorder %s159, %s173
    %p175 = scmp.eq.s32.totalorder %s23, 0
    %p176 = por %p174, %p175
    %s178 = sadd.s32 %s177, 1
    %p181 = scmp.eq.s32.totalorder %s17, 1
    %p182 = scmp.ne.s32.totalorder %s177, %s179
    %p183 = scmp.eq.s32.totalorder %s17, 0
    %p184 = por %p182, %p183
    %p185 = scmp.ne.s32.totalorder %s177, %s179
    %p186 = scmp.eq.s32.totalorder %s22, 1
    %p187 = por %p185, %p186
    %p188 = scmp.ne.s32.totalorder %s179, %s180
    %p189 = scmp.eq.s32.totalorder %s22, 0
    %p190 = por %p188, %p189
    %p191 = scmp.ne.s32.totalorder %s179, %s180
    %p192 = scmp.eq.s32.totalorder %s23, 1
    %p193 = por %p191, %p192
    %p195 = scmp.ne.s32.totalorder %s180, %s194
    %p196 = scmp.eq.s32.totalorder %s23, 0
    %p197 = por %p195, %p196
    %s199 = sadd.s32 %s198, 1
    %p202 = scmp.eq.s32.totalorder %s17, 1
    %p203 = scmp.ne.s32.totalorder %s198, %s200
    %p204 = scmp.eq.s32.totalorder %s17, 0
    %p205 = por %p203, %p204
    %p206 = scmp.ne.s32.totalorder %s198, %s200
    %p207 = scmp.eq.s32.totalorder %s22, 1
    %p208 = por %p206, %p207
    %p209 = scmp.ne.s32.totalorder %s200, %s201
    %p210 = scmp.eq.s32.totalorder %s22, 0
    %p211 = por %p209, %p210
    %p212 = scmp.ne.s32.totalorder %s200, %s201
    %p213 = scmp.eq.s32.totalorder %s23, 1
    %p214 = por %p212, %p213
    %p216 = scmp.ne.s32.totalorder %s201, %s215
    %p217 = scmp.eq.s32.totalorder %s23, 0
    %p218 = por %p216, %p217
    %s220 = sadd.s32 %s219, 1
    %p223 = scmp.eq.s32.totalorder %s17, 1
    %p224 = scmp.ne.s32.totalorder %s219, %s221
    %p225 = scmp.eq.s32.totalorder %s17, 0
    %p226 = por %p224, %p225
    %p227 = scmp.ne.s32.totalorder %s219, %s221
    %p228 = scmp.eq.s32.totalorder %s22, 1
    %p229 = por %p227, %p228
    %p230 = scmp.ne.s32.totalorder %s221, %s222
    %p231 = scmp.eq.s32.totalorder %s22, 0
    %p232 = por %p230, %p231
    %p233 = scmp.ne.s32.totalorder %s221, %s222
    %p234 = scmp.eq.s32.totalorder %s23, 1
    %p235 = por %p233, %p234
    %p237 = scmp.ne.s32.totalorder %s222, %s236
    %p238 = scmp.eq.s32.totalorder %s23, 0
    %p239 = por %p237, %p238
    %s241 = sadd.s32 %s240, 1
    %p244 = scmp.eq.s32.totalorder %s17, 1
    %p245 = scmp.ne.s32.totalorder %s240, %s242
    %p246 = scmp.eq.s32.totalorder %s17, 0
    %p247 = por %p245, %p246
    %p248 = scmp.ne.s32.totalorder %s240, %s242
    %p249 = scmp.eq.s32.totalorder %s22, 1
    %p250 = por %p248, %p249
    %p251 = scmp.ne.s32.totalorder %s242, %s243
    %p252 = scmp.eq.s32.totalorder %s22, 0
    %p253 = por %p251, %p252
    %p254 = scmp.ne.s32.totalorder %s242, %s243
    %p255 = scmp.eq.s32.totalorder %s23, 1
    %p256 = por %p254, %p255
    %p258 = scmp.ne.s32.totalorder %s243, %s257
    %p259 = scmp.eq.s32.totalorder %s23, 0
    %p260 = por %p258, %p259
    %s261 = ssub.s32 %s17, %s24
    %p262 = scmp.eq.s32.totalorder %s261, 0
    %s264 = sadd.s32 %s263, 1
    %s265 = scalar_select %p262, %s263, %s264
    %p268 = pneg %p262
    %p269 = scmp.eq.s32.totalorder %s17, 1
    %p270 = por %p268, %p269
    %p271 = scmp.ne.s32.totalorder %s263, %s266
    %p272 = scmp.eq.s32.totalorder %s17, 0
    %p273 = por %p271, %p272
    %p274 = scmp.ne.s32.totalorder %s263, %s266
    %p275 = scmp.eq.s32.totalorder %s22, 1
    %p276 = por %p274, %p275
    %p277 = scmp.ne.s32.totalorder %s266, %s267
    %p278 = scmp.eq.s32.totalorder %s22, 0
    %p279 = por %p277, %p278
    %p280 = scmp.ne.s32.totalorder %s266, %s267
    %p281 = scmp.eq.s32.totalorder %s23, 1
    %p282 = por %p280, %p281
    %p284 = scmp.ne.s32.totalorder %s267, %s283
    %p285 = scmp.eq.s32.totalorder %s23, 0
    %p286 = por %p284, %p285
    %p287 = scmp.le.s32.totalorder 1, %s17
    %p288 = scmp.lt.s32.totalorder %s17, 3
    %p289 = pnand %p287, %p288
    %p290 = pneg %p289
    // Predicated region
    $region9: #{autoencoder_forward.1} parent=5 // pred_check
      _
    $region10: #{autoencoder_forward.1} parent=5 // pred_check_branch
      %292 = sbr.rel (%p289) target = $region12
    $region11: #{autoencoder_forward.1} parent=5 // pred_region
      %s293 = ssub.s32 %s17, 1
      // Predicated region
      $region13: #{autoencoder_forward.1} parent=11 // pred_check
        %p294 = pneg %p64
      $region14: #{autoencoder_forward.1} parent=11 // pred_check_branch
        %296 = sbr.rel (%p294) target = $region16
      $region15: #{autoencoder_forward.1} parent=11 // pred_region
        _
      $region16: #{autoencoder_forward.1} parent=11 // pred_fallthru
        _
      // Predicated region
      $region17: #{autoencoder_forward.1} parent=11 // pred_check
        %p297 = pneg %p85
      $region18: #{autoencoder_forward.1} parent=11 // pred_check_branch
        %299 = sbr.rel (%p297) target = $region20
      $region19: #{autoencoder_forward.1} parent=11 // pred_region
        _
      $region20: #{autoencoder_forward.1} parent=11 // pred_fallthru
        _
      // Predicated region
      $region21: #{autoencoder_forward.1} parent=11 // pred_check
        %p300 = pneg %p106
      $region22: #{autoencoder_forward.1} parent=11 // pred_check_branch
        %302 = sbr.rel (%p300) target = $region24
      $region23: #{autoencoder_forward.1} parent=11 // pred_region
        _
      $region24: #{autoencoder_forward.1} parent=11 // pred_fallthru
        _
      // Predicated region
      $region25: #{autoencoder_forward.1} parent=11 // pred_check
        %p303 = pneg %p127
      $region26: #{autoencoder_forward.1} parent=11 // pred_check_branch
        %305 = sbr.rel (%p303) target = $region28
      $region27: #{autoencoder_forward.1} parent=11 // pred_region
        _
      $region28: #{autoencoder_forward.1} parent=11 // pred_fallthru
        _
      // Predicated region
      $region29: #{autoencoder_forward.1} parent=11 // pred_check
        %p306 = pneg %p148
      $region30: #{autoencoder_forward.1} parent=11 // pred_check_branch
        %308 = sbr.rel (%p306) target = $region32
      $region31: #{autoencoder_forward.1} parent=11 // pred_region
        _
      $region32: #{autoencoder_forward.1} parent=11 // pred_fallthru
        _
      // Predicated region
      $region33: #{autoencoder_forward.1} parent=11 // pred_check
        %p309 = pneg %p169
      $region34: #{autoencoder_forward.1} parent=11 // pred_check_branch
        %311 = sbr.rel (%p309) target = $region36
      $region35: #{autoencoder_forward.1} parent=11 // pred_region
        _
      $region36: #{autoencoder_forward.1} parent=11 // pred_fallthru
        _
      // Predicated region
      $region37: #{autoencoder_forward.1} parent=11 // pred_check
        %p312 = pneg %p190
      $region38: #{autoencoder_forward.1} parent=11 // pred_check_branch
        %314 = sbr.rel (%p312) target = $region40
      $region39: #{autoencoder_forward.1} parent=11 // pred_region
        _
      $region40: #{autoencoder_forward.1} parent=11 // pred_fallthru
        _
      // Predicated region
      $region41: #{autoencoder_forward.1} parent=11 // pred_check
        %p315 = pneg %p211
      $region42: #{autoencoder_forward.1} parent=11 // pred_check_branch
        %317 = sbr.rel (%p315) target = $region44
      $region43: #{autoencoder_forward.1} parent=11 // pred_region
        _
      $region44: #{autoencoder_forward.1} parent=11 // pred_fallthru
        _
      // Predicated region
      $region45: #{autoencoder_forward.1} parent=11 // pred_check
        %p318 = pneg %p232
      $region46: #{autoencoder_forward.1} parent=11 // pred_check_branch
        %320 = sbr.rel (%p318) target = $region48
      $region47: #{autoencoder_forward.1} parent=11 // pred_region
        _
      $region48: #{autoencoder_forward.1} parent=11 // pred_fallthru
        _
      // Predicated region
      $region49: #{autoencoder_forward.1} parent=11 // pred_check
        %p321 = pneg %p253
      $region50: #{autoencoder_forward.1} parent=11 // pred_check_branch
        %323 = sbr.rel (%p321) target = $region52
      $region51: #{autoencoder_forward.1} parent=11 // pred_region
        _
      $region52: #{autoencoder_forward.1} parent=11 // pred_fallthru
        _
    $region12: #{autoencoder_forward.1} parent=5 // pred_fallthru
      _
    %p324 = scmp.lt.s32.totalorder %s17, 2
    // Predicated region
    $region53: #{autoencoder_forward.1} parent=5 // pred_check
      %p325 = pneg %p324
    $region54: #{autoencoder_forward.1} parent=5 // pred_check_branch
      %327 = sbr.rel (%p325) target = $region56
    $region55: #{autoencoder_forward.1} parent=5 // pred_region
      // Predicated region
      $region57: #{autoencoder_forward.1} parent=55 // pred_check
        %p328 = pneg %p37
      $region58: #{autoencoder_forward.1} parent=55 // pred_check_branch
        %330 = sbr.rel (%p328) target = $region60
      $region59: #{autoencoder_forward.1} parent=55 // pred_region
        %s331 = smul.u32 32, %s17
        %p332 = scmp.lt.s32.totalorder %s331, 63
        %s333 = scalar_select %p332, %s331, 63
        %s334 = smul.addr %s333, 4
        %s335 = scalar_lea.vmem %s0, %s334
        %s336 = smul.u32 32, %s17
      $region60: #{autoencoder_forward.1} parent=55 // pred_fallthru
        _
    $region56: #{autoencoder_forward.1} parent=5 // pred_fallthru
      _
    %p337 = scmp.le.s32.totalorder 1, %s17
    %p338 = scmp.lt.s32.totalorder %s17, 3
    %p339 = pnand %p337, %p338
    %p340 = pneg %p339
    // Predicated region
    $region61: #{autoencoder_forward.1} parent=5 // pred_check
      _
    $region62: #{autoencoder_forward.1} parent=5 // pred_check_branch
      %342 = sbr.rel (%p339) target = $region64
    $region63: #{autoencoder_forward.1} parent=5 // pred_region
      %s343 = ssub.s32 %s17, 1
      %s344 = smul.u32 32, %s22
      %p345 = scmp.lt.s32.totalorder %s344, 63
      %s346 = scalar_select %p345, %s344, 63
      %s347 = smul.addr %s346, 4
      %s348 = scalar_lea.vmem %s0, %s347
      %p349 = pneg %p43
      %p350 = pneg %p40
      %p351 = pneg %p64
      %p352 = pneg %p61
      %p353 = pneg %p85
      %p354 = pneg %p82
      %p355 = pneg %p106
      %p356 = pneg %p103
      %p357 = pneg %p127
      %p358 = pneg %p124
      %p359 = pneg %p148
      %p360 = pneg %p145
      %p361 = pneg %p169
      %p362 = pneg %p166
      %p363 = pneg %p190
      %p364 = pneg %p187
      %p365 = pneg %p211
      %p366 = pneg %p208
      %p367 = pneg %p232
      %p368 = pneg %p229
      %p369 = pneg %p253
      %p370 = pneg %p250
      %p371 = pneg %p279
      %p372 = pneg %p276
      %s373 = smul.u32 32, %s22
      %p374 = scmp.lt.s32.totalorder %s373, 63
      %s375 = scalar_select %p374, %s373, 63
      %s376 = smul.addr %s375, 8
      %s377 = scalar_lea.vmem %s11, %s376
      %s378 = smul.u32 32, %s22
      %p379 = scmp.lt.s32.totalorder %s378, 63
      %s380 = scalar_select %p379, %s378, 63
      %s381 = smul.addr %s380, 4
      %s382 = scalar_lea.vmem %s0, %s381
      %s383 = smul.u32 32, %s22
      %s384 = smul.u32 32, %s22
      %p385 = scmp.lt.s32.totalorder %s384, 63
      %s386 = scalar_select %p385, %s384, 63
      %s387 = smul.addr %s386, 8
      %s388 = scalar_lea.vmem %s11, %s387
      %s389 = smul.u32 32, %s22
      %v391 = vld [vmem:[%s382] sm:$0xf]
      %v392 = vld [vmem:[%s382 + $0x4] sm:$0xf]
      %v393 = vld [vmem:[%s382 + $0x8] sm:$0xf]
      %v394 = vld [vmem:[%s382 + $0xc] sm:$0xf]
      %v395 = vld [vmem:[%s382 + $0x10] sm:$0xf]
      %v396 = vld [vmem:[%s382 + $0x14] sm:$0xf]
      %v397 = vld [vmem:[%s382 + $0x18] sm:$0xf]
      %v398 = vld [vmem:[%s382 + $0x1c] sm:$0xf]
      %v399 = vld [vmem:[%s382 + $0x20] sm:$0xf]
      %v400 = vld [vmem:[%s382 + $0x24] sm:$0xf]
      %v401 = vld [vmem:[%s382 + $0x28] sm:$0xf]
      %v402 = vld [vmem:[%s382 + $0x2c] sm:$0xf]
      %v403 = vld [vmem:[%s382 + $0x30] sm:$0xf]
      %v404 = vld [vmem:[%s382 + $0x34] sm:$0xf]
      %v405 = vld [vmem:[%s382 + $0x38] sm:$0xf]
      %v406 = vld [vmem:[%s382 + $0x3c] sm:$0xf]
      %v407 = vld [vmem:[%s382 + $0x40] sm:$0xf]
      %v408 = vld [vmem:[%s382 + $0x44] sm:$0xf]
      %v409 = vld [vmem:[%s382 + $0x48] sm:$0xf]
      %v410 = vld [vmem:[%s382 + $0x4c] sm:$0xf]
      %v411 = vld [vmem:[%s382 + $0x50] sm:$0xf]
      %v412 = vld [vmem:[%s382 + $0x54] sm:$0xf]
      %v413 = vld [vmem:[%s382 + $0x58] sm:$0xf]
      %v414 = vld [vmem:[%s382 + $0x5c] sm:$0xf]
      %v415 = vld [vmem:[%s382 + $0x60] sm:$0xf]
      %v416 = vld [vmem:[%s382 + $0x64] sm:$0xf]
      %v417 = vld [vmem:[%s382 + $0x68] sm:$0xf]
      %v418 = vld [vmem:[%s382 + $0x6c] sm:$0xf]
      %v419 = vld [vmem:[%s382 + $0x70] sm:$0xf]
      %v420 = vld [vmem:[%s382 + $0x74] sm:$0xf]
      %v421 = vld [vmem:[%s382 + $0x78] sm:$0xf]
      %v422 = vld [vmem:[%s382 + $0x7c] sm:$0xf]
      %v423 = vld [vmem:[%s1] sm:$0xff]
      %v424 = vld [vmem:[%s1 + $0x8] sm:$0xff]
      %v425 = vld [vmem:[%s1 + $0x10] sm:$0xff]
      %v426 = vld [vmem:[%s1 + $0x18] sm:$0xff]
      %v427 = vld [vmem:[%s1 + $0x20] sm:$0xff]
      %v428 = vld [vmem:[%s1 + $0x28] sm:$0xff]
      %v429 = vld [vmem:[%s1 + $0x30] sm:$0xff]
      %v430 = vld [vmem:[%s1 + $0x38] sm:$0xff]
      %v431 = vld [vmem:[%s1 + $0x40] sm:$0xff]
      %v432 = vld [vmem:[%s1 + $0x48] sm:$0xff]
      %v433 = vld [vmem:[%s1 + $0x50] sm:$0xff]
      %v434 = vld [vmem:[%s1 + $0x58] sm:$0xff]
      %v435 = vld [vmem:[%s1 + $0x60] sm:$0xff]
      %v436 = vld [vmem:[%s1 + $0x68] sm:$0xff]
      %v437 = vld [vmem:[%s1 + $0x70] sm:$0xff]
      %v438 = vld [vmem:[%s1 + $0x78] sm:$0xff]
      %v439 = vld [vmem:[%s1 + $0x80] sm:$0xff]
      %v440 = vld [vmem:[%s1 + $0x88] sm:$0xff]
      %v441 = vld [vmem:[%s1 + $0x90] sm:$0xff]
      %v442 = vld [vmem:[%s1 + $0x98] sm:$0xff]
      %v443 = vld [vmem:[%s1 + $0xa0] sm:$0xff]
      %v444 = vld [vmem:[%s1 + $0xa8] sm:$0xff]
      %v445 = vld [vmem:[%s1 + $0xb0] sm:$0xff]
      %v446 = vld [vmem:[%s1 + $0xb8] sm:$0xff]
      %v447 = vld [vmem:[%s1 + $0xc0] sm:$0xff]
      %v448 = vld [vmem:[%s1 + $0xc8] sm:$0xff]
      %v449 = vld [vmem:[%s1 + $0xd0] sm:$0xff]
      %v450 = vld [vmem:[%s1 + $0xd8] sm:$0xff]
      %v451 = vld [vmem:[%s1 + $0xe0] sm:$0xff]
      %v452 = vld [vmem:[%s1 + $0xe8] sm:$0xff]
      %v453 = vld [vmem:[%s1 + $0xf0] sm:$0xff]
      %v454 = vld [vmem:[%s1 + $0xf8] sm:$0xff]
      %v455 = vld [vmem:[%s2] sm:$0xf]
      %v457 = vlaneseq
      %v458 = vshrl.u32 %v457, 7
      %v459 = vsub.s32 0, %v458
      %v460 = vrot.slane %v455, %v459
      %v461 = vlaneseq
      %v462 = vshrl.u32 %v461, 7
      %v463 = vsub.s32 1, %v462
      %v464 = vrot.slane %v455, %v463
      %v465 = vlaneseq
      %v466 = vshrl.u32 %v465, 7
      %v467 = vsub.s32 2, %v466
      %v468 = vrot.slane %v455, %v467
      %v469 = vlaneseq
      %v470 = vshrl.u32 %v469, 7
      %v471 = vsub.s32 3, %v470
      %v472 = vrot.slane %v455, %v471
      %v493 = vunpack.c.l.b16 %v391
      %v494 = vunpack.c.l.b16 %v392
      %v495 = vunpack.c.l.b16 %v393
      %v496 = vunpack.c.l.b16 %v394
      %v497 = vunpack.c.l.b16 %v395
      %v498 = vunpack.c.l.b16 %v396
      %v499 = vunpack.c.l.b16 %v397
      %v500 = vunpack.c.l.b16 %v398
      %v501 = vunpack.c.l.b16 %v399
      %v502 = vunpack.c.l.b16 %v400
      %v503 = vunpack.c.l.b16 %v401
      %v504 = vunpack.c.l.b16 %v402
      %v505 = vunpack.c.l.b16 %v403
      %v506 = vunpack.c.l.b16 %v404
      %v507 = vunpack.c.l.b16 %v405
      %v508 = vunpack.c.l.b16 %v406
      %v509 = vpack.c.b16 %v494, %v493
      %v510 = vpack.c.b16 %v496, %v495
      %v511 = vpack.c.b16 %v498, %v497
      %v512 = vpack.c.b16 %v500, %v499
      %v513 = vpack.c.b16 %v502, %v501
      %v514 = vpack.c.b16 %v504, %v503
      %v515 = vpack.c.b16 %v506, %v505
      %v516 = vpack.c.b16 %v508, %v507
      %v557 = vunpack.c.l.b16 %v423
      %v558 = vunpack.c.h.b16 %v423
      %v559 = vunpack.c.l.b16 %v424
      %v560 = vunpack.c.h.b16 %v424
      %v561 = vunpack.c.l.b16 %v425
      %v562 = vunpack.c.h.b16 %v425
      %v563 = vunpack.c.l.b16 %v426
      %v564 = vunpack.c.h.b16 %v426
      %v565 = vunpack.c.l.b16 %v427
      %v566 = vunpack.c.h.b16 %v427
      %v567 = vunpack.c.l.b16 %v428
      %v568 = vunpack.c.h.b16 %v428
      %v569 = vunpack.c.l.b16 %v429
      %v570 = vunpack.c.h.b16 %v429
      %v571 = vunpack.c.l.b16 %v430
      %v572 = vunpack.c.h.b16 %v430
      %v573 = vunpack.c.l.b16 %v431
      %v574 = vunpack.c.h.b16 %v431
      %v575 = vunpack.c.l.b16 %v432
      %v576 = vunpack.c.h.b16 %v432
      %v577 = vunpack.c.l.b16 %v433
      %v578 = vunpack.c.h.b16 %v433
      %v579 = vunpack.c.l.b16 %v434
      %v580 = vunpack.c.h.b16 %v434
      %v581 = vunpack.c.l.b16 %v435
      %v582 = vunpack.c.h.b16 %v435
      %v583 = vunpack.c.l.b16 %v436
      %v584 = vunpack.c.h.b16 %v436
      %v585 = vunpack.c.l.b16 %v437
      %v586 = vunpack.c.h.b16 %v437
      %v587 = vunpack.c.l.b16 %v438
      %v588 = vunpack.c.h.b16 %v438
      %v589 = vunpack.c.l.b16 %v439
      %v590 = vunpack.c.h.b16 %v439
      %v591 = vunpack.c.l.b16 %v440
      %v592 = vunpack.c.h.b16 %v440
      %v593 = vunpack.c.l.b16 %v441
      %v594 = vunpack.c.h.b16 %v441
      %v595 = vunpack.c.l.b16 %v442
      %v596 = vunpack.c.h.b16 %v442
      %v597 = vunpack.c.l.b16 %v443
      %v598 = vunpack.c.h.b16 %v443
      %v599 = vunpack.c.l.b16 %v444
      %v600 = vunpack.c.h.b16 %v444
      %v601 = vunpack.c.l.b16 %v445
      %v602 = vunpack.c.h.b16 %v445
      %v603 = vunpack.c.l.b16 %v446
      %v604 = vunpack.c.h.b16 %v446
      %v605 = vunpack.c.l.b16 %v447
      %v606 = vunpack.c.h.b16 %v447
      %v607 = vunpack.c.l.b16 %v448
      %v608 = vunpack.c.h.b16 %v448
      %v609 = vunpack.c.l.b16 %v449
      %v610 = vunpack.c.h.b16 %v449
      %v611 = vunpack.c.l.b16 %v450
      %v612 = vunpack.c.h.b16 %v450
      %v613 = vunpack.c.l.b16 %v451
      %v614 = vunpack.c.h.b16 %v451
      %v615 = vunpack.c.l.b16 %v452
      %v616 = vunpack.c.h.b16 %v452
      %v617 = vunpack.c.l.b16 %v453
      %v618 = vunpack.c.h.b16 %v453
      %v619 = vunpack.c.l.b16 %v454
      %v620 = vunpack.c.h.b16 %v454
      %v621 = vpack.c.b16 %v561, %v557
      %v622 = vpack.c.b16 %v562, %v558
      %v623 = vpack.c.b16 %v563, %v559
      %v624 = vpack.c.b16 %v564, %v560
      %v625 = vpack.c.b16 %v569, %v565
      %v626 = vpack.c.b16 %v570, %v566
      %v627 = vpack.c.b16 %v571, %v567
      %v628 = vpack.c.b16 %v572, %v568
      %v629 = vpack.c.b16 %v577, %v573
      %v630 = vpack.c.b16 %v578, %v574
      %v631 = vpack.c.b16 %v579, %v575
      %v632 = vpack.c.b16 %v580, %v576
      %v633 = vpack.c.b16 %v585, %v581
      %v634 = vpack.c.b16 %v586, %v582
      %v635 = vpack.c.b16 %v587, %v583
      %v636 = vpack.c.b16 %v588, %v584
      %v637 = vpack.c.b16 %v593, %v589
      %v638 = vpack.c.b16 %v594, %v590
      %v639 = vpack.c.b16 %v595, %v591
      %v640 = vpack.c.b16 %v596, %v592
      %v641 = vpack.c.b16 %v601, %v597
      %v642 = vpack.c.b16 %v602, %v598
      %v643 = vpack.c.b16 %v603, %v599
      %v644 = vpack.c.b16 %v604, %v600
      %v645 = vpack.c.b16 %v609, %v605
      %v646 = vpack.c.b16 %v610, %v606
      %v647 = vpack.c.b16 %v611, %v607
      %v648 = vpack.c.b16 %v612, %v608
      %v649 = vpack.c.b16 %v617, %v613
      %v650 = vpack.c.b16 %v618, %v614
      %v651 = vpack.c.b16 %v619, %v615
      %v652 = vpack.c.b16 %v620, %v616
      %685 = vmatprep.subr.bf16.mxu0 %v650
      %686 = vmatpush1.bf16.msra.mxu0 %v649
      %687 = vmatprep.subr.bf16.mxu0 %v646
      %688 = vmatpush1.bf16.msra.mxu0 %v645
      %689 = vmatprep.subr.bf16.mxu0 %v642
      %690 = vmatpush1.bf16.msra.mxu0 %v641
      %691 = vmatprep.subr.bf16.mxu0 %v638
      %692 = vmatpush1.bf16.msra.mxu0 %v637
      %693 = vmatprep.subr.bf16.mxu0 %v634
      %694 = vmatpush1.bf16.msra.mxu0 %v633
      %695 = vmatprep.subr.bf16.mxu0 %v630
      %696 = vmatpush1.bf16.msra.mxu0 %v629
      %697 = vmatprep.subr.bf16.mxu0 %v626
      %698 = vmatpush1.bf16.msra.mxu0 %v625
      %699 = vmatprep.subr.bf16.mxu0 %v622
      %700 = vmatpush1.bf16.msra.mxu0 %v621
      %701 = vmatprep.subr.bf16.mxu0 0
      %702 = vmatpush2.bf16.msra.mxu0 0
      %703 = vmatprep.subr.bf16.mxu0 0
      %704 = vmatpush2.bf16.msra.mxu0 0
      %705 = vmatprep.subr.bf16.mxu0 0
      %706 = vmatpush2.bf16.msra.mxu0 0
      %707 = vmatprep.subr.bf16.mxu0 0
      %708 = vmatpush2.bf16.msra.mxu0 0
      %709 = vmatprep.subr.bf16.mxu0 0
      %710 = vmatpush2.bf16.msra.mxu0 0
      %711 = vmatprep.subr.bf16.mxu0 0
      %712 = vmatpush2.bf16.msra.mxu0 0
      %713 = vmatprep.subr.bf16.mxu0 0
      %714 = vmatpush2.bf16.msra.mxu0 0
      %715 = vmatprep.subr.bf16.mxu0 0
      %716 = vmatpush2.bf16.msra.mxu0 0
      %717 = vmatprep.mubr.bf16.mxu0 0
      %718 = vmatmul.mubr.bf16.gmra.mxu0 %v509
      %v719 = vpop.f32.mrf.mxu0
      %v720 = vadd.f32 %v460, %v719
      %v721 = vpop.f32.mrf.mxu0
      %v722 = vadd.f32 %v464, %v721
      %v723 = vpop.f32.mrf.mxu0
      %v724 = vadd.f32 %v460, %v723
      %v725 = vpop.f32.mrf.mxu0
      %v726 = vadd.f32 %v464, %v725
      %727 = vmatprep.mubr.bf16.mxu0 0
      %728 = vmatmul.mubr.bf16.gmra.mxu0 %v510
      %v729 = vpop.f32.mrf.mxu0
      %v730 = vadd.f32 %v460, %v729
      %v731 = vpop.f32.mrf.mxu0
      %v732 = vadd.f32 %v464, %v731
      %v733 = vpop.f32.mrf.mxu0
      %v734 = vadd.f32 %v460, %v733
      %v735 = vpop.f32.mrf.mxu0
      %v736 = vadd.f32 %v464, %v735
      %737 = vmatprep.mubr.bf16.mxu0 0
      %738 = vmatmul.mubr.bf16.gmra.mxu0 %v511
      %v739 = vpop.f32.mrf.mxu0
      %v740 = vadd.f32 %v460, %v739
      %v741 = vpop.f32.mrf.mxu0
      %v742 = vadd.f32 %v464, %v741
      %v743 = vpop.f32.mrf.mxu0
      %v744 = vadd.f32 %v460, %v743
      %v745 = vpop.f32.mrf.mxu0
      %v746 = vadd.f32 %v464, %v745
      %747 = vmatprep.mubr.bf16.mxu0 0
      %748 = vmatmul.mubr.bf16.gmra.mxu0 %v512
      %v749 = vpop.f32.mrf.mxu0
      %v750 = vadd.f32 %v460, %v749
      %v751 = vpop.f32.mrf.mxu0
      %v752 = vadd.f32 %v464, %v751
      %v753 = vpop.f32.mrf.mxu0
      %v754 = vadd.f32 %v460, %v753
      %v755 = vpop.f32.mrf.mxu0
      %v756 = vadd.f32 %v464, %v755
      %757 = vmatprep.mubr.bf16.mxu0 0
      %758 = vmatmul.mubr.bf16.gmra.mxu0 %v513
      %v759 = vpop.f32.mrf.mxu0
      %v760 = vadd.f32 %v460, %v759
      %v761 = vpop.f32.mrf.mxu0
      %v762 = vadd.f32 %v464, %v761
      %v763 = vpop.f32.mrf.mxu0
      %v764 = vadd.f32 %v460, %v763
      %v765 = vpop.f32.mrf.mxu0
      %v766 = vadd.f32 %v464, %v765
      %767 = vmatprep.mubr.bf16.mxu0 0
      %768 = vmatmul.mubr.bf16.gmra.mxu0 %v514
      %v769 = vpop.f32.mrf.mxu0
      %v770 = vadd.f32 %v460, %v769
      %v771 = vpop.f32.mrf.mxu0
      %v772 = vadd.f32 %v464, %v771
      %v773 = vpop.f32.mrf.mxu0
      %v774 = vadd.f32 %v460, %v773
      %v775 = vpop.f32.mrf.mxu0
      %v776 = vadd.f32 %v464, %v775
      %777 = vmatprep.mubr.bf16.mxu0 0
      %778 = vmatmul.mubr.bf16.gmra.mxu0 %v515
      %v779 = vpop.f32.mrf.mxu0
      %v780 = vadd.f32 %v460, %v779
      %v781 = vpop.f32.mrf.mxu0
      %v782 = vadd.f32 %v464, %v781
      %v783 = vpop.f32.mrf.mxu0
      %v784 = vadd.f32 %v460, %v783
      %v785 = vpop.f32.mrf.mxu0
      %v786 = vadd.f32 %v464, %v785
      %787 = vmatprep.mubr.bf16.mxu0 0
      %788 = vmatmul.mubr.bf16.gmra.mxu0 %v516
      %v789 = vpop.f32.mrf.mxu0
      %v790 = vadd.f32 %v460, %v789
      %v791 = vpop.f32.mrf.mxu0
      %v792 = vadd.f32 %v464, %v791
      %v793 = vpop.f32.mrf.mxu0
      %v794 = vadd.f32 %v460, %v793
      %v795 = vpop.f32.mrf.mxu0
      %v796 = vadd.f32 %v464, %v795
      %797 = vdwg.mxu0
      %798 = vmatprep.subr.bf16.mxu0 %v652
      %799 = vmatpush1.bf16.msra.mxu0 %v651
      %800 = vmatprep.subr.bf16.mxu0 %v648
      %801 = vmatpush1.bf16.msra.mxu0 %v647
      %802 = vmatprep.subr.bf16.mxu0 %v644
      %803 = vmatpush1.bf16.msra.mxu0 %v643
      %804 = vmatprep.subr.bf16.mxu0 %v640
      %805 = vmatpush1.bf16.msra.mxu0 %v639
      %806 = vmatprep.subr.bf16.mxu0 %v636
      %807 = vmatpush1.bf16.msra.mxu0 %v635
      %808 = vmatprep.subr.bf16.mxu0 %v632
      %809 = vmatpush1.bf16.msra.mxu0 %v631
      %810 = vmatprep.subr.bf16.mxu0 %v628
      %811 = vmatpush1.bf16.msra.mxu0 %v627
      %812 = vmatprep.subr.bf16.mxu0 %v624
      %813 = vmatpush1.bf16.msra.mxu0 %v623
      %814 = vmatprep.subr.bf16.mxu0 0
      %815 = vmatpush2.bf16.msra.mxu0 0
      %816 = vmatprep.subr.bf16.mxu0 0
      %817 = vmatpush2.bf16.msra.mxu0 0
      %818 = vmatprep.subr.bf16.mxu0 0
      %819 = vmatpush2.bf16.msra.mxu0 0
      %820 = vmatprep.subr.bf16.mxu0 0
      %821 = vmatpush2.bf16.msra.mxu0 0
      %822 = vmatprep.subr.bf16.mxu0 0
      %823 = vmatpush2.bf16.msra.mxu0 0
      %824 = vmatprep.subr.bf16.mxu0 0
      %825 = vmatpush2.bf16.msra.mxu0 0
      %826 = vmatprep.subr.bf16.mxu0 0
      %827 = vmatpush2.bf16.msra.mxu0 0
      %828 = vmatprep.subr.bf16.mxu0 0
      %829 = vmatpush2.bf16.msra.mxu0 0
      %830 = vmatprep.mubr.bf16.mxu0 0
      %831 = vmatmul.mubr.bf16.gmra.mxu0 %v509
      %v832 = vpop.f32.mrf.mxu0
      %v833 = vadd.f32 %v468, %v832
      %v834 = vpop.f32.mrf.mxu0
      %v835 = vadd.f32 %v472, %v834
      %v836 = vpop.f32.mrf.mxu0
      %v837 = vadd.f32 %v468, %v836
      %v838 = vpop.f32.mrf.mxu0
      %v839 = vadd.f32 %v472, %v838
      %840 = vmatprep.mubr.bf16.mxu0 0
      %841 = vmatmul.mubr.bf16.gmra.mxu0 %v510
      %v842 = vpop.f32.mrf.mxu0
      %v843 = vadd.f32 %v468, %v842
      %v844 = vpop.f32.mrf.mxu0
      %v845 = vadd.f32 %v472, %v844
      %v846 = vpop.f32.mrf.mxu0
      %v847 = vadd.f32 %v468, %v846
      %v848 = vpop.f32.mrf.mxu0
      %v849 = vadd.f32 %v472, %v848
      %850 = vmatprep.mubr.bf16.mxu0 0
      %851 = vmatmul.mubr.bf16.gmra.mxu0 %v511
      %v852 = vpop.f32.mrf.mxu0
      %v853 = vadd.f32 %v468, %v852
      %v854 = vpop.f32.mrf.mxu0
      %v855 = vadd.f32 %v472, %v854
      %v856 = vpop.f32.mrf.mxu0
      %v857 = vadd.f32 %v468, %v856
      %v858 = vpop.f32.mrf.mxu0
      %v859 = vadd.f32 %v472, %v858
      %860 = vmatprep.mubr.bf16.mxu0 0
      %861 = vmatmul.mubr.bf16.gmra.mxu0 %v512
      %v862 = vpop.f32.mrf.mxu0
      %v863 = vadd.f32 %v468, %v862
      %v864 = vpop.f32.mrf.mxu0
      %v865 = vadd.f32 %v472, %v864
      %v866 = vpop.f32.mrf.mxu0
      %v867 = vadd.f32 %v468, %v866
      %v868 = vpop.f32.mrf.mxu0
      %v869 = vadd.f32 %v472, %v868
      %870 = vmatprep.mubr.bf16.mxu0 0
      %871 = vmatmul.mubr.bf16.gmra.mxu0 %v513
      %v872 = vpop.f32.mrf.mxu0
      %v873 = vadd.f32 %v468, %v872
      %v874 = vpop.f32.mrf.mxu0
      %v875 = vadd.f32 %v472, %v874
      %v876 = vpop.f32.mrf.mxu0
      %v877 = vadd.f32 %v468, %v876
      %v878 = vpop.f32.mrf.mxu0
      %v879 = vadd.f32 %v472, %v878
      %880 = vmatprep.mubr.bf16.mxu0 0
      %881 = vmatmul.mubr.bf16.gmra.mxu0 %v514
      %v882 = vpop.f32.mrf.mxu0
      %v883 = vadd.f32 %v468, %v882
      %v884 = vpop.f32.mrf.mxu0
      %v885 = vadd.f32 %v472, %v884
      %v886 = vpop.f32.mrf.mxu0
      %v887 = vadd.f32 %v468, %v886
      %v888 = vpop.f32.mrf.mxu0
      %v889 = vadd.f32 %v472, %v888
      %890 = vmatprep.mubr.bf16.mxu0 0
      %891 = vmatmul.mubr.bf16.gmra.mxu0 %v515
      %v892 = vpop.f32.mrf.mxu0
      %v893 = vadd.f32 %v468, %v892
      %v894 = vpop.f32.mrf.mxu0
      %v895 = vadd.f32 %v472, %v894
      %v896 = vpop.f32.mrf.mxu0
      %v897 = vadd.f32 %v468, %v896
      %v898 = vpop.f32.mrf.mxu0
      %v899 = vadd.f32 %v472, %v898
      %900 = vmatprep.mubr.bf16.mxu0 0
      %901 = vmatmul.mubr.bf16.gmra.mxu0 %v516
      %v902 = vpop.f32.mrf.mxu0
      %v903 = vadd.f32 %v468, %v902
      %v904 = vpop.f32.mrf.mxu0
      %v905 = vadd.f32 %v472, %v904
      %v906 = vpop.f32.mrf.mxu0
      %v907 = vadd.f32 %v468, %v906
      %v908 = vpop.f32.mrf.mxu0
      %v909 = vadd.f32 %v472, %v908
      %910 = vdwg.mxu0
      %v927 = vunpack.c.l.b16 %v407
      %v928 = vunpack.c.l.b16 %v408
      %v929 = vunpack.c.l.b16 %v409
      %v930 = vunpack.c.l.b16 %v410
      %v931 = vunpack.c.l.b16 %v411
      %v932 = vunpack.c.l.b16 %v412
      %v933 = vunpack.c.l.b16 %v413
      %v934 = vunpack.c.l.b16 %v414
      %v935 = vunpack.c.l.b16 %v415
      %v936 = vunpack.c.l.b16 %v416
      %v937 = vunpack.c.l.b16 %v417
      %v938 = vunpack.c.l.b16 %v418
      %v939 = vunpack.c.l.b16 %v419
      %v940 = vunpack.c.l.b16 %v420
      %v941 = vunpack.c.l.b16 %v421
      %v942 = vunpack.c.l.b16 %v422
      %v943 = vpack.c.b16 %v928, %v927
      %v944 = vpack.c.b16 %v930, %v929
      %v945 = vpack.c.b16 %v932, %v931
      %v946 = vpack.c.b16 %v934, %v933
      %v947 = vpack.c.b16 %v936, %v935
      %v948 = vpack.c.b16 %v938, %v937
      %v949 = vpack.c.b16 %v940, %v939
      %v950 = vpack.c.b16 %v942, %v941
      %959 = vmatprep.subr.bf16.mxu0 %v650
      %960 = vmatpush1.bf16.msra.mxu0 %v649
      %961 = vmatprep.subr.bf16.mxu0 %v646
      %962 = vmatpush1.bf16.msra.mxu0 %v645
      %963 = vmatprep.subr.bf16.mxu0 %v642
      %964 = vmatpush1.bf16.msra.mxu0 %v641
      %965 = vmatprep.subr.bf16.mxu0 %v638
      %966 = vmatpush1.bf16.msra.mxu0 %v637
      %967 = vmatprep.subr.bf16.mxu0 %v634
      %968 = vmatpush1.bf16.msra.mxu0 %v633
      %969 = vmatprep.subr.bf16.mxu0 %v630
      %970 = vmatpush1.bf16.msra.mxu0 %v629
      %971 = vmatprep.subr.bf16.mxu0 %v626
      %972 = vmatpush1.bf16.msra.mxu0 %v625
      %973 = vmatprep.subr.bf16.mxu0 %v622
      %974 = vmatpush1.bf16.msra.mxu0 %v621
      %975 = vmatprep.subr.bf16.mxu0 0
      %976 = vmatpush2.bf16.msra.mxu0 0
      %977 = vmatprep.subr.bf16.mxu0 0
      %978 = vmatpush2.bf16.msra.mxu0 0
      %979 = vmatprep.subr.bf16.mxu0 0
      %980 = vmatpush2.bf16.msra.mxu0 0
      %981 = vmatprep.subr.bf16.mxu0 0
      %982 = vmatpush2.bf16.msra.mxu0 0
      %983 = vmatprep.subr.bf16.mxu0 0
      %984 = vmatpush2.bf16.msra.mxu0 0
      %985 = vmatprep.subr.bf16.mxu0 0
      %986 = vmatpush2.bf16.msra.mxu0 0
      %987 = vmatprep.subr.bf16.mxu0 0
      %988 = vmatpush2.bf16.msra.mxu0 0
      %989 = vmatprep.subr.bf16.mxu0 0
      %990 = vmatpush2.bf16.msra.mxu0 0
      %991 = vmatprep.mubr.bf16.mxu0 0
      %992 = vmatmul.mubr.bf16.gmra.mxu0 %v943
      %v993 = vpop.f32.mrf.mxu0
      %v994 = vadd.f32 %v460, %v993
      %v995 = vpop.f32.mrf.mxu0
      %v996 = vadd.f32 %v464, %v995
      %v997 = vpop.f32.mrf.mxu0
      %v998 = vadd.f32 %v460, %v997
      %v999 = vpop.f32.mrf.mxu0
      %v1000 = vadd.f32 %v464, %v999
      %1001 = vmatprep.mubr.bf16.mxu0 0
      %1002 = vmatmul.mubr.bf16.gmra.mxu0 %v944
      %v1003 = vpop.f32.mrf.mxu0
      %v1004 = vadd.f32 %v460, %v1003
      %v1005 = vpop.f32.mrf.mxu0
      %v1006 = vadd.f32 %v464, %v1005
      %v1007 = vpop.f32.mrf.mxu0
      %v1008 = vadd.f32 %v460, %v1007
      %v1009 = vpop.f32.mrf.mxu0
      %v1010 = vadd.f32 %v464, %v1009
      %1011 = vmatprep.mubr.bf16.mxu0 0
      %1012 = vmatmul.mubr.bf16.gmra.mxu0 %v945
      %v1013 = vpop.f32.mrf.mxu0
      %v1014 = vadd.f32 %v460, %v1013
      %v1015 = vpop.f32.mrf.mxu0
      %v1016 = vadd.f32 %v464, %v1015
      %v1017 = vpop.f32.mrf.mxu0
      %v1018 = vadd.f32 %v460, %v1017
      %v1019 = vpop.f32.mrf.mxu0
      %v1020 = vadd.f32 %v464, %v1019
      %1021 = vmatprep.mubr.bf16.mxu0 0
      %1022 = vmatmul.mubr.bf16.gmra.mxu0 %v946
      %v1023 = vpop.f32.mrf.mxu0
      %v1024 = vadd.f32 %v460, %v1023
      %v1025 = vpop.f32.mrf.mxu0
      %v1026 = vadd.f32 %v464, %v1025
      %v1027 = vpop.f32.mrf.mxu0
      %v1028 = vadd.f32 %v460, %v1027
      %v1029 = vpop.f32.mrf.mxu0
      %v1030 = vadd.f32 %v464, %v1029
      %1031 = vmatprep.mubr.bf16.mxu0 0
      %1032 = vmatmul.mubr.bf16.gmra.mxu0 %v947
      %v1033 = vpop.f32.mrf.mxu0
      %v1034 = vadd.f32 %v460, %v1033
      %v1035 = vpop.f32.mrf.mxu0
      %v1036 = vadd.f32 %v464, %v1035
      %v1037 = vpop.f32.mrf.mxu0
      %v1038 = vadd.f32 %v460, %v1037
      %v1039 = vpop.f32.mrf.mxu0
      %v1040 = vadd.f32 %v464, %v1039
      %1041 = vmatprep.mubr.bf16.mxu0 0
      %1042 = vmatmul.mubr.bf16.gmra.mxu0 %v948
      %v1043 = vpop.f32.mrf.mxu0
      %v1044 = vadd.f32 %v460, %v1043
      %v1045 = vpop.f32.mrf.mxu0
      %v1046 = vadd.f32 %v464, %v1045
      %v1047 = vpop.f32.mrf.mxu0
      %v1048 = vadd.f32 %v460, %v1047
      %v1049 = vpop.f32.mrf.mxu0
      %v1050 = vadd.f32 %v464, %v1049
      %1051 = vmatprep.mubr.bf16.mxu0 0
      %1052 = vmatmul.mubr.bf16.gmra.mxu0 %v949
      %v1053 = vpop.f32.mrf.mxu0
      %v1054 = vadd.f32 %v460, %v1053
      %v1055 = vpop.f32.mrf.mxu0
      %v1056 = vadd.f32 %v464, %v1055
      %v1057 = vpop.f32.mrf.mxu0
      %v1058 = vadd.f32 %v460, %v1057
      %v1059 = vpop.f32.mrf.mxu0
      %v1060 = vadd.f32 %v464, %v1059
      %1061 = vmatprep.mubr.bf16.mxu0 0
      %1062 = vmatmul.mubr.bf16.gmra.mxu0 %v950
      %v1063 = vpop.f32.mrf.mxu0
      %v1064 = vadd.f32 %v460, %v1063
      %v1065 = vpop.f32.mrf.mxu0
      %v1066 = vadd.f32 %v464, %v1065
      %v1067 = vpop.f32.mrf.mxu0
      %v1068 = vadd.f32 %v460, %v1067
      %v1069 = vpop.f32.mrf.mxu0
      %v1070 = vadd.f32 %v464, %v1069
      %1071 = vdwg.mxu0
      %1072 = vmatprep.subr.bf16.mxu0 %v652
      %1073 = vmatpush1.bf16.msra.mxu0 %v651
      %1074 = vmatprep.subr.bf16.mxu0 %v648
      %1075 = vmatpush1.bf16.msra.mxu0 %v647
      %1076 = vmatprep.subr.bf16.mxu0 %v644
      %1077 = vmatpush1.bf16.msra.mxu0 %v643
      %1078 = vmatprep.subr.bf16.mxu0 %v640
      %1079 = vmatpush1.bf16.msra.mxu0 %v639
      %1080 = vmatprep.subr.bf16.mxu0 %v636
      %1081 = vmatpush1.bf16.msra.mxu0 %v635
      %1082 = vmatprep.subr.bf16.mxu0 %v632
      %1083 = vmatpush1.bf16.msra.mxu0 %v631
      %1084 = vmatprep.subr.bf16.mxu0 %v628
      %1085 = vmatpush1.bf16.msra.mxu0 %v627
      %1086 = vmatprep.subr.bf16.mxu0 %v624
      %1087 = vmatpush1.bf16.msra.mxu0 %v623
      %1088 = vmatprep.subr.bf16.mxu0 0
      %1089 = vmatpush2.bf16.msra.mxu0 0
      %1090 = vmatprep.subr.bf16.mxu0 0
      %1091 = vmatpush2.bf16.msra.mxu0 0
      %1092 = vmatprep.subr.bf16.mxu0 0
      %1093 = vmatpush2.bf16.msra.mxu0 0
      %1094 = vmatprep.subr.bf16.mxu0 0
      %1095 = vmatpush2.bf16.msra.mxu0 0
      %1096 = vmatprep.subr.bf16.mxu0 0
      %1097 = vmatpush2.bf16.msra.mxu0 0
      %1098 = vmatprep.subr.bf16.mxu0 0
      %1099 = vmatpush2.bf16.msra.mxu0 0
      %1100 = vmatprep.subr.bf16.mxu0 0
      %1101 = vmatpush2.bf16.msra.mxu0 0
      %1102 = vmatprep.subr.bf16.mxu0 0
      %1103 = vmatpush2.bf16.msra.mxu0 0
      %1104 = vmatprep.mubr.bf16.mxu0 0
      %1105 = vmatmul.mubr.bf16.gmra.mxu0 %v943
      %v1106 = vpop.f32.mrf.mxu0
      %v1107 = vadd.f32 %v468, %v1106
      %v1108 = vpop.f32.mrf.mxu0
      %v1109 = vadd.f32 %v472, %v1108
      %v1110 = vpop.f32.mrf.mxu0
      %v1111 = vadd.f32 %v468, %v1110
      %v1112 = vpop.f32.mrf.mxu0
      %v1113 = vadd.f32 %v472, %v1112
      %1114 = vmatprep.mubr.bf16.mxu0 0
      %1115 = vmatmul.mubr.bf16.gmra.mxu0 %v944
      %v1116 = vpop.f32.mrf.mxu0
      %v1117 = vadd.f32 %v468, %v1116
      %v1118 = vpop.f32.mrf.mxu0
      %v1119 = vadd.f32 %v472, %v1118
      %v1120 = vpop.f32.mrf.mxu0
      %v1121 = vadd.f32 %v468, %v1120
      %v1122 = vpop.f32.mrf.mxu0
      %v1123 = vadd.f32 %v472, %v1122
      %1124 = vmatprep.mubr.bf16.mxu0 0
      %1125 = vmatmul.mubr.bf16.gmra.mxu0 %v945
      %v1126 = vpop.f32.mrf.mxu0
      %v1127 = vadd.f32 %v468, %v1126
      %v1128 = vpop.f32.mrf.mxu0
      %v1129 = vadd.f32 %v472, %v1128
      %v1130 = vpop.f32.mrf.mxu0
      %v1131 = vadd.f32 %v468, %v1130
      %v1132 = vpop.f32.mrf.mxu0
      %v1133 = vadd.f32 %v472, %v1132
      %1134 = vmatprep.mubr.bf16.mxu0 0
      %1135 = vmatmul.mubr.bf16.gmra.mxu0 %v946
      %v1136 = vpop.f32.mrf.mxu0
      %v1137 = vadd.f32 %v468, %v1136
      %v1138 = vpop.f32.mrf.mxu0
      %v1139 = vadd.f32 %v472, %v1138
      %v1140 = vpop.f32.mrf.mxu0
      %v1141 = vadd.f32 %v468, %v1140
      %v1142 = vpop.f32.mrf.mxu0
      %v1143 = vadd.f32 %v472, %v1142
      %1144 = vmatprep.mubr.bf16.mxu0 0
      %1145 = vmatmul.mubr.bf16.gmra.mxu0 %v947
      %v1146 = vpop.f32.mrf.mxu0
      %v1147 = vadd.f32 %v468, %v1146
      %v1148 = vpop.f32.mrf.mxu0
      %v1149 = vadd.f32 %v472, %v1148
      %v1150 = vpop.f32.mrf.mxu0
      %v1151 = vadd.f32 %v468, %v1150
      %v1152 = vpop.f32.mrf.mxu0
      %v1153 = vadd.f32 %v472, %v1152
      %1154 = vmatprep.mubr.bf16.mxu0 0
      %1155 = vmatmul.mubr.bf16.gmra.mxu0 %v948
      %v1156 = vpop.f32.mrf.mxu0
      %v1157 = vadd.f32 %v468, %v1156
      %v1158 = vpop.f32.mrf.mxu0
      %v1159 = vadd.f32 %v472, %v1158
      %v1160 = vpop.f32.mrf.mxu0
      %v1161 = vadd.f32 %v468, %v1160
      %v1162 = vpop.f32.mrf.mxu0
      %v1163 = vadd.f32 %v472, %v1162
      %1164 = vmatprep.mubr.bf16.mxu0 0
      %1165 = vmatmul.mubr.bf16.gmra.mxu0 %v949
      %v1166 = vpop.f32.mrf.mxu0
      %v1167 = vadd.f32 %v468, %v1166
      %v1168 = vpop.f32.mrf.mxu0
      %v1169 = vadd.f32 %v472, %v1168
      %v1170 = vpop.f32.mrf.mxu0
      %v1171 = vadd.f32 %v468, %v1170
      %v1172 = vpop.f32.mrf.mxu0
      %v1173 = vadd.f32 %v472, %v1172
      %1174 = vmatprep.mubr.bf16.mxu0 0
      %1175 = vmatmul.mubr.bf16.gmra.mxu0 %v950
      %v1176 = vpop.f32.mrf.mxu0
      %v1177 = vadd.f32 %v468, %v1176
      %v1178 = vpop.f32.mrf.mxu0
      %v1179 = vadd.f32 %v472, %v1178
      %v1180 = vpop.f32.mrf.mxu0
      %v1181 = vadd.f32 %v468, %v1180
      %v1182 = vpop.f32.mrf.mxu0
      %v1183 = vadd.f32 %v472, %v1182
      %1184 = vdwg.mxu0
      %v1185 = vmin.f32 %v720, 20.0
      %v1186 = vmin.f32 %v722, 20.0
      %v1187 = vmin.f32 %v833, 20.0
      %v1188 = vmin.f32 %v835, 20.0
      %v1189 = vmin.f32 %v724, 20.0
      %v1190 = vmin.f32 %v726, 20.0
      %v1191 = vmin.f32 %v837, 20.0
      %v1192 = vmin.f32 %v839, 20.0
      %v1193 = vmin.f32 %v730, 20.0
      %v1194 = vmin.f32 %v732, 20.0
      %v1195 = vmin.f32 %v843, 20.0
      %v1196 = vmin.f32 %v845, 20.0
      %v1197 = vmin.f32 %v734, 20.0
      %v1198 = vmin.f32 %v736, 20.0
      %v1199 = vmin.f32 %v847, 20.0
      %v1200 = vmin.f32 %v849, 20.0
      %v1201 = vmin.f32 %v740, 20.0
      %v1202 = vmin.f32 %v742, 20.0
      %v1203 = vmin.f32 %v853, 20.0
      %v1204 = vmin.f32 %v855, 20.0
      %v1205 = vmin.f32 %v744, 20.0
      %v1206 = vmin.f32 %v746, 20.0
      %v1207 = vmin.f32 %v857, 20.0
      %v1208 = vmin.f32 %v859, 20.0
      %v1209 = vmin.f32 %v750, 20.0
      %v1210 = vmin.f32 %v752, 20.0
      %v1211 = vmin.f32 %v863, 20.0
      %v1212 = vmin.f32 %v865, 20.0
      %v1213 = vmin.f32 %v754, 20.0
      %v1214 = vmin.f32 %v756, 20.0
      %v1215 = vmin.f32 %v867, 20.0
      %v1216 = vmin.f32 %v869, 20.0
      %v1217 = vmin.f32 %v760, 20.0
      %v1218 = vmin.f32 %v762, 20.0
      %v1219 = vmin.f32 %v873, 20.0
      %v1220 = vmin.f32 %v875, 20.0
      %v1221 = vmin.f32 %v764, 20.0
      %v1222 = vmin.f32 %v766, 20.0
      %v1223 = vmin.f32 %v877, 20.0
      %v1224 = vmin.f32 %v879, 20.0
      %v1225 = vmin.f32 %v770, 20.0
      %v1226 = vmin.f32 %v772, 20.0
      %v1227 = vmin.f32 %v883, 20.0
      %v1228 = vmin.f32 %v885, 20.0
      %v1229 = vmin.f32 %v774, 20.0
      %v1230 = vmin.f32 %v776, 20.0
      %v1231 = vmin.f32 %v887, 20.0
      %v1232 = vmin.f32 %v889, 20.0
      %v1233 = vmin.f32 %v780, 20.0
      %v1234 = vmin.f32 %v782, 20.0
      %v1235 = vmin.f32 %v893, 20.0
      %v1236 = vmin.f32 %v895, 20.0
      %v1237 = vmin.f32 %v784, 20.0
      %v1238 = vmin.f32 %v786, 20.0
      %v1239 = vmin.f32 %v897, 20.0
      %v1240 = vmin.f32 %v899, 20.0
      %v1241 = vmin.f32 %v790, 20.0
      %v1242 = vmin.f32 %v792, 20.0
      %v1243 = vmin.f32 %v903, 20.0
      %v1244 = vmin.f32 %v905, 20.0
      %v1245 = vmin.f32 %v794, 20.0
      %v1246 = vmin.f32 %v796, 20.0
      %v1247 = vmin.f32 %v907, 20.0
      %v1248 = vmin.f32 %v909, 20.0
      %v1249 = vmul.f32 %v1185, 1.442695
      %v1250 = vpow.pop %v1249
      %v1251 = vmul.f32 %v1186, 1.442695
      %v1252 = vpow.pop %v1251
      %v1253 = vmul.f32 %v1187, 1.442695
      %v1254 = vpow.pop %v1253
      %v1255 = vmul.f32 %v1188, 1.442695
      %v1256 = vpow.pop %v1255
      %v1257 = vmul.f32 %v1189, 1.442695
      %v1258 = vpow.pop %v1257
      %v1259 = vmul.f32 %v1190, 1.442695
      %v1260 = vpow.pop %v1259
      %v1261 = vmul.f32 %v1191, 1.442695
      %v1262 = vpow.pop %v1261
      %v1263 = vmul.f32 %v1192, 1.442695
      %v1264 = vpow.pop %v1263
      %v1265 = vmul.f32 %v1193, 1.442695
      %v1266 = vpow.pop %v1265
      %v1267 = vmul.f32 %v1194, 1.442695
      %v1268 = vpow.pop %v1267
      %v1269 = vmul.f32 %v1195, 1.442695
      %v1270 = vpow.pop %v1269
      %v1271 = vmul.f32 %v1196, 1.442695
      %v1272 = vpow.pop %v1271
      %v1273 = vmul.f32 %v1197, 1.442695
      %v1274 = vpow.pop %v1273
      %v1275 = vmul.f32 %v1198, 1.442695
      %v1276 = vpow.pop %v1275
      %v1277 = vmul.f32 %v1199, 1.442695
      %v1278 = vpow.pop %v1277
      %v1279 = vmul.f32 %v1200, 1.442695
      %v1280 = vpow.pop %v1279
      %v1281 = vmul.f32 %v1201, 1.442695
      %v1282 = vpow.pop %v1281
      %v1283 = vmul.f32 %v1202, 1.442695
      %v1284 = vpow.pop %v1283
      %v1285 = vmul.f32 %v1203, 1.442695
      %v1286 = vpow.pop %v1285
      %v1287 = vmul.f32 %v1204, 1.442695
      %v1288 = vpow.pop %v1287
      %v1289 = vmul.f32 %v1205, 1.442695
      %v1290 = vpow.pop %v1289
      %v1291 = vmul.f32 %v1206, 1.442695
      %v1292 = vpow.pop %v1291
      %v1293 = vmul.f32 %v1207, 1.442695
      %v1294 = vpow.pop %v1293
      %v1295 = vmul.f32 %v1208, 1.442695
      %v1296 = vpow.pop %v1295
      %v1297 = vmul.f32 %v1209, 1.442695
      %v1298 = vpow.pop %v1297
      %v1299 = vmul.f32 %v1210, 1.442695
      %v1300 = vpow.pop %v1299
      %v1301 = vmul.f32 %v1211, 1.442695
      %v1302 = vpow.pop %v1301
      %v1303 = vmul.f32 %v1212, 1.442695
      %v1304 = vpow.pop %v1303
      %v1305 = vmul.f32 %v1213, 1.442695
      %v1306 = vpow.pop %v1305
      %v1307 = vmul.f32 %v1214, 1.442695
      %v1308 = vpow.pop %v1307
      %v1309 = vmul.f32 %v1215, 1.442695
      %v1310 = vpow.pop %v1309
      %v1311 = vmul.f32 %v1216, 1.442695
      %v1312 = vpow.pop %v1311
      %v1313 = vmul.f32 %v1217, 1.442695
      %v1314 = vpow.pop %v1313
      %v1315 = vmul.f32 %v1218, 1.442695
      %v1316 = vpow.pop %v1315
      %v1317 = vmul.f32 %v1219, 1.442695
      %v1318 = vpow.pop %v1317
      %v1319 = vmul.f32 %v1220, 1.442695
      %v1320 = vpow.pop %v1319
      %v1321 = vmul.f32 %v1221, 1.442695
      %v1322 = vpow.pop %v1321
      %v1323 = vmul.f32 %v1222, 1.442695
      %v1324 = vpow.pop %v1323
      %v1325 = vmul.f32 %v1223, 1.442695
      %v1326 = vpow.pop %v1325
      %v1327 = vmul.f32 %v1224, 1.442695
      %v1328 = vpow.pop %v1327
      %v1329 = vmul.f32 %v1225, 1.442695
      %v1330 = vpow.pop %v1329
      %v1331 = vmul.f32 %v1226, 1.442695
      %v1332 = vpow.pop %v1331
      %v1333 = vmul.f32 %v1227, 1.442695
      %v1334 = vpow.pop %v1333
      %v1335 = vmul.f32 %v1228, 1.442695
      %v1336 = vpow.pop %v1335
      %v1337 = vmul.f32 %v1229, 1.442695
      %v1338 = vpow.pop %v1337
      %v1339 = vmul.f32 %v1230, 1.442695
      %v1340 = vpow.pop %v1339
      %v1341 = vmul.f32 %v1231, 1.442695
      %v1342 = vpow.pop %v1341
      %v1343 = vmul.f32 %v1232, 1.442695
      %v1344 = vpow.pop %v1343
      %v1345 = vmul.f32 %v1233, 1.442695
      %v1346 = vpow.pop %v1345
      %v1347 = vmul.f32 %v1234, 1.442695
      %v1348 = vpow.pop %v1347
      %v1349 = vmul.f32 %v1235, 1.442695
      %v1350 = vpow.pop %v1349
      %v1351 = vmul.f32 %v1236, 1.442695
      %v1352 = vpow.pop %v1351
      %v1353 = vmul.f32 %v1237, 1.442695
      %v1354 = vpow.pop %v1353
      %v1355 = vmul.f32 %v1238, 1.442695
      %v1356 = vpow.pop %v1355
      %v1357 = vmul.f32 %v1239, 1.442695
      %v1358 = vpow.pop %v1357
      %v1359 = vmul.f32 %v1240, 1.442695
      %v1360 = vpow.pop %v1359
      %v1361 = vmul.f32 %v1241, 1.442695
      %v1362 = vpow.pop %v1361
      %v1363 = vmul.f32 %v1242, 1.442695
      %v1364 = vpow.pop %v1363
      %v1365 = vmul.f32 %v1243, 1.442695
      %v1366 = vpow.pop %v1365
      %v1367 = vmul.f32 %v1244, 1.442695
      %v1368 = vpow.pop %v1367
      %v1369 = vmul.f32 %v1245, 1.442695
      %v1370 = vpow.pop %v1369
      %v1371 = vmul.f32 %v1246, 1.442695
      %v1372 = vpow.pop %v1371
      %v1373 = vmul.f32 %v1247, 1.442695
      %v1374 = vpow.pop %v1373
      %v1375 = vmul.f32 %v1248, 1.442695
      %v1376 = vpow.pop %v1375
      %v1377 = vadd.f32 %v1250, 2.0
      %v1378 = vadd.f32 %v1252, 2.0
      %v1379 = vadd.f32 %v1254, 2.0
      %v1380 = vadd.f32 %v1256, 2.0
      %v1381 = vadd.f32 %v1258, 2.0
      %v1382 = vadd.f32 %v1260, 2.0
      %v1383 = vadd.f32 %v1262, 2.0
      %v1384 = vadd.f32 %v1264, 2.0
      %v1385 = vadd.f32 %v1266, 2.0
      %v1386 = vadd.f32 %v1268, 2.0
      %v1387 = vadd.f32 %v1270, 2.0
      %v1388 = vadd.f32 %v1272, 2.0
      %v1389 = vadd.f32 %v1274, 2.0
      %v1390 = vadd.f32 %v1276, 2.0
      %v1391 = vadd.f32 %v1278, 2.0
      %v1392 = vadd.f32 %v1280, 2.0
      %v1393 = vadd.f32 %v1282, 2.0
      %v1394 = vadd.f32 %v1284, 2.0
      %v1395 = vadd.f32 %v1286, 2.0
      %v1396 = vadd.f32 %v1288, 2.0
      %v1397 = vadd.f32 %v1290, 2.0
      %v1398 = vadd.f32 %v1292, 2.0
      %v1399 = vadd.f32 %v1294, 2.0
      %v1400 = vadd.f32 %v1296, 2.0
      %v1401 = vadd.f32 %v1298, 2.0
      %v1402 = vadd.f32 %v1300, 2.0
      %v1403 = vadd.f32 %v1302, 2.0
      %v1404 = vadd.f32 %v1304, 2.0
      %v1405 = vadd.f32 %v1306, 2.0
      %v1406 = vadd.f32 %v1308, 2.0
      %v1407 = vadd.f32 %v1310, 2.0
      %v1408 = vadd.f32 %v1312, 2.0
      %v1409 = vadd.f32 %v1314, 2.0
      %v1410 = vadd.f32 %v1316, 2.0
      %v1411 = vadd.f32 %v1318, 2.0
      %v1412 = vadd.f32 %v1320, 2.0
      %v1413 = vadd.f32 %v1322, 2.0
      %v1414 = vadd.f32 %v1324, 2.0
      %v1415 = vadd.f32 %v1326, 2.0
      %v1416 = vadd.f32 %v1328, 2.0
      %v1417 = vadd.f32 %v1330, 2.0
      %v1418 = vadd.f32 %v1332, 2.0
      %v1419 = vadd.f32 %v1334, 2.0
      %v1420 = vadd.f32 %v1336, 2.0
      %v1421 = vadd.f32 %v1338, 2.0
      %v1422 = vadd.f32 %v1340, 2.0
      %v1423 = vadd.f32 %v1342, 2.0
      %v1424 = vadd.f32 %v1344, 2.0
      %v1425 = vadd.f32 %v1346, 2.0
      %v1426 = vadd.f32 %v1348, 2.0
      %v1427 = vadd.f32 %v1350, 2.0
      %v1428 = vadd.f32 %v1352, 2.0
      %v1429 = vadd.f32 %v1354, 2.0
      %v1430 = vadd.f32 %v1356, 2.0
      %v1431 = vadd.f32 %v1358, 2.0
      %v1432 = vadd.f32 %v1360, 2.0
      %v1433 = vadd.f32 %v1362, 2.0
      %v1434 = vadd.f32 %v1364, 2.0
      %v1435 = vadd.f32 %v1366, 2.0
      %v1436 = vadd.f32 %v1368, 2.0
      %v1437 = vadd.f32 %v1370, 2.0
      %v1438 = vadd.f32 %v1372, 2.0
      %v1439 = vadd.f32 %v1374, 2.0
      %v1440 = vadd.f32 %v1376, 2.0
      %v1441 = vmul.f32 %v1250, %v1377
      %v1442 = vmul.f32 %v1252, %v1378
      %v1443 = vmul.f32 %v1254, %v1379
      %v1444 = vmul.f32 %v1256, %v1380
      %v1445 = vmul.f32 %v1258, %v1381
      %v1446 = vmul.f32 %v1260, %v1382
      %v1447 = vmul.f32 %v1262, %v1383
      %v1448 = vmul.f32 %v1264, %v1384
      %v1449 = vmul.f32 %v1266, %v1385
      %v1450 = vmul.f32 %v1268, %v1386
      %v1451 = vmul.f32 %v1270, %v1387
      %v1452 = vmul.f32 %v1272, %v1388
      %v1453 = vmul.f32 %v1274, %v1389
      %v1454 = vmul.f32 %v1276, %v1390
      %v1455 = vmul.f32 %v1278, %v1391
      %v1456 = vmul.f32 %v1280, %v1392
      %v1457 = vmul.f32 %v1282, %v1393
      %v1458 = vmul.f32 %v1284, %v1394
      %v1459 = vmul.f32 %v1286, %v1395
      %v1460 = vmul.f32 %v1288, %v1396
      %v1461 = vmul.f32 %v1290, %v1397
      %v1462 = vmul.f32 %v1292, %v1398
      %v1463 = vmul.f32 %v1294, %v1399
      %v1464 = vmul.f32 %v1296, %v1400
      %v1465 = vmul.f32 %v1298, %v1401
      %v1466 = vmul.f32 %v1300, %v1402
      %v1467 = vmul.f32 %v1302, %v1403
      %v1468 = vmul.f32 %v1304, %v1404
      %v1469 = vmul.f32 %v1306, %v1405
      %v1470 = vmul.f32 %v1308, %v1406
      %v1471 = vmul.f32 %v1310, %v1407
      %v1472 = vmul.f32 %v1312, %v1408
      %v1473 = vmul.f32 %v1314, %v1409
      %v1474 = vmul.f32 %v1316, %v1410
      %v1475 = vmul.f32 %v1318, %v1411
      %v1476 = vmul.f32 %v1320, %v1412
      %v1477 = vmul.f32 %v1322, %v1413
      %v1478 = vmul.f32 %v1324, %v1414
      %v1479 = vmul.f32 %v1326, %v1415
      %v1480 = vmul.f32 %v1328, %v1416
      %v1481 = vmul.f32 %v1330, %v1417
      %v1482 = vmul.f32 %v1332, %v1418
      %v1483 = vmul.f32 %v1334, %v1419
      %v1484 = vmul.f32 %v1336, %v1420
      %v1485 = vmul.f32 %v1338, %v1421
      %v1486 = vmul.f32 %v1340, %v1422
      %v1487 = vmul.f32 %v1342, %v1423
      %v1488 = vmul.f32 %v1344, %v1424
      %v1489 = vmul.f32 %v1346, %v1425
      %v1490 = vmul.f32 %v1348, %v1426
      %v1491 = vmul.f32 %v1350, %v1427
      %v1492 = vmul.f32 %v1352, %v1428
      %v1493 = vmul.f32 %v1354, %v1429
      %v1494 = vmul.f32 %v1356, %v1430
      %v1495 = vmul.f32 %v1358, %v1431
      %v1496 = vmul.f32 %v1360, %v1432
      %v1497 = vmul.f32 %v1362, %v1433
      %v1498 = vmul.f32 %v1364, %v1434
      %v1499 = vmul.f32 %v1366, %v1435
      %v1500 = vmul.f32 %v1368, %v1436
      %v1501 = vmul.f32 %v1370, %v1437
      %v1502 = vmul.f32 %v1372, %v1438
      %v1503 = vmul.f32 %v1374, %v1439
      %v1504 = vmul.f32 %v1376, %v1440
      %v1505 = vadd.f32 %v1441, 2.0
      %v1506 = vadd.f32 %v1442, 2.0
      %v1507 = vadd.f32 %v1443, 2.0
      %v1508 = vadd.f32 %v1444, 2.0
      %v1509 = vadd.f32 %v1445, 2.0
      %v1510 = vadd.f32 %v1446, 2.0
      %v1511 = vadd.f32 %v1447, 2.0
      %v1512 = vadd.f32 %v1448, 2.0
      %v1513 = vadd.f32 %v1449, 2.0
      %v1514 = vadd.f32 %v1450, 2.0
      %v1515 = vadd.f32 %v1451, 2.0
      %v1516 = vadd.f32 %v1452, 2.0
      %v1517 = vadd.f32 %v1453, 2.0
      %v1518 = vadd.f32 %v1454, 2.0
      %v1519 = vadd.f32 %v1455, 2.0
      %v1520 = vadd.f32 %v1456, 2.0
      %v1521 = vadd.f32 %v1457, 2.0
      %v1522 = vadd.f32 %v1458, 2.0
      %v1523 = vadd.f32 %v1459, 2.0
      %v1524 = vadd.f32 %v1460, 2.0
      %v1525 = vadd.f32 %v1461, 2.0
      %v1526 = vadd.f32 %v1462, 2.0
      %v1527 = vadd.f32 %v1463, 2.0
      %v1528 = vadd.f32 %v1464, 2.0
      %v1529 = vadd.f32 %v1465, 2.0
      %v1530 = vadd.f32 %v1466, 2.0
      %v1531 = vadd.f32 %v1467, 2.0
      %v1532 = vadd.f32 %v1468, 2.0
      %v1533 = vadd.f32 %v1469, 2.0
      %v1534 = vadd.f32 %v1470, 2.0
      %v1535 = vadd.f32 %v1471, 2.0
      %v1536 = vadd.f32 %v1472, 2.0
      %v1537 = vadd.f32 %v1473, 2.0
      %v1538 = vadd.f32 %v1474, 2.0
      %v1539 = vadd.f32 %v1475, 2.0
      %v1540 = vadd.f32 %v1476, 2.0
      %v1541 = vadd.f32 %v1477, 2.0
      %v1542 = vadd.f32 %v1478, 2.0
      %v1543 = vadd.f32 %v1479, 2.0
      %v1544 = vadd.f32 %v1480, 2.0
      %v1545 = vadd.f32 %v1481, 2.0
      %v1546 = vadd.f32 %v1482, 2.0
      %v1547 = vadd.f32 %v1483, 2.0
      %v1548 = vadd.f32 %v1484, 2.0
      %v1549 = vadd.f32 %v1485, 2.0
      %v1550 = vadd.f32 %v1486, 2.0
      %v1551 = vadd.f32 %v1487, 2.0
      %v1552 = vadd.f32 %v1488, 2.0
      %v1553 = vadd.f32 %v1489, 2.0
      %v1554 = vadd.f32 %v1490, 2.0
      %v1555 = vadd.f32 %v1491, 2.0
      %v1556 = vadd.f32 %v1492, 2.0
      %v1557 = vadd.f32 %v1493, 2.0
      %v1558 = vadd.f32 %v1494, 2.0
      %v1559 = vadd.f32 %v1495, 2.0
      %v1560 = vadd.f32 %v1496, 2.0
      %v1561 = vadd.f32 %v1497, 2.0
      %v1562 = vadd.f32 %v1498, 2.0
      %v1563 = vadd.f32 %v1499, 2.0
      %v1564 = vadd.f32 %v1500, 2.0
      %v1565 = vadd.f32 %v1501, 2.0
      %v1566 = vadd.f32 %v1502, 2.0
      %v1567 = vadd.f32 %v1503, 2.0
      %v1568 = vadd.f32 %v1504, 2.0
      %v1569 = vrcp.pop %v1505
      %v1570 = vrcp.pop %v1506
      %v1571 = vrcp.pop %v1507
      %v1572 = vrcp.pop %v1508
      %v1573 = vrcp.pop %v1509
      %v1574 = vrcp.pop %v1510
      %v1575 = vrcp.pop %v1511
      %v1576 = vrcp.pop %v1512
      %v1577 = vrcp.pop %v1513
      %v1578 = vrcp.pop %v1514
      %v1579 = vrcp.pop %v1515
      %v1580 = vrcp.pop %v1516
      %v1581 = vrcp.pop %v1517
      %v1582 = vrcp.pop %v1518
      %v1583 = vrcp.pop %v1519
      %v1584 = vrcp.pop %v1520
      %v1585 = vrcp.pop %v1521
      %v1586 = vrcp.pop %v1522
      %v1587 = vrcp.pop %v1523
      %v1588 = vrcp.pop %v1524
      %v1589 = vrcp.pop %v1525
      %v1590 = vrcp.pop %v1526
      %v1591 = vrcp.pop %v1527
      %v1592 = vrcp.pop %v1528
      %v1593 = vrcp.pop %v1529
      %v1594 = vrcp.pop %v1530
      %v1595 = vrcp.pop %v1531
      %v1596 = vrcp.pop %v1532
      %v1597 = vrcp.pop %v1533
      %v1598 = vrcp.pop %v1534
      %v1599 = vrcp.pop %v1535
      %v1600 = vrcp.pop %v1536
      %v1601 = vrcp.pop %v1537
      %v1602 = vrcp.pop %v1538
      %v1603 = vrcp.pop %v1539
      %v1604 = vrcp.pop %v1540
      %v1605 = vrcp.pop %v1541
      %v1606 = vrcp.pop %v1542
      %v1607 = vrcp.pop %v1543
      %v1608 = vrcp.pop %v1544
      %v1609 = vrcp.pop %v1545
      %v1610 = vrcp.pop %v1546
      %v1611 = vrcp.pop %v1547
      %v1612 = vrcp.pop %v1548
      %v1613 = vrcp.pop %v1549
      %v1614 = vrcp.pop %v1550
      %v1615 = vrcp.pop %v1551
      %v1616 = vrcp.pop %v1552
      %v1617 = vrcp.pop %v1553
      %v1618 = vrcp.pop %v1554
      %v1619 = vrcp.pop %v1555
      %v1620 = vrcp.pop %v1556
      %v1621 = vrcp.pop %v1557
      %v1622 = vrcp.pop %v1558
      %v1623 = vrcp.pop %v1559
      %v1624 = vrcp.pop %v1560
      %v1625 = vrcp.pop %v1561
      %v1626 = vrcp.pop %v1562
      %v1627 = vrcp.pop %v1563
      %v1628 = vrcp.pop %v1564
      %v1629 = vrcp.pop %v1565
      %v1630 = vrcp.pop %v1566
      %v1631 = vrcp.pop %v1567
      %v1632 = vrcp.pop %v1568
      %v1633 = vmul.f32 %v1441, %v1569
      %v1634 = vmul.f32 %v1442, %v1570
      %v1635 = vmul.f32 %v1443, %v1571
      %v1636 = vmul.f32 %v1444, %v1572
      %v1637 = vmul.f32 %v1445, %v1573
      %v1638 = vmul.f32 %v1446, %v1574
      %v1639 = vmul.f32 %v1447, %v1575
      %v1640 = vmul.f32 %v1448, %v1576
      %v1641 = vmul.f32 %v1449, %v1577
      %v1642 = vmul.f32 %v1450, %v1578
      %v1643 = vmul.f32 %v1451, %v1579
      %v1644 = vmul.f32 %v1452, %v1580
      %v1645 = vmul.f32 %v1453, %v1581
      %v1646 = vmul.f32 %v1454, %v1582
      %v1647 = vmul.f32 %v1455, %v1583
      %v1648 = vmul.f32 %v1456, %v1584
      %v1649 = vmul.f32 %v1457, %v1585
      %v1650 = vmul.f32 %v1458, %v1586
      %v1651 = vmul.f32 %v1459, %v1587
      %v1652 = vmul.f32 %v1460, %v1588
      %v1653 = vmul.f32 %v1461, %v1589
      %v1654 = vmul.f32 %v1462, %v1590
      %v1655 = vmul.f32 %v1463, %v1591
      %v1656 = vmul.f32 %v1464, %v1592
      %v1657 = vmul.f32 %v1465, %v1593
      %v1658 = vmul.f32 %v1466, %v1594
      %v1659 = vmul.f32 %v1467, %v1595
      %v1660 = vmul.f32 %v1468, %v1596
      %v1661 = vmul.f32 %v1469, %v1597
      %v1662 = vmul.f32 %v1470, %v1598
      %v1663 = vmul.f32 %v1471, %v1599
      %v1664 = vmul.f32 %v1472, %v1600
      %v1665 = vmul.f32 %v1473, %v1601
      %v1666 = vmul.f32 %v1474, %v1602
      %v1667 = vmul.f32 %v1475, %v1603
      %v1668 = vmul.f32 %v1476, %v1604
      %v1669 = vmul.f32 %v1477, %v1605
      %v1670 = vmul.f32 %v1478, %v1606
      %v1671 = vmul.f32 %v1479, %v1607
      %v1672 = vmul.f32 %v1480, %v1608
      %v1673 = vmul.f32 %v1481, %v1609
      %v1674 = vmul.f32 %v1482, %v1610
      %v1675 = vmul.f32 %v1483, %v1611
      %v1676 = vmul.f32 %v1484, %v1612
      %v1677 = vmul.f32 %v1485, %v1613
      %v1678 = vmul.f32 %v1486, %v1614
      %v1679 = vmul.f32 %v1487, %v1615
      %v1680 = vmul.f32 %v1488, %v1616
      %v1681 = vmul.f32 %v1489, %v1617
      %v1682 = vmul.f32 %v1490, %v1618
      %v1683 = vmul.f32 %v1491, %v1619
      %v1684 = vmul.f32 %v1492, %v1620
      %v1685 = vmul.f32 %v1493, %v1621
      %v1686 = vmul.f32 %v1494, %v1622
      %v1687 = vmul.f32 %v1495, %v1623
      %v1688 = vmul.f32 %v1496, %v1624
      %v1689 = vmul.f32 %v1497, %v1625
      %v1690 = vmul.f32 %v1498, %v1626
      %v1691 = vmul.f32 %v1499, %v1627
      %v1692 = vmul.f32 %v1500, %v1628
      %v1693 = vmul.f32 %v1501, %v1629
      %v1694 = vmul.f32 %v1502, %v1630
      %v1695 = vmul.f32 %v1503, %v1631
      %v1696 = vmul.f32 %v1504, %v1632
      %v1697 = vmul.f32 %v720, %v1633
      %v1698 = vmul.f32 %v722, %v1634
      %v1699 = vmul.f32 %v833, %v1635
      %v1700 = vmul.f32 %v835, %v1636
      %v1701 = vmul.f32 %v724, %v1637
      %v1702 = vmul.f32 %v726, %v1638
      %v1703 = vmul.f32 %v837, %v1639
      %v1704 = vmul.f32 %v839, %v1640
      %v1705 = vmul.f32 %v730, %v1641
      %v1706 = vmul.f32 %v732, %v1642
      %v1707 = vmul.f32 %v843, %v1643
      %v1708 = vmul.f32 %v845, %v1644
      %v1709 = vmul.f32 %v734, %v1645
      %v1710 = vmul.f32 %v736, %v1646
      %v1711 = vmul.f32 %v847, %v1647
      %v1712 = vmul.f32 %v849, %v1648
      %v1713 = vmul.f32 %v740, %v1649
      %v1714 = vmul.f32 %v742, %v1650
      %v1715 = vmul.f32 %v853, %v1651
      %v1716 = vmul.f32 %v855, %v1652
      %v1717 = vmul.f32 %v744, %v1653
      %v1718 = vmul.f32 %v746, %v1654
      %v1719 = vmul.f32 %v857, %v1655
      %v1720 = vmul.f32 %v859, %v1656
      %v1721 = vmul.f32 %v750, %v1657
      %v1722 = vmul.f32 %v752, %v1658
      %v1723 = vmul.f32 %v863, %v1659
      %v1724 = vmul.f32 %v865, %v1660
      %v1725 = vmul.f32 %v754, %v1661
      %v1726 = vmul.f32 %v756, %v1662
      %v1727 = vmul.f32 %v867, %v1663
      %v1728 = vmul.f32 %v869, %v1664
      %v1729 = vmul.f32 %v760, %v1665
      %v1730 = vmul.f32 %v762, %v1666
      %v1731 = vmul.f32 %v873, %v1667
      %v1732 = vmul.f32 %v875, %v1668
      %v1733 = vmul.f32 %v764, %v1669
      %v1734 = vmul.f32 %v766, %v1670
      %v1735 = vmul.f32 %v877, %v1671
      %v1736 = vmul.f32 %v879, %v1672
      %v1737 = vmul.f32 %v770, %v1673
      %v1738 = vmul.f32 %v772, %v1674
      %v1739 = vmul.f32 %v883, %v1675
      %v1740 = vmul.f32 %v885, %v1676
      %v1741 = vmul.f32 %v774, %v1677
      %v1742 = vmul.f32 %v776, %v1678
      %v1743 = vmul.f32 %v887, %v1679
      %v1744 = vmul.f32 %v889, %v1680
      %v1745 = vmul.f32 %v780, %v1681
      %v1746 = vmul.f32 %v782, %v1682
      %v1747 = vmul.f32 %v893, %v1683
      %v1748 = vmul.f32 %v895, %v1684
      %v1749 = vmul.f32 %v784, %v1685
      %v1750 = vmul.f32 %v786, %v1686
      %v1751 = vmul.f32 %v897, %v1687
      %v1752 = vmul.f32 %v899, %v1688
      %v1753 = vmul.f32 %v790, %v1689
      %v1754 = vmul.f32 %v792, %v1690
      %v1755 = vmul.f32 %v903, %v1691
      %v1756 = vmul.f32 %v905, %v1692
      %v1757 = vmul.f32 %v794, %v1693
      %v1758 = vmul.f32 %v796, %v1694
      %v1759 = vmul.f32 %v907, %v1695
      %v1760 = vmul.f32 %v909, %v1696
      %v1761 = vpack.c.bf16 %v1701, %v1697
      %v1762 = vpack.c.bf16 %v1702, %v1698
      %v1763 = vpack.c.bf16 %v1703, %v1699
      %v1764 = vpack.c.bf16 %v1704, %v1700
      %v1765 = vpack.c.bf16 %v1709, %v1705
      %v1766 = vpack.c.bf16 %v1710, %v1706
      %v1767 = vpack.c.bf16 %v1711, %v1707
      %v1768 = vpack.c.bf16 %v1712, %v1708
      %v1769 = vpack.c.bf16 %v1717, %v1713
      %v1770 = vpack.c.bf16 %v1718, %v1714
      %v1771 = vpack.c.bf16 %v1719, %v1715
      %v1772 = vpack.c.bf16 %v1720, %v1716
      %v1773 = vpack.c.bf16 %v1725, %v1721
      %v1774 = vpack.c.bf16 %v1726, %v1722
      %v1775 = vpack.c.bf16 %v1727, %v1723
      %v1776 = vpack.c.bf16 %v1728, %v1724
      %v1777 = vpack.c.bf16 %v1733, %v1729
      %v1778 = vpack.c.bf16 %v1734, %v1730
      %v1779 = vpack.c.bf16 %v1735, %v1731
      %v1780 = vpack.c.bf16 %v1736, %v1732
      %v1781 = vpack.c.bf16 %v1741, %v1737
      %v1782 = vpack.c.bf16 %v1742, %v1738
      %v1783 = vpack.c.bf16 %v1743, %v1739
      %v1784 = vpack.c.bf16 %v1744, %v1740
      %v1785 = vpack.c.bf16 %v1749, %v1745
      %v1786 = vpack.c.bf16 %v1750, %v1746
      %v1787 = vpack.c.bf16 %v1751, %v1747
      %v1788 = vpack.c.bf16 %v1752, %v1748
      %v1789 = vpack.c.bf16 %v1757, %v1753
      %v1790 = vpack.c.bf16 %v1758, %v1754
      %v1791 = vpack.c.bf16 %v1759, %v1755
      %v1792 = vpack.c.bf16 %v1760, %v1756
      %v1793 = vmin.f32 %v994, 20.0
      %v1794 = vmin.f32 %v996, 20.0
      %v1795 = vmin.f32 %v1107, 20.0
      %v1796 = vmin.f32 %v1109, 20.0
      %v1797 = vmin.f32 %v998, 20.0
      %v1798 = vmin.f32 %v1000, 20.0
      %v1799 = vmin.f32 %v1111, 20.0
      %v1800 = vmin.f32 %v1113, 20.0
      %v1801 = vmin.f32 %v1004, 20.0
      %v1802 = vmin.f32 %v1006, 20.0
      %v1803 = vmin.f32 %v1117, 20.0
      %v1804 = vmin.f32 %v1119, 20.0
      %v1805 = vmin.f32 %v1008, 20.0
      %v1806 = vmin.f32 %v1010, 20.0
      %v1807 = vmin.f32 %v1121, 20.0
      %v1808 = vmin.f32 %v1123, 20.0
      %v1809 = vmin.f32 %v1014, 20.0
      %v1810 = vmin.f32 %v1016, 20.0
      %v1811 = vmin.f32 %v1127, 20.0
      %v1812 = vmin.f32 %v1129, 20.0
      %v1813 = vmin.f32 %v1018, 20.0
      %v1814 = vmin.f32 %v1020, 20.0
      %v1815 = vmin.f32 %v1131, 20.0
      %v1816 = vmin.f32 %v1133, 20.0
      %v1817 = vmin.f32 %v1024, 20.0
      %v1818 = vmin.f32 %v1026, 20.0
      %v1819 = vmin.f32 %v1137, 20.0
      %v1820 = vmin.f32 %v1139, 20.0
      %v1821 = vmin.f32 %v1028, 20.0
      %v1822 = vmin.f32 %v1030, 20.0
      %v1823 = vmin.f32 %v1141, 20.0
      %v1824 = vmin.f32 %v1143, 20.0
      %v1825 = vmin.f32 %v1034, 20.0
      %v1826 = vmin.f32 %v1036, 20.0
      %v1827 = vmin.f32 %v1147, 20.0
      %v1828 = vmin.f32 %v1149, 20.0
      %v1829 = vmin.f32 %v1038, 20.0
      %v1830 = vmin.f32 %v1040, 20.0
      %v1831 = vmin.f32 %v1151, 20.0
      %v1832 = vmin.f32 %v1153, 20.0
      %v1833 = vmin.f32 %v1044, 20.0
      %v1834 = vmin.f32 %v1046, 20.0
      %v1835 = vmin.f32 %v1157, 20.0
      %v1836 = vmin.f32 %v1159, 20.0
      %v1837 = vmin.f32 %v1048, 20.0
      %v1838 = vmin.f32 %v1050, 20.0
      %v1839 = vmin.f32 %v1161, 20.0
      %v1840 = vmin.f32 %v1163, 20.0
      %v1841 = vmin.f32 %v1054, 20.0
      %v1842 = vmin.f32 %v1056, 20.0
      %v1843 = vmin.f32 %v1167, 20.0
      %v1844 = vmin.f32 %v1169, 20.0
      %v1845 = vmin.f32 %v1058, 20.0
      %v1846 = vmin.f32 %v1060, 20.0
      %v1847 = vmin.f32 %v1171, 20.0
      %v1848 = vmin.f32 %v1173, 20.0
      %v1849 = vmin.f32 %v1064, 20.0
      %v1850 = vmin.f32 %v1066, 20.0
      %v1851 = vmin.f32 %v1177, 20.0
      %v1852 = vmin.f32 %v1179, 20.0
      %v1853 = vmin.f32 %v1068, 20.0
      %v1854 = vmin.f32 %v1070, 20.0
      %v1855 = vmin.f32 %v1181, 20.0
      %v1856 = vmin.f32 %v1183, 20.0
      %v1857 = vmul.f32 %v1793, 1.442695
      %v1858 = vpow.pop %v1857
      %v1859 = vmul.f32 %v1794, 1.442695
      %v1860 = vpow.pop %v1859
      %v1861 = vmul.f32 %v1795, 1.442695
      %v1862 = vpow.pop %v1861
      %v1863 = vmul.f32 %v1796, 1.442695
      %v1864 = vpow.pop %v1863
      %v1865 = vmul.f32 %v1797, 1.442695
      %v1866 = vpow.pop %v1865
      %v1867 = vmul.f32 %v1798, 1.442695
      %v1868 = vpow.pop %v1867
      %v1869 = vmul.f32 %v1799, 1.442695
      %v1870 = vpow.pop %v1869
      %v1871 = vmul.f32 %v1800, 1.442695
      %v1872 = vpow.pop %v1871
      %v1873 = vmul.f32 %v1801, 1.442695
      %v1874 = vpow.pop %v1873
      %v1875 = vmul.f32 %v1802, 1.442695
      %v1876 = vpow.pop %v1875
      %v1877 = vmul.f32 %v1803, 1.442695
      %v1878 = vpow.pop %v1877
      %v1879 = vmul.f32 %v1804, 1.442695
      %v1880 = vpow.pop %v1879
      %v1881 = vmul.f32 %v1805, 1.442695
      %v1882 = vpow.pop %v1881
      %v1883 = vmul.f32 %v1806, 1.442695
      %v1884 = vpow.pop %v1883
      %v1885 = vmul.f32 %v1807, 1.442695
      %v1886 = vpow.pop %v1885
      %v1887 = vmul.f32 %v1808, 1.442695
      %v1888 = vpow.pop %v1887
      %v1889 = vmul.f32 %v1809, 1.442695
      %v1890 = vpow.pop %v1889
      %v1891 = vmul.f32 %v1810, 1.442695
      %v1892 = vpow.pop %v1891
      %v1893 = vmul.f32 %v1811, 1.442695
      %v1894 = vpow.pop %v1893
      %v1895 = vmul.f32 %v1812, 1.442695
      %v1896 = vpow.pop %v1895
      %v1897 = vmul.f32 %v1813, 1.442695
      %v1898 = vpow.pop %v1897
      %v1899 = vmul.f32 %v1814, 1.442695
      %v1900 = vpow.pop %v1899
      %v1901 = vmul.f32 %v1815, 1.442695
      %v1902 = vpow.pop %v1901
      %v1903 = vmul.f32 %v1816, 1.442695
      %v1904 = vpow.pop %v1903
      %v1905 = vmul.f32 %v1817, 1.442695
      %v1906 = vpow.pop %v1905
      %v1907 = vmul.f32 %v1818, 1.442695
      %v1908 = vpow.pop %v1907
      %v1909 = vmul.f32 %v1819, 1.442695
      %v1910 = vpow.pop %v1909
      %v1911 = vmul.f32 %v1820, 1.442695
      %v1912 = vpow.pop %v1911
      %v1913 = vmul.f32 %v1821, 1.442695
      %v1914 = vpow.pop %v1913
      %v1915 = vmul.f32 %v1822, 1.442695
      %v1916 = vpow.pop %v1915
      %v1917 = vmul.f32 %v1823, 1.442695
      %v1918 = vpow.pop %v1917
      %v1919 = vmul.f32 %v1824, 1.442695
      %v1920 = vpow.pop %v1919
      %v1921 = vmul.f32 %v1825, 1.442695
      %v1922 = vpow.pop %v1921
      %v1923 = vmul.f32 %v1826, 1.442695
      %v1924 = vpow.pop %v1923
      %v1925 = vmul.f32 %v1827, 1.442695
      %v1926 = vpow.pop %v1925
      %v1927 = vmul.f32 %v1828, 1.442695
      %v1928 = vpow.pop %v1927
      %v1929 = vmul.f32 %v1829, 1.442695
      %v1930 = vpow.pop %v1929
      %v1931 = vmul.f32 %v1830, 1.442695
      %v1932 = vpow.pop %v1931
      %v1933 = vmul.f32 %v1831, 1.442695
      %v1934 = vpow.pop %v1933
      %v1935 = vmul.f32 %v1832, 1.442695
      %v1936 = vpow.pop %v1935
      %v1937 = vmul.f32 %v1833, 1.442695
      %v1938 = vpow.pop %v1937
      %v1939 = vmul.f32 %v1834, 1.442695
      %v1940 = vpow.pop %v1939
      %v1941 = vmul.f32 %v1835, 1.442695
      %v1942 = vpow.pop %v1941
      %v1943 = vmul.f32 %v1836, 1.442695
      %v1944 = vpow.pop %v1943
      %v1945 = vmul.f32 %v1837, 1.442695
      %v1946 = vpow.pop %v1945
      %v1947 = vmul.f32 %v1838, 1.442695
      %v1948 = vpow.pop %v1947
      %v1949 = vmul.f32 %v1839, 1.442695
      %v1950 = vpow.pop %v1949
      %v1951 = vmul.f32 %v1840, 1.442695
      %v1952 = vpow.pop %v1951
      %v1953 = vmul.f32 %v1841, 1.442695
      %v1954 = vpow.pop %v1953
      %v1955 = vmul.f32 %v1842, 1.442695
      %v1956 = vpow.pop %v1955
      %v1957 = vmul.f32 %v1843, 1.442695
      %v1958 = vpow.pop %v1957
      %v1959 = vmul.f32 %v1844, 1.442695
      %v1960 = vpow.pop %v1959
      %v1961 = vmul.f32 %v1845, 1.442695
      %v1962 = vpow.pop %v1961
      %v1963 = vmul.f32 %v1846, 1.442695
      %v1964 = vpow.pop %v1963
      %v1965 = vmul.f32 %v1847, 1.442695
      %v1966 = vpow.pop %v1965
      %v1967 = vmul.f32 %v1848, 1.442695
      %v1968 = vpow.pop %v1967
      %v1969 = vmul.f32 %v1849, 1.442695
      %v1970 = vpow.pop %v1969
      %v1971 = vmul.f32 %v1850, 1.442695
      %v1972 = vpow.pop %v1971
      %v1973 = vmul.f32 %v1851, 1.442695
      %v1974 = vpow.pop %v1973
      %v1975 = vmul.f32 %v1852, 1.442695
      %v1976 = vpow.pop %v1975
      %v1977 = vmul.f32 %v1853, 1.442695
      %v1978 = vpow.pop %v1977
      %v1979 = vmul.f32 %v1854, 1.442695
      %v1980 = vpow.pop %v1979
      %v1981 = vmul.f32 %v1855, 1.442695
      %v1982 = vpow.pop %v1981
      %v1983 = vmul.f32 %v1856, 1.442695
      %v1984 = vpow.pop %v1983
      %v1985 = vadd.f32 %v1858, 2.0
      %v1986 = vadd.f32 %v1860, 2.0
      %v1987 = vadd.f32 %v1862, 2.0
      %v1988 = vadd.f32 %v1864, 2.0
      %v1989 = vadd.f32 %v1866, 2.0
      %v1990 = vadd.f32 %v1868, 2.0
      %v1991 = vadd.f32 %v1870, 2.0
      %v1992 = vadd.f32 %v1872, 2.0
      %v1993 = vadd.f32 %v1874, 2.0
      %v1994 = vadd.f32 %v1876, 2.0
      %v1995 = vadd.f32 %v1878, 2.0
      %v1996 = vadd.f32 %v1880, 2.0
      %v1997 = vadd.f32 %v1882, 2.0
      %v1998 = vadd.f32 %v1884, 2.0
      %v1999 = vadd.f32 %v1886, 2.0
      %v2000 = vadd.f32 %v1888, 2.0
      %v2001 = vadd.f32 %v1890, 2.0
      %v2002 = vadd.f32 %v1892, 2.0
      %v2003 = vadd.f32 %v1894, 2.0
      %v2004 = vadd.f32 %v1896, 2.0
      %v2005 = vadd.f32 %v1898, 2.0
      %v2006 = vadd.f32 %v1900, 2.0
      %v2007 = vadd.f32 %v1902, 2.0
      %v2008 = vadd.f32 %v1904, 2.0
      %v2009 = vadd.f32 %v1906, 2.0
      %v2010 = vadd.f32 %v1908, 2.0
      %v2011 = vadd.f32 %v1910, 2.0
      %v2012 = vadd.f32 %v1912, 2.0
      %v2013 = vadd.f32 %v1914, 2.0
      %v2014 = vadd.f32 %v1916, 2.0
      %v2015 = vadd.f32 %v1918, 2.0
      %v2016 = vadd.f32 %v1920, 2.0
      %v2017 = vadd.f32 %v1922, 2.0
      %v2018 = vadd.f32 %v1924, 2.0
      %v2019 = vadd.f32 %v1926, 2.0
      %v2020 = vadd.f32 %v1928, 2.0
      %v2021 = vadd.f32 %v1930, 2.0
      %v2022 = vadd.f32 %v1932, 2.0
      %v2023 = vadd.f32 %v1934, 2.0
      %v2024 = vadd.f32 %v1936, 2.0
      %v2025 = vadd.f32 %v1938, 2.0
      %v2026 = vadd.f32 %v1940, 2.0
      %v2027 = vadd.f32 %v1942, 2.0
      %v2028 = vadd.f32 %v1944, 2.0
      %v2029 = vadd.f32 %v1946, 2.0
      %v2030 = vadd.f32 %v1948, 2.0
      %v2031 = vadd.f32 %v1950, 2.0
      %v2032 = vadd.f32 %v1952, 2.0
      %v2033 = vadd.f32 %v1954, 2.0
      %v2034 = vadd.f32 %v1956, 2.0
      %v2035 = vadd.f32 %v1958, 2.0
      %v2036 = vadd.f32 %v1960, 2.0
      %v2037 = vadd.f32 %v1962, 2.0
      %v2038 = vadd.f32 %v1964, 2.0
      %v2039 = vadd.f32 %v1966, 2.0
      %v2040 = vadd.f32 %v1968, 2.0
      %v2041 = vadd.f32 %v1970, 2.0
      %v2042 = vadd.f32 %v1972, 2.0
      %v2043 = vadd.f32 %v1974, 2.0
      %v2044 = vadd.f32 %v1976, 2.0
      %v2045 = vadd.f32 %v1978, 2.0
      %v2046 = vadd.f32 %v1980, 2.0
      %v2047 = vadd.f32 %v1982, 2.0
      %v2048 = vadd.f32 %v1984, 2.0
      %v2049 = vmul.f32 %v1858, %v1985
      %v2050 = vmul.f32 %v1860, %v1986
      %v2051 = vmul.f32 %v1862, %v1987
      %v2052 = vmul.f32 %v1864, %v1988
      %v2053 = vmul.f32 %v1866, %v1989
      %v2054 = vmul.f32 %v1868, %v1990
      %v2055 = vmul.f32 %v1870, %v1991
      %v2056 = vmul.f32 %v1872, %v1992
      %v2057 = vmul.f32 %v1874, %v1993
      %v2058 = vmul.f32 %v1876, %v1994
      %v2059 = vmul.f32 %v1878, %v1995
      %v2060 = vmul.f32 %v1880, %v1996
      %v2061 = vmul.f32 %v1882, %v1997
      %v2062 = vmul.f32 %v1884, %v1998
      %v2063 = vmul.f32 %v1886, %v1999
      %v2064 = vmul.f32 %v1888, %v2000
      %v2065 = vmul.f32 %v1890, %v2001
      %v2066 = vmul.f32 %v1892, %v2002
      %v2067 = vmul.f32 %v1894, %v2003
      %v2068 = vmul.f32 %v1896, %v2004
      %v2069 = vmul.f32 %v1898, %v2005
      %v2070 = vmul.f32 %v1900, %v2006
      %v2071 = vmul.f32 %v1902, %v2007
      %v2072 = vmul.f32 %v1904, %v2008
      %v2073 = vmul.f32 %v1906, %v2009
      %v2074 = vmul.f32 %v1908, %v2010
      %v2075 = vmul.f32 %v1910, %v2011
      %v2076 = vmul.f32 %v1912, %v2012
      %v2077 = vmul.f32 %v1914, %v2013
      %v2078 = vmul.f32 %v1916, %v2014
      %v2079 = vmul.f32 %v1918, %v2015
      %v2080 = vmul.f32 %v1920, %v2016
      %v2081 = vmul.f32 %v1922, %v2017
      %v2082 = vmul.f32 %v1924, %v2018
      %v2083 = vmul.f32 %v1926, %v2019
      %v2084 = vmul.f32 %v1928, %v2020
      %v2085 = vmul.f32 %v1930, %v2021
      %v2086 = vmul.f32 %v1932, %v2022
      %v2087 = vmul.f32 %v1934, %v2023
      %v2088 = vmul.f32 %v1936, %v2024
      %v2089 = vmul.f32 %v1938, %v2025
      %v2090 = vmul.f32 %v1940, %v2026
      %v2091 = vmul.f32 %v1942, %v2027
      %v2092 = vmul.f32 %v1944, %v2028
      %v2093 = vmul.f32 %v1946, %v2029
      %v2094 = vmul.f32 %v1948, %v2030
      %v2095 = vmul.f32 %v1950, %v2031
      %v2096 = vmul.f32 %v1952, %v2032
      %v2097 = vmul.f32 %v1954, %v2033
      %v2098 = vmul.f32 %v1956, %v2034
      %v2099 = vmul.f32 %v1958, %v2035
      %v2100 = vmul.f32 %v1960, %v2036
      %v2101 = vmul.f32 %v1962, %v2037
      %v2102 = vmul.f32 %v1964, %v2038
      %v2103 = vmul.f32 %v1966, %v2039
      %v2104 = vmul.f32 %v1968, %v2040
      %v2105 = vmul.f32 %v1970, %v2041
      %v2106 = vmul.f32 %v1972, %v2042
      %v2107 = vmul.f32 %v1974, %v2043
      %v2108 = vmul.f32 %v1976, %v2044
      %v2109 = vmul.f32 %v1978, %v2045
      %v2110 = vmul.f32 %v1980, %v2046
      %v2111 = vmul.f32 %v1982, %v2047
      %v2112 = vmul.f32 %v1984, %v2048
      %v2113 = vadd.f32 %v2049, 2.0
      %v2114 = vadd.f32 %v2050, 2.0
      %v2115 = vadd.f32 %v2051, 2.0
      %v2116 = vadd.f32 %v2052, 2.0
      %v2117 = vadd.f32 %v2053, 2.0
      %v2118 = vadd.f32 %v2054, 2.0
      %v2119 = vadd.f32 %v2055, 2.0
      %v2120 = vadd.f32 %v2056, 2.0
      %v2121 = vadd.f32 %v2057, 2.0
      %v2122 = vadd.f32 %v2058, 2.0
      %v2123 = vadd.f32 %v2059, 2.0
      %v2124 = vadd.f32 %v2060, 2.0
      %v2125 = vadd.f32 %v2061, 2.0
      %v2126 = vadd.f32 %v2062, 2.0
      %v2127 = vadd.f32 %v2063, 2.0
      %v2128 = vadd.f32 %v2064, 2.0
      %v2129 = vadd.f32 %v2065, 2.0
      %v2130 = vadd.f32 %v2066, 2.0
      %v2131 = vadd.f32 %v2067, 2.0
      %v2132 = vadd.f32 %v2068, 2.0
      %v2133 = vadd.f32 %v2069, 2.0
      %v2134 = vadd.f32 %v2070, 2.0
      %v2135 = vadd.f32 %v2071, 2.0
      %v2136 = vadd.f32 %v2072, 2.0
      %v2137 = vadd.f32 %v2073, 2.0
      %v2138 = vadd.f32 %v2074, 2.0
      %v2139 = vadd.f32 %v2075, 2.0
      %v2140 = vadd.f32 %v2076, 2.0
      %v2141 = vadd.f32 %v2077, 2.0
      %v2142 = vadd.f32 %v2078, 2.0
      %v2143 = vadd.f32 %v2079, 2.0
      %v2144 = vadd.f32 %v2080, 2.0
      %v2145 = vadd.f32 %v2081, 2.0
      %v2146 = vadd.f32 %v2082, 2.0
      %v2147 = vadd.f32 %v2083, 2.0
      %v2148 = vadd.f32 %v2084, 2.0
      %v2149 = vadd.f32 %v2085, 2.0
      %v2150 = vadd.f32 %v2086, 2.0
      %v2151 = vadd.f32 %v2087, 2.0
      %v2152 = vadd.f32 %v2088, 2.0
      %v2153 = vadd.f32 %v2089, 2.0
      %v2154 = vadd.f32 %v2090, 2.0
      %v2155 = vadd.f32 %v2091, 2.0
      %v2156 = vadd.f32 %v2092, 2.0
      %v2157 = vadd.f32 %v2093, 2.0
      %v2158 = vadd.f32 %v2094, 2.0
      %v2159 = vadd.f32 %v2095, 2.0
      %v2160 = vadd.f32 %v2096, 2.0
      %v2161 = vadd.f32 %v2097, 2.0
      %v2162 = vadd.f32 %v2098, 2.0
      %v2163 = vadd.f32 %v2099, 2.0
      %v2164 = vadd.f32 %v2100, 2.0
      %v2165 = vadd.f32 %v2101, 2.0
      %v2166 = vadd.f32 %v2102, 2.0
      %v2167 = vadd.f32 %v2103, 2.0
      %v2168 = vadd.f32 %v2104, 2.0
      %v2169 = vadd.f32 %v2105, 2.0
      %v2170 = vadd.f32 %v2106, 2.0
      %v2171 = vadd.f32 %v2107, 2.0
      %v2172 = vadd.f32 %v2108, 2.0
      %v2173 = vadd.f32 %v2109, 2.0
      %v2174 = vadd.f32 %v2110, 2.0
      %v2175 = vadd.f32 %v2111, 2.0
      %v2176 = vadd.f32 %v2112, 2.0
      %v2177 = vrcp.pop %v2113
      %v2178 = vrcp.pop %v2114
      %v2179 = vrcp.pop %v2115
      %v2180 = vrcp.pop %v2116
      %v2181 = vrcp.pop %v2117
      %v2182 = vrcp.pop %v2118
      %v2183 = vrcp.pop %v2119
      %v2184 = vrcp.pop %v2120
      %v2185 = vrcp.pop %v2121
      %v2186 = vrcp.pop %v2122
      %v2187 = vrcp.pop %v2123
      %v2188 = vrcp.pop %v2124
      %v2189 = vrcp.pop %v2125
      %v2190 = vrcp.pop %v2126
      %v2191 = vrcp.pop %v2127
      %v2192 = vrcp.pop %v2128
      %v2193 = vrcp.pop %v2129
      %v2194 = vrcp.pop %v2130
      %v2195 = vrcp.pop %v2131
      %v2196 = vrcp.pop %v2132
      %v2197 = vrcp.pop %v2133
      %v2198 = vrcp.pop %v2134
      %v2199 = vrcp.pop %v2135
      %v2200 = vrcp.pop %v2136
      %v2201 = vrcp.pop %v2137
      %v2202 = vrcp.pop %v2138
      %v2203 = vrcp.pop %v2139
      %v2204 = vrcp.pop %v2140
      %v2205 = vrcp.pop %v2141
      %v2206 = vrcp.pop %v2142
      %v2207 = vrcp.pop %v2143
      %v2208 = vrcp.pop %v2144
      %v2209 = vrcp.pop %v2145
      %v2210 = vrcp.pop %v2146
      %v2211 = vrcp.pop %v2147
      %v2212 = vrcp.pop %v2148
      %v2213 = vrcp.pop %v2149
      %v2214 = vrcp.pop %v2150
      %v2215 = vrcp.pop %v2151
      %v2216 = vrcp.pop %v2152
      %v2217 = vrcp.pop %v2153
      %v2218 = vrcp.pop %v2154
      %v2219 = vrcp.pop %v2155
      %v2220 = vrcp.pop %v2156
      %v2221 = vrcp.pop %v2157
      %v2222 = vrcp.pop %v2158
      %v2223 = vrcp.pop %v2159
      %v2224 = vrcp.pop %v2160
      %v2225 = vrcp.pop %v2161
      %v2226 = vrcp.pop %v2162
      %v2227 = vrcp.pop %v2163
      %v2228 = vrcp.pop %v2164
      %v2229 = vrcp.pop %v2165
      %v2230 = vrcp.pop %v2166
      %v2231 = vrcp.pop %v2167
      %v2232 = vrcp.pop %v2168
      %v2233 = vrcp.pop %v2169
      %v2234 = vrcp.pop %v2170
      %v2235 = vrcp.pop %v2171
      %v2236 = vrcp.pop %v2172
      %v2237 = vrcp.pop %v2173
      %v2238 = vrcp.pop %v2174
      %v2239 = vrcp.pop %v2175
      %v2240 = vrcp.pop %v2176
      %v2241 = vmul.f32 %v2049, %v2177
      %v2242 = vmul.f32 %v2050, %v2178
      %v2243 = vmul.f32 %v2051, %v2179
      %v2244 = vmul.f32 %v2052, %v2180
      %v2245 = vmul.f32 %v2053, %v2181
      %v2246 = vmul.f32 %v2054, %v2182
      %v2247 = vmul.f32 %v2055, %v2183
      %v2248 = vmul.f32 %v2056, %v2184
      %v2249 = vmul.f32 %v2057, %v2185
      %v2250 = vmul.f32 %v2058, %v2186
      %v2251 = vmul.f32 %v2059, %v2187
      %v2252 = vmul.f32 %v2060, %v2188
      %v2253 = vmul.f32 %v2061, %v2189
      %v2254 = vmul.f32 %v2062, %v2190
      %v2255 = vmul.f32 %v2063, %v2191
      %v2256 = vmul.f32 %v2064, %v2192
      %v2257 = vmul.f32 %v2065, %v2193
      %v2258 = vmul.f32 %v2066, %v2194
      %v2259 = vmul.f32 %v2067, %v2195
      %v2260 = vmul.f32 %v2068, %v2196
      %v2261 = vmul.f32 %v2069, %v2197
      %v2262 = vmul.f32 %v2070, %v2198
      %v2263 = vmul.f32 %v2071, %v2199
      %v2264 = vmul.f32 %v2072, %v2200
      %v2265 = vmul.f32 %v2073, %v2201
      %v2266 = vmul.f32 %v2074, %v2202
      %v2267 = vmul.f32 %v2075, %v2203
      %v2268 = vmul.f32 %v2076, %v2204
      %v2269 = vmul.f32 %v2077, %v2205
      %v2270 = vmul.f32 %v2078, %v2206
      %v2271 = vmul.f32 %v2079, %v2207
      %v2272 = vmul.f32 %v2080, %v2208
      %v2273 = vmul.f32 %v2081, %v2209
      %v2274 = vmul.f32 %v2082, %v2210
      %v2275 = vmul.f32 %v2083, %v2211
      %v2276 = vmul.f32 %v2084, %v2212
      %v2277 = vmul.f32 %v2085, %v2213
      %v2278 = vmul.f32 %v2086, %v2214
      %v2279 = vmul.f32 %v2087, %v2215
      %v2280 = vmul.f32 %v2088, %v2216
      %v2281 = vmul.f32 %v2089, %v2217
      %v2282 = vmul.f32 %v2090, %v2218
      %v2283 = vmul.f32 %v2091, %v2219
      %v2284 = vmul.f32 %v2092, %v2220
      %v2285 = vmul.f32 %v2093, %v2221
      %v2286 = vmul.f32 %v2094, %v2222
      %v2287 = vmul.f32 %v2095, %v2223
      %v2288 = vmul.f32 %v2096, %v2224
      %v2289 = vmul.f32 %v2097, %v2225
      %v2290 = vmul.f32 %v2098, %v2226
      %v2291 = vmul.f32 %v2099, %v2227
      %v2292 = vmul.f32 %v2100, %v2228
      %v2293 = vmul.f32 %v2101, %v2229
      %v2294 = vmul.f32 %v2102, %v2230
      %v2295 = vmul.f32 %v2103, %v2231
      %v2296 = vmul.f32 %v2104, %v2232
      %v2297 = vmul.f32 %v2105, %v2233
      %v2298 = vmul.f32 %v2106, %v2234
      %v2299 = vmul.f32 %v2107, %v2235
      %v2300 = vmul.f32 %v2108, %v2236
      %v2301 = vmul.f32 %v2109, %v2237
      %v2302 = vmul.f32 %v2110, %v2238
      %v2303 = vmul.f32 %v2111, %v2239
      %v2304 = vmul.f32 %v2112, %v2240
      %v2305 = vmul.f32 %v994, %v2241
      %v2306 = vmul.f32 %v996, %v2242
      %v2307 = vmul.f32 %v1107, %v2243
      %v2308 = vmul.f32 %v1109, %v2244
      %v2309 = vmul.f32 %v998, %v2245
      %v2310 = vmul.f32 %v1000, %v2246
      %v2311 = vmul.f32 %v1111, %v2247
      %v2312 = vmul.f32 %v1113, %v2248
      %v2313 = vmul.f32 %v1004, %v2249
      %v2314 = vmul.f32 %v1006, %v2250
      %v2315 = vmul.f32 %v1117, %v2251
      %v2316 = vmul.f32 %v1119, %v2252
      %v2317 = vmul.f32 %v1008, %v2253
      %v2318 = vmul.f32 %v1010, %v2254
      %v2319 = vmul.f32 %v1121, %v2255
      %v2320 = vmul.f32 %v1123, %v2256
      %v2321 = vmul.f32 %v1014, %v2257
      %v2322 = vmul.f32 %v1016, %v2258
      %v2323 = vmul.f32 %v1127, %v2259
      %v2324 = vmul.f32 %v1129, %v2260
      %v2325 = vmul.f32 %v1018, %v2261
      %v2326 = vmul.f32 %v1020, %v2262
      %v2327 = vmul.f32 %v1131, %v2263
      %v2328 = vmul.f32 %v1133, %v2264
      %v2329 = vmul.f32 %v1024, %v2265
      %v2330 = vmul.f32 %v1026, %v2266
      %v2331 = vmul.f32 %v1137, %v2267
      %v2332 = vmul.f32 %v1139, %v2268
      %v2333 = vmul.f32 %v1028, %v2269
      %v2334 = vmul.f32 %v1030, %v2270
      %v2335 = vmul.f32 %v1141, %v2271
      %v2336 = vmul.f32 %v1143, %v2272
      %v2337 = vmul.f32 %v1034, %v2273
      %v2338 = vmul.f32 %v1036, %v2274
      %v2339 = vmul.f32 %v1147, %v2275
      %v2340 = vmul.f32 %v1149, %v2276
      %v2341 = vmul.f32 %v1038, %v2277
      %v2342 = vmul.f32 %v1040, %v2278
      %v2343 = vmul.f32 %v1151, %v2279
      %v2344 = vmul.f32 %v1153, %v2280
      %v2345 = vmul.f32 %v1044, %v2281
      %v2346 = vmul.f32 %v1046, %v2282
      %v2347 = vmul.f32 %v1157, %v2283
      %v2348 = vmul.f32 %v1159, %v2284
      %v2349 = vmul.f32 %v1048, %v2285
      %v2350 = vmul.f32 %v1050, %v2286
      %v2351 = vmul.f32 %v1161, %v2287
      %v2352 = vmul.f32 %v1163, %v2288
      %v2353 = vmul.f32 %v1054, %v2289
      %v2354 = vmul.f32 %v1056, %v2290
      %v2355 = vmul.f32 %v1167, %v2291
      %v2356 = vmul.f32 %v1169, %v2292
      %v2357 = vmul.f32 %v1058, %v2293
      %v2358 = vmul.f32 %v1060, %v2294
      %v2359 = vmul.f32 %v1171, %v2295
      %v2360 = vmul.f32 %v1173, %v2296
      %v2361 = vmul.f32 %v1064, %v2297
      %v2362 = vmul.f32 %v1066, %v2298
      %v2363 = vmul.f32 %v1177, %v2299
      %v2364 = vmul.f32 %v1179, %v2300
      %v2365 = vmul.f32 %v1068, %v2301
      %v2366 = vmul.f32 %v1070, %v2302
      %v2367 = vmul.f32 %v1181, %v2303
      %v2368 = vmul.f32 %v1183, %v2304
      %v2369 = vpack.c.bf16 %v2309, %v2305
      %v2370 = vpack.c.bf16 %v2310, %v2306
      %v2371 = vpack.c.bf16 %v2311, %v2307
      %v2372 = vpack.c.bf16 %v2312, %v2308
      %v2373 = vpack.c.bf16 %v2317, %v2313
      %v2374 = vpack.c.bf16 %v2318, %v2314
      %v2375 = vpack.c.bf16 %v2319, %v2315
      %v2376 = vpack.c.bf16 %v2320, %v2316
      %v2377 = vpack.c.bf16 %v2325, %v2321
      %v2378 = vpack.c.bf16 %v2326, %v2322
      %v2379 = vpack.c.bf16 %v2327, %v2323
      %v2380 = vpack.c.bf16 %v2328, %v2324
      %v2381 = vpack.c.bf16 %v2333, %v2329
      %v2382 = vpack.c.bf16 %v2334, %v2330
      %v2383 = vpack.c.bf16 %v2335, %v2331
      %v2384 = vpack.c.bf16 %v2336, %v2332
      %v2385 = vpack.c.bf16 %v2341, %v2337
      %v2386 = vpack.c.bf16 %v2342, %v2338
      %v2387 = vpack.c.bf16 %v2343, %v2339
      %v2388 = vpack.c.bf16 %v2344, %v2340
      %v2389 = vpack.c.bf16 %v2349, %v2345
      %v2390 = vpack.c.bf16 %v2350, %v2346
      %v2391 = vpack.c.bf16 %v2351, %v2347
      %v2392 = vpack.c.bf16 %v2352, %v2348
      %v2393 = vpack.c.bf16 %v2357, %v2353
      %v2394 = vpack.c.bf16 %v2358, %v2354
      %v2395 = vpack.c.bf16 %v2359, %v2355
      %v2396 = vpack.c.bf16 %v2360, %v2356
      %v2397 = vpack.c.bf16 %v2365, %v2361
      %v2398 = vpack.c.bf16 %v2366, %v2362
      %v2399 = vpack.c.bf16 %v2367, %v2363
      %v2400 = vpack.c.bf16 %v2368, %v2364
      %v2401 = vld [vmem:[%s3] sm:$0xff]
      %v2402 = vld [vmem:[%s3 + $0x8] sm:$0xff]
      %v2403 = vld [vmem:[%s3 + $0x10] sm:$0xff]
      %v2404 = vld [vmem:[%s3 + $0x18] sm:$0xff]
      %v2405 = vld [vmem:[%s3 + $0x20] sm:$0xff]
      %v2406 = vld [vmem:[%s3 + $0x28] sm:$0xff]
      %v2407 = vld [vmem:[%s3 + $0x30] sm:$0xff]
      %v2408 = vld [vmem:[%s3 + $0x38] sm:$0xff]
      %v2409 = vld [vmem:[%s3 + $0x40] sm:$0xff]
      %v2410 = vld [vmem:[%s3 + $0x48] sm:$0xff]
      %v2411 = vld [vmem:[%s3 + $0x50] sm:$0xff]
      %v2412 = vld [vmem:[%s3 + $0x58] sm:$0xff]
      %v2413 = vld [vmem:[%s3 + $0x60] sm:$0xff]
      %v2414 = vld [vmem:[%s3 + $0x68] sm:$0xff]
      %v2415 = vld [vmem:[%s3 + $0x70] sm:$0xff]
      %v2416 = vld [vmem:[%s3 + $0x78] sm:$0xff]
      %v2417 = vld [vmem:[%s3 + $0x80] sm:$0xff]
      %v2418 = vld [vmem:[%s3 + $0x88] sm:$0xff]
      %v2419 = vld [vmem:[%s3 + $0x90] sm:$0xff]
      %v2420 = vld [vmem:[%s3 + $0x98] sm:$0xff]
      %v2421 = vld [vmem:[%s3 + $0xa0] sm:$0xff]
      %v2422 = vld [vmem:[%s3 + $0xa8] sm:$0xff]
      %v2423 = vld [vmem:[%s3 + $0xb0] sm:$0xff]
      %v2424 = vld [vmem:[%s3 + $0xb8] sm:$0xff]
      %v2425 = vld [vmem:[%s3 + $0xc0] sm:$0xff]
      %v2426 = vld [vmem:[%s3 + $0xc8] sm:$0xff]
      %v2427 = vld [vmem:[%s3 + $0xd0] sm:$0xff]
      %v2428 = vld [vmem:[%s3 + $0xd8] sm:$0xff]
      %v2429 = vld [vmem:[%s3 + $0xe0] sm:$0xff]
      %v2430 = vld [vmem:[%s3 + $0xe8] sm:$0xff]
      %v2431 = vld [vmem:[%s3 + $0xf0] sm:$0xff]
      %v2432 = vld [vmem:[%s3 + $0xf8] sm:$0xff]
      %v2433 = vld [vmem:[%s3 + $0x100] sm:$0xff]
      %v2434 = vld [vmem:[%s3 + $0x108] sm:$0xff]
      %v2435 = vld [vmem:[%s3 + $0x110] sm:$0xff]
      %v2436 = vld [vmem:[%s3 + $0x118] sm:$0xff]
      %v2437 = vld [vmem:[%s3 + $0x120] sm:$0xff]
      %v2438 = vld [vmem:[%s3 + $0x128] sm:$0xff]
      %v2439 = vld [vmem:[%s3 + $0x130] sm:$0xff]
      %v2440 = vld [vmem:[%s3 + $0x138] sm:$0xff]
      %v2441 = vld [vmem:[%s3 + $0x140] sm:$0xff]
      %v2442 = vld [vmem:[%s3 + $0x148] sm:$0xff]
      %v2443 = vld [vmem:[%s3 + $0x150] sm:$0xff]
      %v2444 = vld [vmem:[%s3 + $0x158] sm:$0xff]
      %v2445 = vld [vmem:[%s3 + $0x160] sm:$0xff]
      %v2446 = vld [vmem:[%s3 + $0x168] sm:$0xff]
      %v2447 = vld [vmem:[%s3 + $0x170] sm:$0xff]
      %v2448 = vld [vmem:[%s3 + $0x178] sm:$0xff]
      %v2449 = vld [vmem:[%s3 + $0x180] sm:$0xff]
      %v2450 = vld [vmem:[%s3 + $0x188] sm:$0xff]
      %v2451 = vld [vmem:[%s3 + $0x190] sm:$0xff]
      %v2452 = vld [vmem:[%s3 + $0x198] sm:$0xff]
      %v2453 = vld [vmem:[%s3 + $0x1a0] sm:$0xff]
      %v2454 = vld [vmem:[%s3 + $0x1a8] sm:$0xff]
      %v2455 = vld [vmem:[%s3 + $0x1b0] sm:$0xff]
      %v2456 = vld [vmem:[%s3 + $0x1b8] sm:$0xff]
      %v2457 = vld [vmem:[%s3 + $0x1c0] sm:$0xff]
      %v2458 = vld [vmem:[%s3 + $0x1c8] sm:$0xff]
      %v2459 = vld [vmem:[%s3 + $0x1d0] sm:$0xff]
      %v2460 = vld [vmem:[%s3 + $0x1d8] sm:$0xff]
      %v2461 = vld [vmem:[%s3 + $0x1e0] sm:$0xff]
      %v2462 = vld [vmem:[%s3 + $0x1e8] sm:$0xff]
      %v2463 = vld [vmem:[%s3 + $0x1f0] sm:$0xff]
      %v2464 = vld [vmem:[%s3 + $0x1f8] sm:$0xff]
      %v2465 = vld [vmem:[%s4] sm:$0x3]
      %v2467 = vlaneseq
      %v2468 = vshrl.u32 %v2467, 7
      %v2469 = vsub.s32 0, %v2468
      %v2470 = vrot.slane %v2465, %v2469
      %v2471 = vlaneseq
      %v2472 = vshrl.u32 %v2471, 7
      %v2473 = vsub.s32 1, %v2472
      %v2474 = vrot.slane %v2465, %v2473
      %v2541 = vunpack.c.l.b16 %v2401
      %v2542 = vunpack.c.h.b16 %v2401
      %v2543 = vunpack.c.l.b16 %v2402
      %v2544 = vunpack.c.h.b16 %v2402
      %v2545 = vunpack.c.l.b16 %v2403
      %v2546 = vunpack.c.h.b16 %v2403
      %v2547 = vunpack.c.l.b16 %v2404
      %v2548 = vunpack.c.h.b16 %v2404
      %v2549 = vunpack.c.l.b16 %v2405
      %v2550 = vunpack.c.h.b16 %v2405
      %v2551 = vunpack.c.l.b16 %v2406
      %v2552 = vunpack.c.h.b16 %v2406
      %v2553 = vunpack.c.l.b16 %v2407
      %v2554 = vunpack.c.h.b16 %v2407
      %v2555 = vunpack.c.l.b16 %v2408
      %v2556 = vunpack.c.h.b16 %v2408
      %v2557 = vunpack.c.l.b16 %v2409
      %v2558 = vunpack.c.h.b16 %v2409
      %v2559 = vunpack.c.l.b16 %v2410
      %v2560 = vunpack.c.h.b16 %v2410
      %v2561 = vunpack.c.l.b16 %v2411
      %v2562 = vunpack.c.h.b16 %v2411
      %v2563 = vunpack.c.l.b16 %v2412
      %v2564 = vunpack.c.h.b16 %v2412
      %v2565 = vunpack.c.l.b16 %v2413
      %v2566 = vunpack.c.h.b16 %v2413
      %v2567 = vunpack.c.l.b16 %v2414
      %v2568 = vunpack.c.h.b16 %v2414
      %v2569 = vunpack.c.l.b16 %v2415
      %v2570 = vunpack.c.h.b16 %v2415
      %v2571 = vunpack.c.l.b16 %v2416
      %v2572 = vunpack.c.h.b16 %v2416
      %v2573 = vunpack.c.l.b16 %v2417
      %v2574 = vunpack.c.h.b16 %v2417
      %v2575 = vunpack.c.l.b16 %v2418
      %v2576 = vunpack.c.h.b16 %v2418
      %v2577 = vunpack.c.l.b16 %v2419
      %v2578 = vunpack.c.h.b16 %v2419
      %v2579 = vunpack.c.l.b16 %v2420
      %v2580 = vunpack.c.h.b16 %v2420
      %v2581 = vunpack.c.l.b16 %v2421
      %v2582 = vunpack.c.h.b16 %v2421
      %v2583 = vunpack.c.l.b16 %v2422
      %v2584 = vunpack.c.h.b16 %v2422
      %v2585 = vunpack.c.l.b16 %v2423
      %v2586 = vunpack.c.h.b16 %v2423
      %v2587 = vunpack.c.l.b16 %v2424
      %v2588 = vunpack.c.h.b16 %v2424
      %v2589 = vunpack.c.l.b16 %v2425
      %v2590 = vunpack.c.h.b16 %v2425
      %v2591 = vunpack.c.l.b16 %v2426
      %v2592 = vunpack.c.h.b16 %v2426
      %v2593 = vunpack.c.l.b16 %v2427
      %v2594 = vunpack.c.h.b16 %v2427
      %v2595 = vunpack.c.l.b16 %v2428
      %v2596 = vunpack.c.h.b16 %v2428
      %v2597 = vunpack.c.l.b16 %v2429
      %v2598 = vunpack.c.h.b16 %v2429
      %v2599 = vunpack.c.l.b16 %v2430
      %v2600 = vunpack.c.h.b16 %v2430
      %v2601 = vunpack.c.l.b16 %v2431
      %v2602 = vunpack.c.h.b16 %v2431
      %v2603 = vunpack.c.l.b16 %v2432
      %v2604 = vunpack.c.h.b16 %v2432
      %v2605 = vunpack.c.l.b16 %v2433
      %v2606 = vunpack.c.h.b16 %v2433
      %v2607 = vunpack.c.l.b16 %v2434
      %v2608 = vunpack.c.h.b16 %v2434
      %v2609 = vunpack.c.l.b16 %v2435
      %v2610 = vunpack.c.h.b16 %v2435
      %v2611 = vunpack.c.l.b16 %v2436
      %v2612 = vunpack.c.h.b16 %v2436
      %v2613 = vunpack.c.l.b16 %v2437
      %v2614 = vunpack.c.h.b16 %v2437
      %v2615 = vunpack.c.l.b16 %v2438
      %v2616 = vunpack.c.h.b16 %v2438
      %v2617 = vunpack.c.l.b16 %v2439
      %v2618 = vunpack.c.h.b16 %v2439
      %v2619 = vunpack.c.l.b16 %v2440
      %v2620 = vunpack.c.h.b16 %v2440
      %v2621 = vunpack.c.l.b16 %v2441
      %v2622 = vunpack.c.h.b16 %v2441
      %v2623 = vunpack.c.l.b16 %v2442
      %v2624 = vunpack.c.h.b16 %v2442
      %v2625 = vunpack.c.l.b16 %v2443
      %v2626 = vunpack.c.h.b16 %v2443
      %v2627 = vunpack.c.l.b16 %v2444
      %v2628 = vunpack.c.h.b16 %v2444
      %v2629 = vunpack.c.l.b16 %v2445
      %v2630 = vunpack.c.h.b16 %v2445
      %v2631 = vunpack.c.l.b16 %v2446
      %v2632 = vunpack.c.h.b16 %v2446
      %v2633 = vunpack.c.l.b16 %v2447
      %v2634 = vunpack.c.h.b16 %v2447
      %v2635 = vunpack.c.l.b16 %v2448
      %v2636 = vunpack.c.h.b16 %v2448
      %v2637 = vunpack.c.l.b16 %v2449
      %v2638 = vunpack.c.h.b16 %v2449
      %v2639 = vunpack.c.l.b16 %v2450
      %v2640 = vunpack.c.h.b16 %v2450
      %v2641 = vunpack.c.l.b16 %v2451
      %v2642 = vunpack.c.h.b16 %v2451
      %v2643 = vunpack.c.l.b16 %v2452
      %v2644 = vunpack.c.h.b16 %v2452
      %v2645 = vunpack.c.l.b16 %v2453
      %v2646 = vunpack.c.h.b16 %v2453
      %v2647 = vunpack.c.l.b16 %v2454
      %v2648 = vunpack.c.h.b16 %v2454
      %v2649 = vunpack.c.l.b16 %v2455
      %v2650 = vunpack.c.h.b16 %v2455
      %v2651 = vunpack.c.l.b16 %v2456
      %v2652 = vunpack.c.h.b16 %v2456
      %v2653 = vunpack.c.l.b16 %v2457
      %v2654 = vunpack.c.h.b16 %v2457
      %v2655 = vunpack.c.l.b16 %v2458
      %v2656 = vunpack.c.h.b16 %v2458
      %v2657 = vunpack.c.l.b16 %v2459
      %v2658 = vunpack.c.h.b16 %v2459
      %v2659 = vunpack.c.l.b16 %v2460
      %v2660 = vunpack.c.h.b16 %v2460
      %v2661 = vunpack.c.l.b16 %v2461
      %v2662 = vunpack.c.h.b16 %v2461
      %v2663 = vunpack.c.l.b16 %v2462
      %v2664 = vunpack.c.h.b16 %v2462
      %v2665 = vunpack.c.l.b16 %v2463
      %v2666 = vunpack.c.h.b16 %v2463
      %v2667 = vunpack.c.l.b16 %v2464
      %v2668 = vunpack.c.h.b16 %v2464
      %v2669 = vpack.c.b16 %v2543, %v2541
      %v2670 = vpack.c.b16 %v2544, %v2542
      %v2671 = vpack.c.b16 %v2547, %v2545
      %v2672 = vpack.c.b16 %v2548, %v2546
      %v2673 = vpack.c.b16 %v2551, %v2549
      %v2674 = vpack.c.b16 %v2552, %v2550
      %v2675 = vpack.c.b16 %v2555, %v2553
      %v2676 = vpack.c.b16 %v2556, %v2554
      %v2677 = vpack.c.b16 %v2559, %v2557
      %v2678 = vpack.c.b16 %v2560, %v2558
      %v2679 = vpack.c.b16 %v2563, %v2561
      %v2680 = vpack.c.b16 %v2564, %v2562
      %v2681 = vpack.c.b16 %v2567, %v2565
      %v2682 = vpack.c.b16 %v2568, %v2566
      %v2683 = vpack.c.b16 %v2571, %v2569
      %v2684 = vpack.c.b16 %v2572, %v2570
      %v2685 = vpack.c.b16 %v2575, %v2573
      %v2686 = vpack.c.b16 %v2576, %v2574
      %v2687 = vpack.c.b16 %v2579, %v2577
      %v2688 = vpack.c.b16 %v2580, %v2578
      %v2689 = vpack.c.b16 %v2583, %v2581
      %v2690 = vpack.c.b16 %v2584, %v2582
      %v2691 = vpack.c.b16 %v2587, %v2585
      %v2692 = vpack.c.b16 %v2588, %v2586
      %v2693 = vpack.c.b16 %v2591, %v2589
      %v2694 = vpack.c.b16 %v2592, %v2590
      %v2695 = vpack.c.b16 %v2595, %v2593
      %v2696 = vpack.c.b16 %v2596, %v2594
      %v2697 = vpack.c.b16 %v2599, %v2597
      %v2698 = vpack.c.b16 %v2600, %v2598
      %v2699 = vpack.c.b16 %v2603, %v2601
      %v2700 = vpack.c.b16 %v2604, %v2602
      %v2701 = vpack.c.b16 %v2607, %v2605
      %v2702 = vpack.c.b16 %v2608, %v2606
      %v2703 = vpack.c.b16 %v2611, %v2609
      %v2704 = vpack.c.b16 %v2612, %v2610
      %v2705 = vpack.c.b16 %v2615, %v2613
      %v2706 = vpack.c.b16 %v2616, %v2614
      %v2707 = vpack.c.b16 %v2619, %v2617
      %v2708 = vpack.c.b16 %v2620, %v2618
      %v2709 = vpack.c.b16 %v2623, %v2621
      %v2710 = vpack.c.b16 %v2624, %v2622
      %v2711 = vpack.c.b16 %v2627, %v2625
      %v2712 = vpack.c.b16 %v2628, %v2626
      %v2713 = vpack.c.b16 %v2631, %v2629
      %v2714 = vpack.c.b16 %v2632, %v2630
      %v2715 = vpack.c.b16 %v2635, %v2633
      %v2716 = vpack.c.b16 %v2636, %v2634
      %v2717 = vpack.c.b16 %v2639, %v2637
      %v2718 = vpack.c.b16 %v2640, %v2638
      %v2719 = vpack.c.b16 %v2643, %v2641
      %v2720 = vpack.c.b16 %v2644, %v2642
      %v2721 = vpack.c.b16 %v2647, %v2645
      %v2722 = vpack.c.b16 %v2648, %v2646
      %v2723 = vpack.c.b16 %v2651, %v2649
      %v2724 = vpack.c.b16 %v2652, %v2650
      %v2725 = vpack.c.b16 %v2655, %v2653
      %v2726 = vpack.c.b16 %v2656, %v2654
      %v2727 = vpack.c.b16 %v2659, %v2657
      %v2728 = vpack.c.b16 %v2660, %v2658
      %v2729 = vpack.c.b16 %v2663, %v2661
      %v2730 = vpack.c.b16 %v2664, %v2662
      %v2731 = vpack.c.b16 %v2667, %v2665
      %v2732 = vpack.c.b16 %v2668, %v2666
      %2797 = vmatprep.subr.bf16.mxu0 %v2684
      %2798 = vmatpush1.bf16.msra.mxu0 %v2683
      %2799 = vmatprep.subr.bf16.mxu0 %v2682
      %2800 = vmatpush1.bf16.msra.mxu0 %v2681
      %2801 = vmatprep.subr.bf16.mxu0 %v2680
      %2802 = vmatpush1.bf16.msra.mxu0 %v2679
      %2803 = vmatprep.subr.bf16.mxu0 %v2678
      %2804 = vmatpush1.bf16.msra.mxu0 %v2677
      %2805 = vmatprep.subr.bf16.mxu0 %v2676
      %2806 = vmatpush1.bf16.msra.mxu0 %v2675
      %2807 = vmatprep.subr.bf16.mxu0 %v2674
      %2808 = vmatpush1.bf16.msra.mxu0 %v2673
      %2809 = vmatprep.subr.bf16.mxu0 %v2672
      %2810 = vmatpush1.bf16.msra.mxu0 %v2671
      %2811 = vmatprep.subr.bf16.mxu0 %v2670
      %2812 = vmatpush1.bf16.msra.mxu0 %v2669
      %2813 = vmatprep.subr.bf16.mxu0 %v2700
      %2814 = vmatpush2.bf16.msra.mxu0 %v2699
      %2815 = vmatprep.subr.bf16.mxu0 %v2698
      %2816 = vmatpush2.bf16.msra.mxu0 %v2697
      %2817 = vmatprep.subr.bf16.mxu0 %v2696
      %2818 = vmatpush2.bf16.msra.mxu0 %v2695
      %2819 = vmatprep.subr.bf16.mxu0 %v2694
      %2820 = vmatpush2.bf16.msra.mxu0 %v2693
      %2821 = vmatprep.subr.bf16.mxu0 %v2692
      %2822 = vmatpush2.bf16.msra.mxu0 %v2691
      %2823 = vmatprep.subr.bf16.mxu0 %v2690
      %2824 = vmatpush2.bf16.msra.mxu0 %v2689
      %2825 = vmatprep.subr.bf16.mxu0 %v2688
      %2826 = vmatpush2.bf16.msra.mxu0 %v2687
      %2827 = vmatprep.subr.bf16.mxu0 %v2686
      %2828 = vmatpush2.bf16.msra.mxu0 %v2685
      %2829 = vmatprep.mubr.bf16.mxu0 %v1762
      %2830 = vmatmul.mubr.bf16.gmra.mxu0 %v1761
      %v2831 = vpop.f32.mrf.mxu0
      %v2832 = vadd.f32 %v2470, %v2831
      %v2833 = vpop.f32.mrf.mxu0
      %v2834 = vadd.f32 %v2474, %v2833
      %v2835 = vpop.f32.mrf.mxu0
      %v2836 = vadd.f32 %v2470, %v2835
      %v2837 = vpop.f32.mrf.mxu0
      %v2838 = vadd.f32 %v2474, %v2837
      %2839 = vmatprep.mubr.bf16.mxu0 %v1766
      %2840 = vmatmul.mubr.bf16.gmra.mxu0 %v1765
      %v2841 = vpop.f32.mrf.mxu0
      %v2842 = vadd.f32 %v2470, %v2841
      %v2843 = vpop.f32.mrf.mxu0
      %v2844 = vadd.f32 %v2474, %v2843
      %v2845 = vpop.f32.mrf.mxu0
      %v2846 = vadd.f32 %v2470, %v2845
      %v2847 = vpop.f32.mrf.mxu0
      %v2848 = vadd.f32 %v2474, %v2847
      %2849 = vmatprep.mubr.bf16.mxu0 %v1770
      %2850 = vmatmul.mubr.bf16.gmra.mxu0 %v1769
      %v2851 = vpop.f32.mrf.mxu0
      %v2852 = vadd.f32 %v2470, %v2851
      %v2853 = vpop.f32.mrf.mxu0
      %v2854 = vadd.f32 %v2474, %v2853
      %v2855 = vpop.f32.mrf.mxu0
      %v2856 = vadd.f32 %v2470, %v2855
      %v2857 = vpop.f32.mrf.mxu0
      %v2858 = vadd.f32 %v2474, %v2857
      %2859 = vmatprep.mubr.bf16.mxu0 %v1774
      %2860 = vmatmul.mubr.bf16.gmra.mxu0 %v1773
      %v2861 = vpop.f32.mrf.mxu0
      %v2862 = vadd.f32 %v2470, %v2861
      %v2863 = vpop.f32.mrf.mxu0
      %v2864 = vadd.f32 %v2474, %v2863
      %v2865 = vpop.f32.mrf.mxu0
      %v2866 = vadd.f32 %v2470, %v2865
      %v2867 = vpop.f32.mrf.mxu0
      %v2868 = vadd.f32 %v2474, %v2867
      %2869 = vmatprep.mubr.bf16.mxu0 %v1778
      %2870 = vmatmul.mubr.bf16.gmra.mxu0 %v1777
      %v2871 = vpop.f32.mrf.mxu0
      %v2872 = vadd.f32 %v2470, %v2871
      %v2873 = vpop.f32.mrf.mxu0
      %v2874 = vadd.f32 %v2474, %v2873
      %v2875 = vpop.f32.mrf.mxu0
      %v2876 = vadd.f32 %v2470, %v2875
      %v2877 = vpop.f32.mrf.mxu0
      %v2878 = vadd.f32 %v2474, %v2877
      %2879 = vmatprep.mubr.bf16.mxu0 %v1782
      %2880 = vmatmul.mubr.bf16.gmra.mxu0 %v1781
      %v2881 = vpop.f32.mrf.mxu0
      %v2882 = vadd.f32 %v2470, %v2881
      %v2883 = vpop.f32.mrf.mxu0
      %v2884 = vadd.f32 %v2474, %v2883
      %v2885 = vpop.f32.mrf.mxu0
      %v2886 = vadd.f32 %v2470, %v2885
      %v2887 = vpop.f32.mrf.mxu0
      %v2888 = vadd.f32 %v2474, %v2887
      %2889 = vmatprep.mubr.bf16.mxu0 %v1786
      %2890 = vmatmul.mubr.bf16.gmra.mxu0 %v1785
      %v2891 = vpop.f32.mrf.mxu0
      %v2892 = vadd.f32 %v2470, %v2891
      %v2893 = vpop.f32.mrf.mxu0
      %v2894 = vadd.f32 %v2474, %v2893
      %v2895 = vpop.f32.mrf.mxu0
      %v2896 = vadd.f32 %v2470, %v2895
      %v2897 = vpop.f32.mrf.mxu0
      %v2898 = vadd.f32 %v2474, %v2897
      %2899 = vmatprep.mubr.bf16.mxu0 %v1790
      %2900 = vmatmul.mubr.bf16.gmra.mxu0 %v1789
      %v2901 = vpop.f32.mrf.mxu0
      %v2902 = vadd.f32 %v2470, %v2901
      %v2903 = vpop.f32.mrf.mxu0
      %v2904 = vadd.f32 %v2474, %v2903
      %v2905 = vpop.f32.mrf.mxu0
      %v2906 = vadd.f32 %v2470, %v2905
      %v2907 = vpop.f32.mrf.mxu0
      %v2908 = vadd.f32 %v2474, %v2907
      %2909 = vdwg.mxu0
      %2910 = vmatprep.subr.bf16.mxu0 %v2716
      %2911 = vmatpush1.bf16.msra.mxu0 %v2715
      %2912 = vmatprep.subr.bf16.mxu0 %v2714
      %2913 = vmatpush1.bf16.msra.mxu0 %v2713
      %2914 = vmatprep.subr.bf16.mxu0 %v2712
      %2915 = vmatpush1.bf16.msra.mxu0 %v2711
      %2916 = vmatprep.subr.bf16.mxu0 %v2710
      %2917 = vmatpush1.bf16.msra.mxu0 %v2709
      %2918 = vmatprep.subr.bf16.mxu0 %v2708
      %2919 = vmatpush1.bf16.msra.mxu0 %v2707
      %2920 = vmatprep.subr.bf16.mxu0 %v2706
      %2921 = vmatpush1.bf16.msra.mxu0 %v2705
      %2922 = vmatprep.subr.bf16.mxu0 %v2704
      %2923 = vmatpush1.bf16.msra.mxu0 %v2703
      %2924 = vmatprep.subr.bf16.mxu0 %v2702
      %2925 = vmatpush1.bf16.msra.mxu0 %v2701
      %2926 = vmatprep.subr.bf16.mxu0 %v2732
      %2927 = vmatpush2.bf16.msra.mxu0 %v2731
      %2928 = vmatprep.subr.bf16.mxu0 %v2730
      %2929 = vmatpush2.bf16.msra.mxu0 %v2729
      %2930 = vmatprep.subr.bf16.mxu0 %v2728
      %2931 = vmatpush2.bf16.msra.mxu0 %v2727
      %2932 = vmatprep.subr.bf16.mxu0 %v2726
      %2933 = vmatpush2.bf16.msra.mxu0 %v2725
      %2934 = vmatprep.subr.bf16.mxu0 %v2724
      %2935 = vmatpush2.bf16.msra.mxu0 %v2723
      %2936 = vmatprep.subr.bf16.mxu0 %v2722
      %2937 = vmatpush2.bf16.msra.mxu0 %v2721
      %2938 = vmatprep.subr.bf16.mxu0 %v2720
      %2939 = vmatpush2.bf16.msra.mxu0 %v2719
      %2940 = vmatprep.subr.bf16.mxu0 %v2718
      %2941 = vmatpush2.bf16.msra.mxu0 %v2717
      %2942 = vmatprep.mubr.bf16.mxu0 %v1764
      %2943 = vmatmul.mubr.bf16.gmra.mxu0 %v1763
      %v2944 = vpop.f32.mrf.mxu0
      %v2945 = vadd.f32 %v2832, %v2944
      %v2946 = vpop.f32.mrf.mxu0
      %v2947 = vadd.f32 %v2834, %v2946
      %v2948 = vpop.f32.mrf.mxu0
      %v2949 = vadd.f32 %v2836, %v2948
      %v2950 = vpop.f32.mrf.mxu0
      %v2951 = vadd.f32 %v2838, %v2950
      %2952 = vmatprep.mubr.bf16.mxu0 %v1768
      %2953 = vmatmul.mubr.bf16.gmra.mxu0 %v1767
      %v2954 = vpop.f32.mrf.mxu0
      %v2955 = vadd.f32 %v2842, %v2954
      %v2956 = vpop.f32.mrf.mxu0
      %v2957 = vadd.f32 %v2844, %v2956
      %v2958 = vpop.f32.mrf.mxu0
      %v2959 = vadd.f32 %v2846, %v2958
      %v2960 = vpop.f32.mrf.mxu0
      %v2961 = vadd.f32 %v2848, %v2960
      %2962 = vmatprep.mubr.bf16.mxu0 %v1772
      %2963 = vmatmul.mubr.bf16.gmra.mxu0 %v1771
      %v2964 = vpop.f32.mrf.mxu0
      %v2965 = vadd.f32 %v2852, %v2964
      %v2966 = vpop.f32.mrf.mxu0
      %v2967 = vadd.f32 %v2854, %v2966
      %v2968 = vpop.f32.mrf.mxu0
      %v2969 = vadd.f32 %v2856, %v2968
      %v2970 = vpop.f32.mrf.mxu0
      %v2971 = vadd.f32 %v2858, %v2970
      %2972 = vmatprep.mubr.bf16.mxu0 %v1776
      %2973 = vmatmul.mubr.bf16.gmra.mxu0 %v1775
      %v2974 = vpop.f32.mrf.mxu0
      %v2975 = vadd.f32 %v2862, %v2974
      %v2976 = vpop.f32.mrf.mxu0
      %v2977 = vadd.f32 %v2864, %v2976
      %v2978 = vpop.f32.mrf.mxu0
      %v2979 = vadd.f32 %v2866, %v2978
      %v2980 = vpop.f32.mrf.mxu0
      %v2981 = vadd.f32 %v2868, %v2980
      %2982 = vmatprep.mubr.bf16.mxu0 %v1780
      %2983 = vmatmul.mubr.bf16.gmra.mxu0 %v1779
      %v2984 = vpop.f32.mrf.mxu0
      %v2985 = vadd.f32 %v2872, %v2984
      %v2986 = vpop.f32.mrf.mxu0
      %v2987 = vadd.f32 %v2874, %v2986
      %v2988 = vpop.f32.mrf.mxu0
      %v2989 = vadd.f32 %v2876, %v2988
      %v2990 = vpop.f32.mrf.mxu0
      %v2991 = vadd.f32 %v2878, %v2990
      %2992 = vmatprep.mubr.bf16.mxu0 %v1784
      %2993 = vmatmul.mubr.bf16.gmra.mxu0 %v1783
      %v2994 = vpop.f32.mrf.mxu0
      %v2995 = vadd.f32 %v2882, %v2994
      %v2996 = vpop.f32.mrf.mxu0
      %v2997 = vadd.f32 %v2884, %v2996
      %v2998 = vpop.f32.mrf.mxu0
      %v2999 = vadd.f32 %v2886, %v2998
      %v3000 = vpop.f32.mrf.mxu0
      %v3001 = vadd.f32 %v2888, %v3000
      %3002 = vmatprep.mubr.bf16.mxu0 %v1788
      %3003 = vmatmul.mubr.bf16.gmra.mxu0 %v1787
      %v3004 = vpop.f32.mrf.mxu0
      %v3005 = vadd.f32 %v2892, %v3004
      %v3006 = vpop.f32.mrf.mxu0
      %v3007 = vadd.f32 %v2894, %v3006
      %v3008 = vpop.f32.mrf.mxu0
      %v3009 = vadd.f32 %v2896, %v3008
      %v3010 = vpop.f32.mrf.mxu0
      %v3011 = vadd.f32 %v2898, %v3010
      %3012 = vmatprep.mubr.bf16.mxu0 %v1792
      %3013 = vmatmul.mubr.bf16.gmra.mxu0 %v1791
      %v3014 = vpop.f32.mrf.mxu0
      %v3015 = vadd.f32 %v2902, %v3014
      %v3016 = vpop.f32.mrf.mxu0
      %v3017 = vadd.f32 %v2904, %v3016
      %v3018 = vpop.f32.mrf.mxu0
      %v3019 = vadd.f32 %v2906, %v3018
      %v3020 = vpop.f32.mrf.mxu0
      %v3021 = vadd.f32 %v2908, %v3020
      %3022 = vdwg.mxu0
      %3023 = vmatprep.subr.bf16.mxu0 %v2684
      %3024 = vmatpush1.bf16.msra.mxu0 %v2683
      %3025 = vmatprep.subr.bf16.mxu0 %v2682
      %3026 = vmatpush1.bf16.msra.mxu0 %v2681
      %3027 = vmatprep.subr.bf16.mxu0 %v2680
      %3028 = vmatpush1.bf16.msra.mxu0 %v2679
      %3029 = vmatprep.subr.bf16.mxu0 %v2678
      %3030 = vmatpush1.bf16.msra.mxu0 %v2677
      %3031 = vmatprep.subr.bf16.mxu0 %v2676
      %3032 = vmatpush1.bf16.msra.mxu0 %v2675
      %3033 = vmatprep.subr.bf16.mxu0 %v2674
      %3034 = vmatpush1.bf16.msra.mxu0 %v2673
      %3035 = vmatprep.subr.bf16.mxu0 %v2672
      %3036 = vmatpush1.bf16.msra.mxu0 %v2671
      %3037 = vmatprep.subr.bf16.mxu0 %v2670
      %3038 = vmatpush1.bf16.msra.mxu0 %v2669
      %3039 = vmatprep.subr.bf16.mxu0 %v2700
      %3040 = vmatpush2.bf16.msra.mxu0 %v2699
      %3041 = vmatprep.subr.bf16.mxu0 %v2698
      %3042 = vmatpush2.bf16.msra.mxu0 %v2697
      %3043 = vmatprep.subr.bf16.mxu0 %v2696
      %3044 = vmatpush2.bf16.msra.mxu0 %v2695
      %3045 = vmatprep.subr.bf16.mxu0 %v2694
      %3046 = vmatpush2.bf16.msra.mxu0 %v2693
      %3047 = vmatprep.subr.bf16.mxu0 %v2692
      %3048 = vmatpush2.bf16.msra.mxu0 %v2691
      %3049 = vmatprep.subr.bf16.mxu0 %v2690
      %3050 = vmatpush2.bf16.msra.mxu0 %v2689
      %3051 = vmatprep.subr.bf16.mxu0 %v2688
      %3052 = vmatpush2.bf16.msra.mxu0 %v2687
      %3053 = vmatprep.subr.bf16.mxu0 %v2686
      %3054 = vmatpush2.bf16.msra.mxu0 %v2685
      %3055 = vmatprep.mubr.bf16.mxu0 %v2370
      %3056 = vmatmul.mubr.bf16.gmra.mxu0 %v2369
      %v3057 = vpop.f32.mrf.mxu0
      %v3058 = vadd.f32 %v2470, %v3057
      %v3059 = vpop.f32.mrf.mxu0
      %v3060 = vadd.f32 %v2474, %v3059
      %v3061 = vpop.f32.mrf.mxu0
      %v3062 = vadd.f32 %v2470, %v3061
      %v3063 = vpop.f32.mrf.mxu0
      %v3064 = vadd.f32 %v2474, %v3063
      %3065 = vmatprep.mubr.bf16.mxu0 %v2374
      %3066 = vmatmul.mubr.bf16.gmra.mxu0 %v2373
      %v3067 = vpop.f32.mrf.mxu0
      %v3068 = vadd.f32 %v2470, %v3067
      %v3069 = vpop.f32.mrf.mxu0
      %v3070 = vadd.f32 %v2474, %v3069
      %v3071 = vpop.f32.mrf.mxu0
      %v3072 = vadd.f32 %v2470, %v3071
      %v3073 = vpop.f32.mrf.mxu0
      %v3074 = vadd.f32 %v2474, %v3073
      %3075 = vmatprep.mubr.bf16.mxu0 %v2378
      %3076 = vmatmul.mubr.bf16.gmra.mxu0 %v2377
      %v3077 = vpop.f32.mrf.mxu0
      %v3078 = vadd.f32 %v2470, %v3077
      %v3079 = vpop.f32.mrf.mxu0
      %v3080 = vadd.f32 %v2474, %v3079
      %v3081 = vpop.f32.mrf.mxu0
      %v3082 = vadd.f32 %v2470, %v3081
      %v3083 = vpop.f32.mrf.mxu0
      %v3084 = vadd.f32 %v2474, %v3083
      %3085 = vmatprep.mubr.bf16.mxu0 %v2382
      %3086 = vmatmul.mubr.bf16.gmra.mxu0 %v2381
      %v3087 = vpop.f32.mrf.mxu0
      %v3088 = vadd.f32 %v2470, %v3087
      %v3089 = vpop.f32.mrf.mxu0
      %v3090 = vadd.f32 %v2474, %v3089
      %v3091 = vpop.f32.mrf.mxu0
      %v3092 = vadd.f32 %v2470, %v3091
      %v3093 = vpop.f32.mrf.mxu0
      %v3094 = vadd.f32 %v2474, %v3093
      %3095 = vmatprep.mubr.bf16.mxu0 %v2386
      %3096 = vmatmul.mubr.bf16.gmra.mxu0 %v2385
      %v3097 = vpop.f32.mrf.mxu0
      %v3098 = vadd.f32 %v2470, %v3097
      %v3099 = vpop.f32.mrf.mxu0
      %v3100 = vadd.f32 %v2474, %v3099
      %v3101 = vpop.f32.mrf.mxu0
      %v3102 = vadd.f32 %v2470, %v3101
      %v3103 = vpop.f32.mrf.mxu0
      %v3104 = vadd.f32 %v2474, %v3103
      %3105 = vmatprep.mubr.bf16.mxu0 %v2390
      %3106 = vmatmul.mubr.bf16.gmra.mxu0 %v2389
      %v3107 = vpop.f32.mrf.mxu0
      %v3108 = vadd.f32 %v2470, %v3107
      %v3109 = vpop.f32.mrf.mxu0
      %v3110 = vadd.f32 %v2474, %v3109
      %v3111 = vpop.f32.mrf.mxu0
      %v3112 = vadd.f32 %v2470, %v3111
      %v3113 = vpop.f32.mrf.mxu0
      %v3114 = vadd.f32 %v2474, %v3113
      %3115 = vmatprep.mubr.bf16.mxu0 %v2394
      %3116 = vmatmul.mubr.bf16.gmra.mxu0 %v2393
      %v3117 = vpop.f32.mrf.mxu0
      %v3118 = vadd.f32 %v2470, %v3117
      %v3119 = vpop.f32.mrf.mxu0
      %v3120 = vadd.f32 %v2474, %v3119
      %v3121 = vpop.f32.mrf.mxu0
      %v3122 = vadd.f32 %v2470, %v3121
      %v3123 = vpop.f32.mrf.mxu0
      %v3124 = vadd.f32 %v2474, %v3123
      %3125 = vmatprep.mubr.bf16.mxu0 %v2398
      %3126 = vmatmul.mubr.bf16.gmra.mxu0 %v2397
      %v3127 = vpop.f32.mrf.mxu0
      %v3128 = vadd.f32 %v2470, %v3127
      %v3129 = vpop.f32.mrf.mxu0
      %v3130 = vadd.f32 %v2474, %v3129
      %v3131 = vpop.f32.mrf.mxu0
      %v3132 = vadd.f32 %v2470, %v3131
      %v3133 = vpop.f32.mrf.mxu0
      %v3134 = vadd.f32 %v2474, %v3133
      %3135 = vdwg.mxu0
      %3136 = vmatprep.subr.bf16.mxu0 %v2716
      %3137 = vmatpush1.bf16.msra.mxu0 %v2715
      %3138 = vmatprep.subr.bf16.mxu0 %v2714
      %3139 = vmatpush1.bf16.msra.mxu0 %v2713
      %3140 = vmatprep.subr.bf16.mxu0 %v2712
      %3141 = vmatpush1.bf16.msra.mxu0 %v2711
      %3142 = vmatprep.subr.bf16.mxu0 %v2710
      %3143 = vmatpush1.bf16.msra.mxu0 %v2709
      %3144 = vmatprep.subr.bf16.mxu0 %v2708
      %3145 = vmatpush1.bf16.msra.mxu0 %v2707
      %3146 = vmatprep.subr.bf16.mxu0 %v2706
      %3147 = vmatpush1.bf16.msra.mxu0 %v2705
      %3148 = vmatprep.subr.bf16.mxu0 %v2704
      %3149 = vmatpush1.bf16.msra.mxu0 %v2703
      %3150 = vmatprep.subr.bf16.mxu0 %v2702
      %3151 = vmatpush1.bf16.msra.mxu0 %v2701
      %3152 = vmatprep.subr.bf16.mxu0 %v2732
      %3153 = vmatpush2.bf16.msra.mxu0 %v2731
      %3154 = vmatprep.subr.bf16.mxu0 %v2730
      %3155 = vmatpush2.bf16.msra.mxu0 %v2729
      %3156 = vmatprep.subr.bf16.mxu0 %v2728
      %3157 = vmatpush2.bf16.msra.mxu0 %v2727
      %3158 = vmatprep.subr.bf16.mxu0 %v2726
      %3159 = vmatpush2.bf16.msra.mxu0 %v2725
      %3160 = vmatprep.subr.bf16.mxu0 %v2724
      %3161 = vmatpush2.bf16.msra.mxu0 %v2723
      %3162 = vmatprep.subr.bf16.mxu0 %v2722
      %3163 = vmatpush2.bf16.msra.mxu0 %v2721
      %3164 = vmatprep.subr.bf16.mxu0 %v2720
      %3165 = vmatpush2.bf16.msra.mxu0 %v2719
      %3166 = vmatprep.subr.bf16.mxu0 %v2718
      %3167 = vmatpush2.bf16.msra.mxu0 %v2717
      %3168 = vmatprep.mubr.bf16.mxu0 %v2372
      %3169 = vmatmul.mubr.bf16.gmra.mxu0 %v2371
      %v3170 = vpop.f32.mrf.mxu0
      %v3171 = vadd.f32 %v3058, %v3170
      %v3172 = vpop.f32.mrf.mxu0
      %v3173 = vadd.f32 %v3060, %v3172
      %v3174 = vpop.f32.mrf.mxu0
      %v3175 = vadd.f32 %v3062, %v3174
      %v3176 = vpop.f32.mrf.mxu0
      %v3177 = vadd.f32 %v3064, %v3176
      %3178 = vmatprep.mubr.bf16.mxu0 %v2376
      %3179 = vmatmul.mubr.bf16.gmra.mxu0 %v2375
      %v3180 = vpop.f32.mrf.mxu0
      %v3181 = vadd.f32 %v3068, %v3180
      %v3182 = vpop.f32.mrf.mxu0
      %v3183 = vadd.f32 %v3070, %v3182
      %v3184 = vpop.f32.mrf.mxu0
      %v3185 = vadd.f32 %v3072, %v3184
      %v3186 = vpop.f32.mrf.mxu0
      %v3187 = vadd.f32 %v3074, %v3186
      %3188 = vmatprep.mubr.bf16.mxu0 %v2380
      %3189 = vmatmul.mubr.bf16.gmra.mxu0 %v2379
      %v3190 = vpop.f32.mrf.mxu0
      %v3191 = vadd.f32 %v3078, %v3190
      %v3192 = vpop.f32.mrf.mxu0
      %v3193 = vadd.f32 %v3080, %v3192
      %v3194 = vpop.f32.mrf.mxu0
      %v3195 = vadd.f32 %v3082, %v3194
      %v3196 = vpop.f32.mrf.mxu0
      %v3197 = vadd.f32 %v3084, %v3196
      %3198 = vmatprep.mubr.bf16.mxu0 %v2384
      %3199 = vmatmul.mubr.bf16.gmra.mxu0 %v2383
      %v3200 = vpop.f32.mrf.mxu0
      %v3201 = vadd.f32 %v3088, %v3200
      %v3202 = vpop.f32.mrf.mxu0
      %v3203 = vadd.f32 %v3090, %v3202
      %v3204 = vpop.f32.mrf.mxu0
      %v3205 = vadd.f32 %v3092, %v3204
      %v3206 = vpop.f32.mrf.mxu0
      %v3207 = vadd.f32 %v3094, %v3206
      %3208 = vmatprep.mubr.bf16.mxu0 %v2388
      %3209 = vmatmul.mubr.bf16.gmra.mxu0 %v2387
      %v3210 = vpop.f32.mrf.mxu0
      %v3211 = vadd.f32 %v3098, %v3210
      %v3212 = vpop.f32.mrf.mxu0
      %v3213 = vadd.f32 %v3100, %v3212
      %v3214 = vpop.f32.mrf.mxu0
      %v3215 = vadd.f32 %v3102, %v3214
      %v3216 = vpop.f32.mrf.mxu0
      %v3217 = vadd.f32 %v3104, %v3216
      %3218 = vmatprep.mubr.bf16.mxu0 %v2392
      %3219 = vmatmul.mubr.bf16.gmra.mxu0 %v2391
      %v3220 = vpop.f32.mrf.mxu0
      %v3221 = vadd.f32 %v3108, %v3220
      %v3222 = vpop.f32.mrf.mxu0
      %v3223 = vadd.f32 %v3110, %v3222
      %v3224 = vpop.f32.mrf.mxu0
      %v3225 = vadd.f32 %v3112, %v3224
      %v3226 = vpop.f32.mrf.mxu0
      %v3227 = vadd.f32 %v3114, %v3226
      %3228 = vmatprep.mubr.bf16.mxu0 %v2396
      %3229 = vmatmul.mubr.bf16.gmra.mxu0 %v2395
      %v3230 = vpop.f32.mrf.mxu0
      %v3231 = vadd.f32 %v3118, %v3230
      %v3232 = vpop.f32.mrf.mxu0
      %v3233 = vadd.f32 %v3120, %v3232
      %v3234 = vpop.f32.mrf.mxu0
      %v3235 = vadd.f32 %v3122, %v3234
      %v3236 = vpop.f32.mrf.mxu0
      %v3237 = vadd.f32 %v3124, %v3236
      %3238 = vmatprep.mubr.bf16.mxu0 %v2400
      %3239 = vmatmul.mubr.bf16.gmra.mxu0 %v2399
      %v3240 = vpop.f32.mrf.mxu0
      %v3241 = vadd.f32 %v3128, %v3240
      %v3242 = vpop.f32.mrf.mxu0
      %v3243 = vadd.f32 %v3130, %v3242
      %v3244 = vpop.f32.mrf.mxu0
      %v3245 = vadd.f32 %v3132, %v3244
      %v3246 = vpop.f32.mrf.mxu0
      %v3247 = vadd.f32 %v3134, %v3246
      %3248 = vdwg.mxu0
      %v3249 = vmin.f32 %v2945, 20.0
      %v3250 = vmin.f32 %v2947, 20.0
      %v3251 = vmin.f32 %v2949, 20.0
      %v3252 = vmin.f32 %v2951, 20.0
      %v3253 = vmin.f32 %v2955, 20.0
      %v3254 = vmin.f32 %v2957, 20.0
      %v3255 = vmin.f32 %v2959, 20.0
      %v3256 = vmin.f32 %v2961, 20.0
      %v3257 = vmin.f32 %v2965, 20.0
      %v3258 = vmin.f32 %v2967, 20.0
      %v3259 = vmin.f32 %v2969, 20.0
      %v3260 = vmin.f32 %v2971, 20.0
      %v3261 = vmin.f32 %v2975, 20.0
      %v3262 = vmin.f32 %v2977, 20.0
      %v3263 = vmin.f32 %v2979, 20.0
      %v3264 = vmin.f32 %v2981, 20.0
      %v3265 = vmin.f32 %v2985, 20.0
      %v3266 = vmin.f32 %v2987, 20.0
      %v3267 = vmin.f32 %v2989, 20.0
      %v3268 = vmin.f32 %v2991, 20.0
      %v3269 = vmin.f32 %v2995, 20.0
      %v3270 = vmin.f32 %v2997, 20.0
      %v3271 = vmin.f32 %v2999, 20.0
      %v3272 = vmin.f32 %v3001, 20.0
      %v3273 = vmin.f32 %v3005, 20.0
      %v3274 = vmin.f32 %v3007, 20.0
      %v3275 = vmin.f32 %v3009, 20.0
      %v3276 = vmin.f32 %v3011, 20.0
      %v3277 = vmin.f32 %v3015, 20.0
      %v3278 = vmin.f32 %v3017, 20.0
      %v3279 = vmin.f32 %v3019, 20.0
      %v3280 = vmin.f32 %v3021, 20.0
      %v3281 = vmul.f32 %v3249, 1.442695
      %v3282 = vpow.pop %v3281
      %v3283 = vmul.f32 %v3250, 1.442695
      %v3284 = vpow.pop %v3283
      %v3285 = vmul.f32 %v3251, 1.442695
      %v3286 = vpow.pop %v3285
      %v3287 = vmul.f32 %v3252, 1.442695
      %v3288 = vpow.pop %v3287
      %v3289 = vmul.f32 %v3253, 1.442695
      %v3290 = vpow.pop %v3289
      %v3291 = vmul.f32 %v3254, 1.442695
      %v3292 = vpow.pop %v3291
      %v3293 = vmul.f32 %v3255, 1.442695
      %v3294 = vpow.pop %v3293
      %v3295 = vmul.f32 %v3256, 1.442695
      %v3296 = vpow.pop %v3295
      %v3297 = vmul.f32 %v3257, 1.442695
      %v3298 = vpow.pop %v3297
      %v3299 = vmul.f32 %v3258, 1.442695
      %v3300 = vpow.pop %v3299
      %v3301 = vmul.f32 %v3259, 1.442695
      %v3302 = vpow.pop %v3301
      %v3303 = vmul.f32 %v3260, 1.442695
      %v3304 = vpow.pop %v3303
      %v3305 = vmul.f32 %v3261, 1.442695
      %v3306 = vpow.pop %v3305
      %v3307 = vmul.f32 %v3262, 1.442695
      %v3308 = vpow.pop %v3307
      %v3309 = vmul.f32 %v3263, 1.442695
      %v3310 = vpow.pop %v3309
      %v3311 = vmul.f32 %v3264, 1.442695
      %v3312 = vpow.pop %v3311
      %v3313 = vmul.f32 %v3265, 1.442695
      %v3314 = vpow.pop %v3313
      %v3315 = vmul.f32 %v3266, 1.442695
      %v3316 = vpow.pop %v3315
      %v3317 = vmul.f32 %v3267, 1.442695
      %v3318 = vpow.pop %v3317
      %v3319 = vmul.f32 %v3268, 1.442695
      %v3320 = vpow.pop %v3319
      %v3321 = vmul.f32 %v3269, 1.442695
      %v3322 = vpow.pop %v3321
      %v3323 = vmul.f32 %v3270, 1.442695
      %v3324 = vpow.pop %v3323
      %v3325 = vmul.f32 %v3271, 1.442695
      %v3326 = vpow.pop %v3325
      %v3327 = vmul.f32 %v3272, 1.442695
      %v3328 = vpow.pop %v3327
      %v3329 = vmul.f32 %v3273, 1.442695
      %v3330 = vpow.pop %v3329
      %v3331 = vmul.f32 %v3274, 1.442695
      %v3332 = vpow.pop %v3331
      %v3333 = vmul.f32 %v3275, 1.442695
      %v3334 = vpow.pop %v3333
      %v3335 = vmul.f32 %v3276, 1.442695
      %v3336 = vpow.pop %v3335
      %v3337 = vmul.f32 %v3277, 1.442695
      %v3338 = vpow.pop %v3337
      %v3339 = vmul.f32 %v3278, 1.442695
      %v3340 = vpow.pop %v3339
      %v3341 = vmul.f32 %v3279, 1.442695
      %v3342 = vpow.pop %v3341
      %v3343 = vmul.f32 %v3280, 1.442695
      %v3344 = vpow.pop %v3343
      %v3345 = vadd.f32 %v3282, 2.0
      %v3346 = vadd.f32 %v3284, 2.0
      %v3347 = vadd.f32 %v3286, 2.0
      %v3348 = vadd.f32 %v3288, 2.0
      %v3349 = vadd.f32 %v3290, 2.0
      %v3350 = vadd.f32 %v3292, 2.0
      %v3351 = vadd.f32 %v3294, 2.0
      %v3352 = vadd.f32 %v3296, 2.0
      %v3353 = vadd.f32 %v3298, 2.0
      %v3354 = vadd.f32 %v3300, 2.0
      %v3355 = vadd.f32 %v3302, 2.0
      %v3356 = vadd.f32 %v3304, 2.0
      %v3357 = vadd.f32 %v3306, 2.0
      %v3358 = vadd.f32 %v3308, 2.0
      %v3359 = vadd.f32 %v3310, 2.0
      %v3360 = vadd.f32 %v3312, 2.0
      %v3361 = vadd.f32 %v3314, 2.0
      %v3362 = vadd.f32 %v3316, 2.0
      %v3363 = vadd.f32 %v3318, 2.0
      %v3364 = vadd.f32 %v3320, 2.0
      %v3365 = vadd.f32 %v3322, 2.0
      %v3366 = vadd.f32 %v3324, 2.0
      %v3367 = vadd.f32 %v3326, 2.0
      %v3368 = vadd.f32 %v3328, 2.0
      %v3369 = vadd.f32 %v3330, 2.0
      %v3370 = vadd.f32 %v3332, 2.0
      %v3371 = vadd.f32 %v3334, 2.0
      %v3372 = vadd.f32 %v3336, 2.0
      %v3373 = vadd.f32 %v3338, 2.0
      %v3374 = vadd.f32 %v3340, 2.0
      %v3375 = vadd.f32 %v3342, 2.0
      %v3376 = vadd.f32 %v3344, 2.0
      %v3377 = vmul.f32 %v3282, %v3345
      %v3378 = vmul.f32 %v3284, %v3346
      %v3379 = vmul.f32 %v3286, %v3347
      %v3380 = vmul.f32 %v3288, %v3348
      %v3381 = vmul.f32 %v3290, %v3349
      %v3382 = vmul.f32 %v3292, %v3350
      %v3383 = vmul.f32 %v3294, %v3351
      %v3384 = vmul.f32 %v3296, %v3352
      %v3385 = vmul.f32 %v3298, %v3353
      %v3386 = vmul.f32 %v3300, %v3354
      %v3387 = vmul.f32 %v3302, %v3355
      %v3388 = vmul.f32 %v3304, %v3356
      %v3389 = vmul.f32 %v3306, %v3357
      %v3390 = vmul.f32 %v3308, %v3358
      %v3391 = vmul.f32 %v3310, %v3359
      %v3392 = vmul.f32 %v3312, %v3360
      %v3393 = vmul.f32 %v3314, %v3361
      %v3394 = vmul.f32 %v3316, %v3362
      %v3395 = vmul.f32 %v3318, %v3363
      %v3396 = vmul.f32 %v3320, %v3364
      %v3397 = vmul.f32 %v3322, %v3365
      %v3398 = vmul.f32 %v3324, %v3366
      %v3399 = vmul.f32 %v3326, %v3367
      %v3400 = vmul.f32 %v3328, %v3368
      %v3401 = vmul.f32 %v3330, %v3369
      %v3402 = vmul.f32 %v3332, %v3370
      %v3403 = vmul.f32 %v3334, %v3371
      %v3404 = vmul.f32 %v3336, %v3372
      %v3405 = vmul.f32 %v3338, %v3373
      %v3406 = vmul.f32 %v3340, %v3374
      %v3407 = vmul.f32 %v3342, %v3375
      %v3408 = vmul.f32 %v3344, %v3376
      %v3409 = vadd.f32 %v3377, 2.0
      %v3410 = vadd.f32 %v3378, 2.0
      %v3411 = vadd.f32 %v3379, 2.0
      %v3412 = vadd.f32 %v3380, 2.0
      %v3413 = vadd.f32 %v3381, 2.0
      %v3414 = vadd.f32 %v3382, 2.0
      %v3415 = vadd.f32 %v3383, 2.0
      %v3416 = vadd.f32 %v3384, 2.0
      %v3417 = vadd.f32 %v3385, 2.0
      %v3418 = vadd.f32 %v3386, 2.0
      %v3419 = vadd.f32 %v3387, 2.0
      %v3420 = vadd.f32 %v3388, 2.0
      %v3421 = vadd.f32 %v3389, 2.0
      %v3422 = vadd.f32 %v3390, 2.0
      %v3423 = vadd.f32 %v3391, 2.0
      %v3424 = vadd.f32 %v3392, 2.0
      %v3425 = vadd.f32 %v3393, 2.0
      %v3426 = vadd.f32 %v3394, 2.0
      %v3427 = vadd.f32 %v3395, 2.0
      %v3428 = vadd.f32 %v3396, 2.0
      %v3429 = vadd.f32 %v3397, 2.0
      %v3430 = vadd.f32 %v3398, 2.0
      %v3431 = vadd.f32 %v3399, 2.0
      %v3432 = vadd.f32 %v3400, 2.0
      %v3433 = vadd.f32 %v3401, 2.0
      %v3434 = vadd.f32 %v3402, 2.0
      %v3435 = vadd.f32 %v3403, 2.0
      %v3436 = vadd.f32 %v3404, 2.0
      %v3437 = vadd.f32 %v3405, 2.0
      %v3438 = vadd.f32 %v3406, 2.0
      %v3439 = vadd.f32 %v3407, 2.0
      %v3440 = vadd.f32 %v3408, 2.0
      %v3441 = vrcp.pop %v3409
      %v3442 = vrcp.pop %v3410
      %v3443 = vrcp.pop %v3411
      %v3444 = vrcp.pop %v3412
      %v3445 = vrcp.pop %v3413
      %v3446 = vrcp.pop %v3414
      %v3447 = vrcp.pop %v3415
      %v3448 = vrcp.pop %v3416
      %v3449 = vrcp.pop %v3417
      %v3450 = vrcp.pop %v3418
      %v3451 = vrcp.pop %v3419
      %v3452 = vrcp.pop %v3420
      %v3453 = vrcp.pop %v3421
      %v3454 = vrcp.pop %v3422
      %v3455 = vrcp.pop %v3423
      %v3456 = vrcp.pop %v3424
      %v3457 = vrcp.pop %v3425
      %v3458 = vrcp.pop %v3426
      %v3459 = vrcp.pop %v3427
      %v3460 = vrcp.pop %v3428
      %v3461 = vrcp.pop %v3429
      %v3462 = vrcp.pop %v3430
      %v3463 = vrcp.pop %v3431
      %v3464 = vrcp.pop %v3432
      %v3465 = vrcp.pop %v3433
      %v3466 = vrcp.pop %v3434
      %v3467 = vrcp.pop %v3435
      %v3468 = vrcp.pop %v3436
      %v3469 = vrcp.pop %v3437
      %v3470 = vrcp.pop %v3438
      %v3471 = vrcp.pop %v3439
      %v3472 = vrcp.pop %v3440
      %v3473 = vmul.f32 %v3377, %v3441
      %v3474 = vmul.f32 %v3378, %v3442
      %v3475 = vmul.f32 %v3379, %v3443
      %v3476 = vmul.f32 %v3380, %v3444
      %v3477 = vmul.f32 %v3381, %v3445
      %v3478 = vmul.f32 %v3382, %v3446
      %v3479 = vmul.f32 %v3383, %v3447
      %v3480 = vmul.f32 %v3384, %v3448
      %v3481 = vmul.f32 %v3385, %v3449
      %v3482 = vmul.f32 %v3386, %v3450
      %v3483 = vmul.f32 %v3387, %v3451
      %v3484 = vmul.f32 %v3388, %v3452
      %v3485 = vmul.f32 %v3389, %v3453
      %v3486 = vmul.f32 %v3390, %v3454
      %v3487 = vmul.f32 %v3391, %v3455
      %v3488 = vmul.f32 %v3392, %v3456
      %v3489 = vmul.f32 %v3393, %v3457
      %v3490 = vmul.f32 %v3394, %v3458
      %v3491 = vmul.f32 %v3395, %v3459
      %v3492 = vmul.f32 %v3396, %v3460
      %v3493 = vmul.f32 %v3397, %v3461
      %v3494 = vmul.f32 %v3398, %v3462
      %v3495 = vmul.f32 %v3399, %v3463
      %v3496 = vmul.f32 %v3400, %v3464
      %v3497 = vmul.f32 %v3401, %v3465
      %v3498 = vmul.f32 %v3402, %v3466
      %v3499 = vmul.f32 %v3403, %v3467
      %v3500 = vmul.f32 %v3404, %v3468
      %v3501 = vmul.f32 %v3405, %v3469
      %v3502 = vmul.f32 %v3406, %v3470
      %v3503 = vmul.f32 %v3407, %v3471
      %v3504 = vmul.f32 %v3408, %v3472
      %v3505 = vmul.f32 %v2945, %v3473
      %v3506 = vmul.f32 %v2947, %v3474
      %v3507 = vmul.f32 %v2949, %v3475
      %v3508 = vmul.f32 %v2951, %v3476
      %v3509 = vmul.f32 %v2955, %v3477
      %v3510 = vmul.f32 %v2957, %v3478
      %v3511 = vmul.f32 %v2959, %v3479
      %v3512 = vmul.f32 %v2961, %v3480
      %v3513 = vmul.f32 %v2965, %v3481
      %v3514 = vmul.f32 %v2967, %v3482
      %v3515 = vmul.f32 %v2969, %v3483
      %v3516 = vmul.f32 %v2971, %v3484
      %v3517 = vmul.f32 %v2975, %v3485
      %v3518 = vmul.f32 %v2977, %v3486
      %v3519 = vmul.f32 %v2979, %v3487
      %v3520 = vmul.f32 %v2981, %v3488
      %v3521 = vmul.f32 %v2985, %v3489
      %v3522 = vmul.f32 %v2987, %v3490
      %v3523 = vmul.f32 %v2989, %v3491
      %v3524 = vmul.f32 %v2991, %v3492
      %v3525 = vmul.f32 %v2995, %v3493
      %v3526 = vmul.f32 %v2997, %v3494
      %v3527 = vmul.f32 %v2999, %v3495
      %v3528 = vmul.f32 %v3001, %v3496
      %v3529 = vmul.f32 %v3005, %v3497
      %v3530 = vmul.f32 %v3007, %v3498
      %v3531 = vmul.f32 %v3009, %v3499
      %v3532 = vmul.f32 %v3011, %v3500
      %v3533 = vmul.f32 %v3015, %v3501
      %v3534 = vmul.f32 %v3017, %v3502
      %v3535 = vmul.f32 %v3019, %v3503
      %v3536 = vmul.f32 %v3021, %v3504
      %v3537 = vpack.c.bf16 %v3507, %v3505
      %v3538 = vpack.c.bf16 %v3508, %v3506
      %v3539 = vpack.c.bf16 %v3511, %v3509
      %v3540 = vpack.c.bf16 %v3512, %v3510
      %v3541 = vpack.c.bf16 %v3515, %v3513
      %v3542 = vpack.c.bf16 %v3516, %v3514
      %v3543 = vpack.c.bf16 %v3519, %v3517
      %v3544 = vpack.c.bf16 %v3520, %v3518
      %v3545 = vpack.c.bf16 %v3523, %v3521
      %v3546 = vpack.c.bf16 %v3524, %v3522
      %v3547 = vpack.c.bf16 %v3527, %v3525
      %v3548 = vpack.c.bf16 %v3528, %v3526
      %v3549 = vpack.c.bf16 %v3531, %v3529
      %v3550 = vpack.c.bf16 %v3532, %v3530
      %v3551 = vpack.c.bf16 %v3535, %v3533
      %v3552 = vpack.c.bf16 %v3536, %v3534
      %v3553 = vmin.f32 %v3171, 20.0
      %v3554 = vmin.f32 %v3173, 20.0
      %v3555 = vmin.f32 %v3175, 20.0
      %v3556 = vmin.f32 %v3177, 20.0
      %v3557 = vmin.f32 %v3181, 20.0
      %v3558 = vmin.f32 %v3183, 20.0
      %v3559 = vmin.f32 %v3185, 20.0
      %v3560 = vmin.f32 %v3187, 20.0
      %v3561 = vmin.f32 %v3191, 20.0
      %v3562 = vmin.f32 %v3193, 20.0
      %v3563 = vmin.f32 %v3195, 20.0
      %v3564 = vmin.f32 %v3197, 20.0
      %v3565 = vmin.f32 %v3201, 20.0
      %v3566 = vmin.f32 %v3203, 20.0
      %v3567 = vmin.f32 %v3205, 20.0
      %v3568 = vmin.f32 %v3207, 20.0
      %v3569 = vmin.f32 %v3211, 20.0
      %v3570 = vmin.f32 %v3213, 20.0
      %v3571 = vmin.f32 %v3215, 20.0
      %v3572 = vmin.f32 %v3217, 20.0
      %v3573 = vmin.f32 %v3221, 20.0
      %v3574 = vmin.f32 %v3223, 20.0
      %v3575 = vmin.f32 %v3225, 20.0
      %v3576 = vmin.f32 %v3227, 20.0
      %v3577 = vmin.f32 %v3231, 20.0
      %v3578 = vmin.f32 %v3233, 20.0
      %v3579 = vmin.f32 %v3235, 20.0
      %v3580 = vmin.f32 %v3237, 20.0
      %v3581 = vmin.f32 %v3241, 20.0
      %v3582 = vmin.f32 %v3243, 20.0
      %v3583 = vmin.f32 %v3245, 20.0
      %v3584 = vmin.f32 %v3247, 20.0
      %v3585 = vmul.f32 %v3553, 1.442695
      %v3586 = vpow.pop %v3585
      %v3587 = vmul.f32 %v3554, 1.442695
      %v3588 = vpow.pop %v3587
      %v3589 = vmul.f32 %v3555, 1.442695
      %v3590 = vpow.pop %v3589
      %v3591 = vmul.f32 %v3556, 1.442695
      %v3592 = vpow.pop %v3591
      %v3593 = vmul.f32 %v3557, 1.442695
      %v3594 = vpow.pop %v3593
      %v3595 = vmul.f32 %v3558, 1.442695
      %v3596 = vpow.pop %v3595
      %v3597 = vmul.f32 %v3559, 1.442695
      %v3598 = vpow.pop %v3597
      %v3599 = vmul.f32 %v3560, 1.442695
      %v3600 = vpow.pop %v3599
      %v3601 = vmul.f32 %v3561, 1.442695
      %v3602 = vpow.pop %v3601
      %v3603 = vmul.f32 %v3562, 1.442695
      %v3604 = vpow.pop %v3603
      %v3605 = vmul.f32 %v3563, 1.442695
      %v3606 = vpow.pop %v3605
      %v3607 = vmul.f32 %v3564, 1.442695
      %v3608 = vpow.pop %v3607
      %v3609 = vmul.f32 %v3565, 1.442695
      %v3610 = vpow.pop %v3609
      %v3611 = vmul.f32 %v3566, 1.442695
      %v3612 = vpow.pop %v3611
      %v3613 = vmul.f32 %v3567, 1.442695
      %v3614 = vpow.pop %v3613
      %v3615 = vmul.f32 %v3568, 1.442695
      %v3616 = vpow.pop %v3615
      %v3617 = vmul.f32 %v3569, 1.442695
      %v3618 = vpow.pop %v3617
      %v3619 = vmul.f32 %v3570, 1.442695
      %v3620 = vpow.pop %v3619
      %v3621 = vmul.f32 %v3571, 1.442695
      %v3622 = vpow.pop %v3621
      %v3623 = vmul.f32 %v3572, 1.442695
      %v3624 = vpow.pop %v3623
      %v3625 = vmul.f32 %v3573, 1.442695
      %v3626 = vpow.pop %v3625
      %v3627 = vmul.f32 %v3574, 1.442695
      %v3628 = vpow.pop %v3627
      %v3629 = vmul.f32 %v3575, 1.442695
      %v3630 = vpow.pop %v3629
      %v3631 = vmul.f32 %v3576, 1.442695
      %v3632 = vpow.pop %v3631
      %v3633 = vmul.f32 %v3577, 1.442695
      %v3634 = vpow.pop %v3633
      %v3635 = vmul.f32 %v3578, 1.442695
      %v3636 = vpow.pop %v3635
      %v3637 = vmul.f32 %v3579, 1.442695
      %v3638 = vpow.pop %v3637
      %v3639 = vmul.f32 %v3580, 1.442695
      %v3640 = vpow.pop %v3639
      %v3641 = vmul.f32 %v3581, 1.442695
      %v3642 = vpow.pop %v3641
      %v3643 = vmul.f32 %v3582, 1.442695
      %v3644 = vpow.pop %v3643
      %v3645 = vmul.f32 %v3583, 1.442695
      %v3646 = vpow.pop %v3645
      %v3647 = vmul.f32 %v3584, 1.442695
      %v3648 = vpow.pop %v3647
      %v3649 = vadd.f32 %v3586, 2.0
      %v3650 = vadd.f32 %v3588, 2.0
      %v3651 = vadd.f32 %v3590, 2.0
      %v3652 = vadd.f32 %v3592, 2.0
      %v3653 = vadd.f32 %v3594, 2.0
      %v3654 = vadd.f32 %v3596, 2.0
      %v3655 = vadd.f32 %v3598, 2.0
      %v3656 = vadd.f32 %v3600, 2.0
      %v3657 = vadd.f32 %v3602, 2.0
      %v3658 = vadd.f32 %v3604, 2.0
      %v3659 = vadd.f32 %v3606, 2.0
      %v3660 = vadd.f32 %v3608, 2.0
      %v3661 = vadd.f32 %v3610, 2.0
      %v3662 = vadd.f32 %v3612, 2.0
      %v3663 = vadd.f32 %v3614, 2.0
      %v3664 = vadd.f32 %v3616, 2.0
      %v3665 = vadd.f32 %v3618, 2.0
      %v3666 = vadd.f32 %v3620, 2.0
      %v3667 = vadd.f32 %v3622, 2.0
      %v3668 = vadd.f32 %v3624, 2.0
      %v3669 = vadd.f32 %v3626, 2.0
      %v3670 = vadd.f32 %v3628, 2.0
      %v3671 = vadd.f32 %v3630, 2.0
      %v3672 = vadd.f32 %v3632, 2.0
      %v3673 = vadd.f32 %v3634, 2.0
      %v3674 = vadd.f32 %v3636, 2.0
      %v3675 = vadd.f32 %v3638, 2.0
      %v3676 = vadd.f32 %v3640, 2.0
      %v3677 = vadd.f32 %v3642, 2.0
      %v3678 = vadd.f32 %v3644, 2.0
      %v3679 = vadd.f32 %v3646, 2.0
      %v3680 = vadd.f32 %v3648, 2.0
      %v3681 = vmul.f32 %v3586, %v3649
      %v3682 = vmul.f32 %v3588, %v3650
      %v3683 = vmul.f32 %v3590, %v3651
      %v3684 = vmul.f32 %v3592, %v3652
      %v3685 = vmul.f32 %v3594, %v3653
      %v3686 = vmul.f32 %v3596, %v3654
      %v3687 = vmul.f32 %v3598, %v3655
      %v3688 = vmul.f32 %v3600, %v3656
      %v3689 = vmul.f32 %v3602, %v3657
      %v3690 = vmul.f32 %v3604, %v3658
      %v3691 = vmul.f32 %v3606, %v3659
      %v3692 = vmul.f32 %v3608, %v3660
      %v3693 = vmul.f32 %v3610, %v3661
      %v3694 = vmul.f32 %v3612, %v3662
      %v3695 = vmul.f32 %v3614, %v3663
      %v3696 = vmul.f32 %v3616, %v3664
      %v3697 = vmul.f32 %v3618, %v3665
      %v3698 = vmul.f32 %v3620, %v3666
      %v3699 = vmul.f32 %v3622, %v3667
      %v3700 = vmul.f32 %v3624, %v3668
      %v3701 = vmul.f32 %v3626, %v3669
      %v3702 = vmul.f32 %v3628, %v3670
      %v3703 = vmul.f32 %v3630, %v3671
      %v3704 = vmul.f32 %v3632, %v3672
      %v3705 = vmul.f32 %v3634, %v3673
      %v3706 = vmul.f32 %v3636, %v3674
      %v3707 = vmul.f32 %v3638, %v3675
      %v3708 = vmul.f32 %v3640, %v3676
      %v3709 = vmul.f32 %v3642, %v3677
      %v3710 = vmul.f32 %v3644, %v3678
      %v3711 = vmul.f32 %v3646, %v3679
      %v3712 = vmul.f32 %v3648, %v3680
      %v3713 = vadd.f32 %v3681, 2.0
      %v3714 = vadd.f32 %v3682, 2.0
      %v3715 = vadd.f32 %v3683, 2.0
      %v3716 = vadd.f32 %v3684, 2.0
      %v3717 = vadd.f32 %v3685, 2.0
      %v3718 = vadd.f32 %v3686, 2.0
      %v3719 = vadd.f32 %v3687, 2.0
      %v3720 = vadd.f32 %v3688, 2.0
      %v3721 = vadd.f32 %v3689, 2.0
      %v3722 = vadd.f32 %v3690, 2.0
      %v3723 = vadd.f32 %v3691, 2.0
      %v3724 = vadd.f32 %v3692, 2.0
      %v3725 = vadd.f32 %v3693, 2.0
      %v3726 = vadd.f32 %v3694, 2.0
      %v3727 = vadd.f32 %v3695, 2.0
      %v3728 = vadd.f32 %v3696, 2.0
      %v3729 = vadd.f32 %v3697, 2.0
      %v3730 = vadd.f32 %v3698, 2.0
      %v3731 = vadd.f32 %v3699, 2.0
      %v3732 = vadd.f32 %v3700, 2.0
      %v3733 = vadd.f32 %v3701, 2.0
      %v3734 = vadd.f32 %v3702, 2.0
      %v3735 = vadd.f32 %v3703, 2.0
      %v3736 = vadd.f32 %v3704, 2.0
      %v3737 = vadd.f32 %v3705, 2.0
      %v3738 = vadd.f32 %v3706, 2.0
      %v3739 = vadd.f32 %v3707, 2.0
      %v3740 = vadd.f32 %v3708, 2.0
      %v3741 = vadd.f32 %v3709, 2.0
      %v3742 = vadd.f32 %v3710, 2.0
      %v3743 = vadd.f32 %v3711, 2.0
      %v3744 = vadd.f32 %v3712, 2.0
      %v3745 = vrcp.pop %v3713
      %v3746 = vrcp.pop %v3714
      %v3747 = vrcp.pop %v3715
      %v3748 = vrcp.pop %v3716
      %v3749 = vrcp.pop %v3717
      %v3750 = vrcp.pop %v3718
      %v3751 = vrcp.pop %v3719
      %v3752 = vrcp.pop %v3720
      %v3753 = vrcp.pop %v3721
      %v3754 = vrcp.pop %v3722
      %v3755 = vrcp.pop %v3723
      %v3756 = vrcp.pop %v3724
      %v3757 = vrcp.pop %v3725
      %v3758 = vrcp.pop %v3726
      %v3759 = vrcp.pop %v3727
      %v3760 = vrcp.pop %v3728
      %v3761 = vrcp.pop %v3729
      %v3762 = vrcp.pop %v3730
      %v3763 = vrcp.pop %v3731
      %v3764 = vrcp.pop %v3732
      %v3765 = vrcp.pop %v3733
      %v3766 = vrcp.pop %v3734
      %v3767 = vrcp.pop %v3735
      %v3768 = vrcp.pop %v3736
      %v3769 = vrcp.pop %v3737
      %v3770 = vrcp.pop %v3738
      %v3771 = vrcp.pop %v3739
      %v3772 = vrcp.pop %v3740
      %v3773 = vrcp.pop %v3741
      %v3774 = vrcp.pop %v3742
      %v3775 = vrcp.pop %v3743
      %v3776 = vrcp.pop %v3744
      %v3777 = vmul.f32 %v3681, %v3745
      %v3778 = vmul.f32 %v3682, %v3746
      %v3779 = vmul.f32 %v3683, %v3747
      %v3780 = vmul.f32 %v3684, %v3748
      %v3781 = vmul.f32 %v3685, %v3749
      %v3782 = vmul.f32 %v3686, %v3750
      %v3783 = vmul.f32 %v3687, %v3751
      %v3784 = vmul.f32 %v3688, %v3752
      %v3785 = vmul.f32 %v3689, %v3753
      %v3786 = vmul.f32 %v3690, %v3754
      %v3787 = vmul.f32 %v3691, %v3755
      %v3788 = vmul.f32 %v3692, %v3756
      %v3789 = vmul.f32 %v3693, %v3757
      %v3790 = vmul.f32 %v3694, %v3758
      %v3791 = vmul.f32 %v3695, %v3759
      %v3792 = vmul.f32 %v3696, %v3760
      %v3793 = vmul.f32 %v3697, %v3761
      %v3794 = vmul.f32 %v3698, %v3762
      %v3795 = vmul.f32 %v3699, %v3763
      %v3796 = vmul.f32 %v3700, %v3764
      %v3797 = vmul.f32 %v3701, %v3765
      %v3798 = vmul.f32 %v3702, %v3766
      %v3799 = vmul.f32 %v3703, %v3767
      %v3800 = vmul.f32 %v3704, %v3768
      %v3801 = vmul.f32 %v3705, %v3769
      %v3802 = vmul.f32 %v3706, %v3770
      %v3803 = vmul.f32 %v3707, %v3771
      %v3804 = vmul.f32 %v3708, %v3772
      %v3805 = vmul.f32 %v3709, %v3773
      %v3806 = vmul.f32 %v3710, %v3774
      %v3807 = vmul.f32 %v3711, %v3775
      %v3808 = vmul.f32 %v3712, %v3776
      %v3809 = vmul.f32 %v3171, %v3777
      %v3810 = vmul.f32 %v3173, %v3778
      %v3811 = vmul.f32 %v3175, %v3779
      %v3812 = vmul.f32 %v3177, %v3780
      %v3813 = vmul.f32 %v3181, %v3781
      %v3814 = vmul.f32 %v3183, %v3782
      %v3815 = vmul.f32 %v3185, %v3783
      %v3816 = vmul.f32 %v3187, %v3784
      %v3817 = vmul.f32 %v3191, %v3785
      %v3818 = vmul.f32 %v3193, %v3786
      %v3819 = vmul.f32 %v3195, %v3787
      %v3820 = vmul.f32 %v3197, %v3788
      %v3821 = vmul.f32 %v3201, %v3789
      %v3822 = vmul.f32 %v3203, %v3790
      %v3823 = vmul.f32 %v3205, %v3791
      %v3824 = vmul.f32 %v3207, %v3792
      %v3825 = vmul.f32 %v3211, %v3793
      %v3826 = vmul.f32 %v3213, %v3794
      %v3827 = vmul.f32 %v3215, %v3795
      %v3828 = vmul.f32 %v3217, %v3796
      %v3829 = vmul.f32 %v3221, %v3797
      %v3830 = vmul.f32 %v3223, %v3798
      %v3831 = vmul.f32 %v3225, %v3799
      %v3832 = vmul.f32 %v3227, %v3800
      %v3833 = vmul.f32 %v3231, %v3801
      %v3834 = vmul.f32 %v3233, %v3802
      %v3835 = vmul.f32 %v3235, %v3803
      %v3836 = vmul.f32 %v3237, %v3804
      %v3837 = vmul.f32 %v3241, %v3805
      %v3838 = vmul.f32 %v3243, %v3806
      %v3839 = vmul.f32 %v3245, %v3807
      %v3840 = vmul.f32 %v3247, %v3808
      %v3841 = vpack.c.bf16 %v3811, %v3809
      %v3842 = vpack.c.bf16 %v3812, %v3810
      %v3843 = vpack.c.bf16 %v3815, %v3813
      %v3844 = vpack.c.bf16 %v3816, %v3814
      %v3845 = vpack.c.bf16 %v3819, %v3817
      %v3846 = vpack.c.bf16 %v3820, %v3818
      %v3847 = vpack.c.bf16 %v3823, %v3821
      %v3848 = vpack.c.bf16 %v3824, %v3822
      %v3849 = vpack.c.bf16 %v3827, %v3825
      %v3850 = vpack.c.bf16 %v3828, %v3826
      %v3851 = vpack.c.bf16 %v3831, %v3829
      %v3852 = vpack.c.bf16 %v3832, %v3830
      %v3853 = vpack.c.bf16 %v3835, %v3833
      %v3854 = vpack.c.bf16 %v3836, %v3834
      %v3855 = vpack.c.bf16 %v3839, %v3837
      %v3856 = vpack.c.bf16 %v3840, %v3838
      %v3857 = vld [vmem:[%s5] sm:$0xf]
      %v3858 = vld [vmem:[%s5 + $0x4] sm:$0xf]
      %v3859 = vld [vmem:[%s5 + $0x8] sm:$0xf]
      %v3860 = vld [vmem:[%s5 + $0xc] sm:$0xf]
      %v3861 = vld [vmem:[%s5 + $0x10] sm:$0xf]
      %v3862 = vld [vmem:[%s5 + $0x14] sm:$0xf]
      %v3863 = vld [vmem:[%s5 + $0x18] sm:$0xf]
      %v3864 = vld [vmem:[%s5 + $0x1c] sm:$0xf]
      %v3865 = vld [vmem:[%s5 + $0x20] sm:$0xf]
      %v3866 = vld [vmem:[%s5 + $0x24] sm:$0xf]
      %v3867 = vld [vmem:[%s5 + $0x28] sm:$0xf]
      %v3868 = vld [vmem:[%s5 + $0x2c] sm:$0xf]
      %v3869 = vld [vmem:[%s5 + $0x30] sm:$0xf]
      %v3870 = vld [vmem:[%s5 + $0x34] sm:$0xf]
      %v3871 = vld [vmem:[%s5 + $0x38] sm:$0xf]
      %v3872 = vld [vmem:[%s5 + $0x3c] sm:$0xf]
      %v3873 = vld [vmem:[%s5 + $0x40] sm:$0xf]
      %v3874 = vld [vmem:[%s5 + $0x44] sm:$0xf]
      %v3875 = vld [vmem:[%s5 + $0x48] sm:$0xf]
      %v3876 = vld [vmem:[%s5 + $0x4c] sm:$0xf]
      %v3877 = vld [vmem:[%s5 + $0x50] sm:$0xf]
      %v3878 = vld [vmem:[%s5 + $0x54] sm:$0xf]
      %v3879 = vld [vmem:[%s5 + $0x58] sm:$0xf]
      %v3880 = vld [vmem:[%s5 + $0x5c] sm:$0xf]
      %v3881 = vld [vmem:[%s5 + $0x60] sm:$0xf]
      %v3882 = vld [vmem:[%s5 + $0x64] sm:$0xf]
      %v3883 = vld [vmem:[%s5 + $0x68] sm:$0xf]
      %v3884 = vld [vmem:[%s5 + $0x6c] sm:$0xf]
      %v3885 = vld [vmem:[%s5 + $0x70] sm:$0xf]
      %v3886 = vld [vmem:[%s5 + $0x74] sm:$0xf]
      %v3887 = vld [vmem:[%s5 + $0x78] sm:$0xf]
      %v3888 = vld [vmem:[%s5 + $0x7c] sm:$0xf]
      %v3889 = vld [vmem:[%s6] sm:$0x1]
      %v3891 = vlaneseq
      %v3892 = vshrl.u32 %v3891, 7
      %v3893 = vsub.s32 0, %v3892
      %v3894 = vrot.slane %v3889, %v3893
      %v3928 = vunpack.c.l.b16 %v3857
      %v3929 = vunpack.c.l.b16 %v3858
      %v3930 = vunpack.c.l.b16 %v3859
      %v3931 = vunpack.c.l.b16 %v3860
      %v3932 = vunpack.c.l.b16 %v3861
      %v3933 = vunpack.c.l.b16 %v3862
      %v3934 = vunpack.c.l.b16 %v3863
      %v3935 = vunpack.c.l.b16 %v3864
      %v3936 = vunpack.c.l.b16 %v3865
      %v3937 = vunpack.c.l.b16 %v3866
      %v3938 = vunpack.c.l.b16 %v3867
      %v3939 = vunpack.c.l.b16 %v3868
      %v3940 = vunpack.c.l.b16 %v3869
      %v3941 = vunpack.c.l.b16 %v3870
      %v3942 = vunpack.c.l.b16 %v3871
      %v3943 = vunpack.c.l.b16 %v3872
      %v3944 = vunpack.c.l.b16 %v3873
      %v3945 = vunpack.c.l.b16 %v3874
      %v3946 = vunpack.c.l.b16 %v3875
      %v3947 = vunpack.c.l.b16 %v3876
      %v3948 = vunpack.c.l.b16 %v3877
      %v3949 = vunpack.c.l.b16 %v3878
      %v3950 = vunpack.c.l.b16 %v3879
      %v3951 = vunpack.c.l.b16 %v3880
      %v3952 = vunpack.c.l.b16 %v3881
      %v3953 = vunpack.c.l.b16 %v3882
      %v3954 = vunpack.c.l.b16 %v3883
      %v3955 = vunpack.c.l.b16 %v3884
      %v3956 = vunpack.c.l.b16 %v3885
      %v3957 = vunpack.c.l.b16 %v3886
      %v3958 = vunpack.c.l.b16 %v3887
      %v3959 = vunpack.c.l.b16 %v3888
      %v3960 = vpack.c.b16 %v3929, %v3928
      %v3961 = vpack.c.b16 %v3931, %v3930
      %v3962 = vpack.c.b16 %v3933, %v3932
      %v3963 = vpack.c.b16 %v3935, %v3934
      %v3964 = vpack.c.b16 %v3937, %v3936
      %v3965 = vpack.c.b16 %v3939, %v3938
      %v3966 = vpack.c.b16 %v3941, %v3940
      %v3967 = vpack.c.b16 %v3943, %v3942
      %v3968 = vpack.c.b16 %v3945, %v3944
      %v3969 = vpack.c.b16 %v3947, %v3946
      %v3970 = vpack.c.b16 %v3949, %v3948
      %v3971 = vpack.c.b16 %v3951, %v3950
      %v3972 = vpack.c.b16 %v3953, %v3952
      %v3973 = vpack.c.b16 %v3955, %v3954
      %v3974 = vpack.c.b16 %v3957, %v3956
      %v3975 = vpack.c.b16 %v3959, %v3958
      %3992 = vmatprep.subr.bf16.mxu0 0
      %3993 = vmatpush1.bf16.msra.mxu0 %v3967
      %3994 = vmatprep.subr.bf16.mxu0 0
      %3995 = vmatpush1.bf16.msra.mxu0 %v3966
      %3996 = vmatprep.subr.bf16.mxu0 0
      %3997 = vmatpush1.bf16.msra.mxu0 %v3965
      %3998 = vmatprep.subr.bf16.mxu0 0
      %3999 = vmatpush1.bf16.msra.mxu0 %v3964
      %4000 = vmatprep.subr.bf16.mxu0 0
      %4001 = vmatpush1.bf16.msra.mxu0 %v3963
      %4002 = vmatprep.subr.bf16.mxu0 0
      %4003 = vmatpush1.bf16.msra.mxu0 %v3962
      %4004 = vmatprep.subr.bf16.mxu0 0
      %4005 = vmatpush1.bf16.msra.mxu0 %v3961
      %4006 = vmatprep.subr.bf16.mxu0 0
      %4007 = vmatpush1.bf16.msra.mxu0 %v3960
      %4008 = vmatprep.subr.bf16.mxu0 0
      %4009 = vmatpush2.bf16.msra.mxu0 %v3975
      %4010 = vmatprep.subr.bf16.mxu0 0
      %4011 = vmatpush2.bf16.msra.mxu0 %v3974
      %4012 = vmatprep.subr.bf16.mxu0 0
      %4013 = vmatpush2.bf16.msra.mxu0 %v3973
      %4014 = vmatprep.subr.bf16.mxu0 0
      %4015 = vmatpush2.bf16.msra.mxu0 %v3972
      %4016 = vmatprep.subr.bf16.mxu0 0
      %4017 = vmatpush2.bf16.msra.mxu0 %v3971
      %4018 = vmatprep.subr.bf16.mxu0 0
      %4019 = vmatpush2.bf16.msra.mxu0 %v3970
      %4020 = vmatprep.subr.bf16.mxu0 0
      %4021 = vmatpush2.bf16.msra.mxu0 %v3969
      %4022 = vmatprep.subr.bf16.mxu0 0
      %4023 = vmatpush2.bf16.msra.mxu0 %v3968
      %4024 = vmatprep.mubr.bf16.mxu0 %v3538
      %4025 = vmatmul.mubr.bf16.gmra.mxu0 %v3537
      %v4026 = vpop.f32.mrf.mxu0
      %v4027 = vadd.f32 %v3894, %v4026
      %v4028 = vpop.f32.mrf.mxu0
      %v4029 = vpop.f32.mrf.mxu0
      %v4030 = vadd.f32 %v3894, %v4029
      %v4031 = vpop.f32.mrf.mxu0
      %4032 = vmatprep.mubr.bf16.mxu0 %v3540
      %4033 = vmatmul.mubr.bf16.gmra.mxu0 %v3539
      %v4034 = vpop.f32.mrf.mxu0
      %v4035 = vadd.f32 %v3894, %v4034
      %v4036 = vpop.f32.mrf.mxu0
      %v4037 = vpop.f32.mrf.mxu0
      %v4038 = vadd.f32 %v3894, %v4037
      %v4039 = vpop.f32.mrf.mxu0
      %4040 = vmatprep.mubr.bf16.mxu0 %v3542
      %4041 = vmatmul.mubr.bf16.gmra.mxu0 %v3541
      %v4042 = vpop.f32.mrf.mxu0
      %v4043 = vadd.f32 %v3894, %v4042
      %v4044 = vpop.f32.mrf.mxu0
      %v4045 = vpop.f32.mrf.mxu0
      %v4046 = vadd.f32 %v3894, %v4045
      %v4047 = vpop.f32.mrf.mxu0
      %4048 = vmatprep.mubr.bf16.mxu0 %v3544
      %4049 = vmatmul.mubr.bf16.gmra.mxu0 %v3543
      %v4050 = vpop.f32.mrf.mxu0
      %v4051 = vadd.f32 %v3894, %v4050
      %v4052 = vpop.f32.mrf.mxu0
      %v4053 = vpop.f32.mrf.mxu0
      %v4054 = vadd.f32 %v3894, %v4053
      %v4055 = vpop.f32.mrf.mxu0
      %4056 = vmatprep.mubr.bf16.mxu0 %v3546
      %4057 = vmatmul.mubr.bf16.gmra.mxu0 %v3545
      %v4058 = vpop.f32.mrf.mxu0
      %v4059 = vadd.f32 %v3894, %v4058
      %v4060 = vpop.f32.mrf.mxu0
      %v4061 = vpop.f32.mrf.mxu0
      %v4062 = vadd.f32 %v3894, %v4061
      %v4063 = vpop.f32.mrf.mxu0
      %4064 = vmatprep.mubr.bf16.mxu0 %v3548
      %4065 = vmatmul.mubr.bf16.gmra.mxu0 %v3547
      %v4066 = vpop.f32.mrf.mxu0
      %v4067 = vadd.f32 %v3894, %v4066
      %v4068 = vpop.f32.mrf.mxu0
      %v4069 = vpop.f32.mrf.mxu0
      %v4070 = vadd.f32 %v3894, %v4069
      %v4071 = vpop.f32.mrf.mxu0
      %4072 = vmatprep.mubr.bf16.mxu0 %v3550
      %4073 = vmatmul.mubr.bf16.gmra.mxu0 %v3549
      %v4074 = vpop.f32.mrf.mxu0
      %v4075 = vadd.f32 %v3894, %v4074
      %v4076 = vpop.f32.mrf.mxu0
      %v4077 = vpop.f32.mrf.mxu0
      %v4078 = vadd.f32 %v3894, %v4077
      %v4079 = vpop.f32.mrf.mxu0
      %4080 = vmatprep.mubr.bf16.mxu0 %v3552
      %4081 = vmatmul.mubr.bf16.gmra.mxu0 %v3551
      %v4082 = vpop.f32.mrf.mxu0
      %v4083 = vadd.f32 %v3894, %v4082
      %v4084 = vpop.f32.mrf.mxu0
      %v4085 = vpop.f32.mrf.mxu0
      %v4086 = vadd.f32 %v3894, %v4085
      %v4087 = vpop.f32.mrf.mxu0
      %4088 = vdwg.mxu0
      %4089 = vmatprep.subr.bf16.mxu0 0
      %4090 = vmatpush1.bf16.msra.mxu0 %v3967
      %4091 = vmatprep.subr.bf16.mxu0 0
      %4092 = vmatpush1.bf16.msra.mxu0 %v3966
      %4093 = vmatprep.subr.bf16.mxu0 0
      %4094 = vmatpush1.bf16.msra.mxu0 %v3965
      %4095 = vmatprep.subr.bf16.mxu0 0
      %4096 = vmatpush1.bf16.msra.mxu0 %v3964
      %4097 = vmatprep.subr.bf16.mxu0 0
      %4098 = vmatpush1.bf16.msra.mxu0 %v3963
      %4099 = vmatprep.subr.bf16.mxu0 0
      %4100 = vmatpush1.bf16.msra.mxu0 %v3962
      %4101 = vmatprep.subr.bf16.mxu0 0
      %4102 = vmatpush1.bf16.msra.mxu0 %v3961
      %4103 = vmatprep.subr.bf16.mxu0 0
      %4104 = vmatpush1.bf16.msra.mxu0 %v3960
      %4105 = vmatprep.subr.bf16.mxu0 0
      %4106 = vmatpush2.bf16.msra.mxu0 %v3975
      %4107 = vmatprep.subr.bf16.mxu0 0
      %4108 = vmatpush2.bf16.msra.mxu0 %v3974
      %4109 = vmatprep.subr.bf16.mxu0 0
      %4110 = vmatpush2.bf16.msra.mxu0 %v3973
      %4111 = vmatprep.subr.bf16.mxu0 0
      %4112 = vmatpush2.bf16.msra.mxu0 %v3972
      %4113 = vmatprep.subr.bf16.mxu0 0
      %4114 = vmatpush2.bf16.msra.mxu0 %v3971
      %4115 = vmatprep.subr.bf16.mxu0 0
      %4116 = vmatpush2.bf16.msra.mxu0 %v3970
      %4117 = vmatprep.subr.bf16.mxu0 0
      %4118 = vmatpush2.bf16.msra.mxu0 %v3969
      %4119 = vmatprep.subr.bf16.mxu0 0
      %4120 = vmatpush2.bf16.msra.mxu0 %v3968
      %4121 = vmatprep.mubr.bf16.mxu0 %v3842
      %4122 = vmatmul.mubr.bf16.gmra.mxu0 %v3841
      %v4123 = vpop.f32.mrf.mxu0
      %v4124 = vadd.f32 %v3894, %v4123
      %v4125 = vpop.f32.mrf.mxu0
      %v4126 = vpop.f32.mrf.mxu0
      %v4127 = vadd.f32 %v3894, %v4126
      %v4128 = vpop.f32.mrf.mxu0
      %4129 = vmatprep.mubr.bf16.mxu0 %v3844
      %4130 = vmatmul.mubr.bf16.gmra.mxu0 %v3843
      %v4131 = vpop.f32.mrf.mxu0
      %v4132 = vadd.f32 %v3894, %v4131
      %v4133 = vpop.f32.mrf.mxu0
      %v4134 = vpop.f32.mrf.mxu0
      %v4135 = vadd.f32 %v3894, %v4134
      %v4136 = vpop.f32.mrf.mxu0
      %4137 = vmatprep.mubr.bf16.mxu0 %v3846
      %4138 = vmatmul.mubr.bf16.gmra.mxu0 %v3845
      %v4139 = vpop.f32.mrf.mxu0
      %v4140 = vadd.f32 %v3894, %v4139
      %v4141 = vpop.f32.mrf.mxu0
      %v4142 = vpop.f32.mrf.mxu0
      %v4143 = vadd.f32 %v3894, %v4142
      %v4144 = vpop.f32.mrf.mxu0
      %4145 = vmatprep.mubr.bf16.mxu0 %v3848
      %4146 = vmatmul.mubr.bf16.gmra.mxu0 %v3847
      %v4147 = vpop.f32.mrf.mxu0
      %v4148 = vadd.f32 %v3894, %v4147
      %v4149 = vpop.f32.mrf.mxu0
      %v4150 = vpop.f32.mrf.mxu0
      %v4151 = vadd.f32 %v3894, %v4150
      %v4152 = vpop.f32.mrf.mxu0
      %4153 = vmatprep.mubr.bf16.mxu0 %v3850
      %4154 = vmatmul.mubr.bf16.gmra.mxu0 %v3849
      %v4155 = vpop.f32.mrf.mxu0
      %v4156 = vadd.f32 %v3894, %v4155
      %v4157 = vpop.f32.mrf.mxu0
      %v4158 = vpop.f32.mrf.mxu0
      %v4159 = vadd.f32 %v3894, %v4158
      %v4160 = vpop.f32.mrf.mxu0
      %4161 = vmatprep.mubr.bf16.mxu0 %v3852
      %4162 = vmatmul.mubr.bf16.gmra.mxu0 %v3851
      %v4163 = vpop.f32.mrf.mxu0
      %v4164 = vadd.f32 %v3894, %v4163
      %v4165 = vpop.f32.mrf.mxu0
      %v4166 = vpop.f32.mrf.mxu0
      %v4167 = vadd.f32 %v3894, %v4166
      %v4168 = vpop.f32.mrf.mxu0
      %4169 = vmatprep.mubr.bf16.mxu0 %v3854
      %4170 = vmatmul.mubr.bf16.gmra.mxu0 %v3853
      %v4171 = vpop.f32.mrf.mxu0
      %v4172 = vadd.f32 %v3894, %v4171
      %v4173 = vpop.f32.mrf.mxu0
      %v4174 = vpop.f32.mrf.mxu0
      %v4175 = vadd.f32 %v3894, %v4174
      %v4176 = vpop.f32.mrf.mxu0
      %4177 = vmatprep.mubr.bf16.mxu0 %v3856
      %4178 = vmatmul.mubr.bf16.gmra.mxu0 %v3855
      %v4179 = vpop.f32.mrf.mxu0
      %v4180 = vadd.f32 %v3894, %v4179
      %v4181 = vpop.f32.mrf.mxu0
      %v4182 = vpop.f32.mrf.mxu0
      %v4183 = vadd.f32 %v3894, %v4182
      %v4184 = vpop.f32.mrf.mxu0
      %4185 = vdwg.mxu0
      %v4186 = vmin.f32 %v4027, 20.0
      %v4187 = vmin.f32 %v4030, 20.0
      %v4188 = vmin.f32 %v4035, 20.0
      %v4189 = vmin.f32 %v4038, 20.0
      %v4190 = vmin.f32 %v4043, 20.0
      %v4191 = vmin.f32 %v4046, 20.0
      %v4192 = vmin.f32 %v4051, 20.0
      %v4193 = vmin.f32 %v4054, 20.0
      %v4194 = vmin.f32 %v4059, 20.0
      %v4195 = vmin.f32 %v4062, 20.0
      %v4196 = vmin.f32 %v4067, 20.0
      %v4197 = vmin.f32 %v4070, 20.0
      %v4198 = vmin.f32 %v4075, 20.0
      %v4199 = vmin.f32 %v4078, 20.0
      %v4200 = vmin.f32 %v4083, 20.0
      %v4201 = vmin.f32 %v4086, 20.0
      %v4202 = vmul.f32 %v4186, 1.442695
      %v4203 = vpow.pop %v4202
      %v4204 = vmul.f32 %v4187, 1.442695
      %v4205 = vpow.pop %v4204
      %v4206 = vmul.f32 %v4188, 1.442695
      %v4207 = vpow.pop %v4206
      %v4208 = vmul.f32 %v4189, 1.442695
      %v4209 = vpow.pop %v4208
      %v4210 = vmul.f32 %v4190, 1.442695
      %v4211 = vpow.pop %v4210
      %v4212 = vmul.f32 %v4191, 1.442695
      %v4213 = vpow.pop %v4212
      %v4214 = vmul.f32 %v4192, 1.442695
      %v4215 = vpow.pop %v4214
      %v4216 = vmul.f32 %v4193, 1.442695
      %v4217 = vpow.pop %v4216
      %v4218 = vmul.f32 %v4194, 1.442695
      %v4219 = vpow.pop %v4218
      %v4220 = vmul.f32 %v4195, 1.442695
      %v4221 = vpow.pop %v4220
      %v4222 = vmul.f32 %v4196, 1.442695
      %v4223 = vpow.pop %v4222
      %v4224 = vmul.f32 %v4197, 1.442695
      %v4225 = vpow.pop %v4224
      %v4226 = vmul.f32 %v4198, 1.442695
      %v4227 = vpow.pop %v4226
      %v4228 = vmul.f32 %v4199, 1.442695
      %v4229 = vpow.pop %v4228
      %v4230 = vmul.f32 %v4200, 1.442695
      %v4231 = vpow.pop %v4230
      %v4232 = vmul.f32 %v4201, 1.442695
      %v4233 = vpow.pop %v4232
      %v4234 = vadd.f32 %v4203, 2.0
      %v4235 = vadd.f32 %v4205, 2.0
      %v4236 = vadd.f32 %v4207, 2.0
      %v4237 = vadd.f32 %v4209, 2.0
      %v4238 = vadd.f32 %v4211, 2.0
      %v4239 = vadd.f32 %v4213, 2.0
      %v4240 = vadd.f32 %v4215, 2.0
      %v4241 = vadd.f32 %v4217, 2.0
      %v4242 = vadd.f32 %v4219, 2.0
      %v4243 = vadd.f32 %v4221, 2.0
      %v4244 = vadd.f32 %v4223, 2.0
      %v4245 = vadd.f32 %v4225, 2.0
      %v4246 = vadd.f32 %v4227, 2.0
      %v4247 = vadd.f32 %v4229, 2.0
      %v4248 = vadd.f32 %v4231, 2.0
      %v4249 = vadd.f32 %v4233, 2.0
      %v4250 = vmul.f32 %v4203, %v4234
      %v4251 = vmul.f32 %v4205, %v4235
      %v4252 = vmul.f32 %v4207, %v4236
      %v4253 = vmul.f32 %v4209, %v4237
      %v4254 = vmul.f32 %v4211, %v4238
      %v4255 = vmul.f32 %v4213, %v4239
      %v4256 = vmul.f32 %v4215, %v4240
      %v4257 = vmul.f32 %v4217, %v4241
      %v4258 = vmul.f32 %v4219, %v4242
      %v4259 = vmul.f32 %v4221, %v4243
      %v4260 = vmul.f32 %v4223, %v4244
      %v4261 = vmul.f32 %v4225, %v4245
      %v4262 = vmul.f32 %v4227, %v4246
      %v4263 = vmul.f32 %v4229, %v4247
      %v4264 = vmul.f32 %v4231, %v4248
      %v4265 = vmul.f32 %v4233, %v4249
      %v4266 = vadd.f32 %v4250, 2.0
      %v4267 = vadd.f32 %v4251, 2.0
      %v4268 = vadd.f32 %v4252, 2.0
      %v4269 = vadd.f32 %v4253, 2.0
      %v4270 = vadd.f32 %v4254, 2.0
      %v4271 = vadd.f32 %v4255, 2.0
      %v4272 = vadd.f32 %v4256, 2.0
      %v4273 = vadd.f32 %v4257, 2.0
      %v4274 = vadd.f32 %v4258, 2.0
      %v4275 = vadd.f32 %v4259, 2.0
      %v4276 = vadd.f32 %v4260, 2.0
      %v4277 = vadd.f32 %v4261, 2.0
      %v4278 = vadd.f32 %v4262, 2.0
      %v4279 = vadd.f32 %v4263, 2.0
      %v4280 = vadd.f32 %v4264, 2.0
      %v4281 = vadd.f32 %v4265, 2.0
      %v4282 = vrcp.pop %v4266
      %v4283 = vrcp.pop %v4267
      %v4284 = vrcp.pop %v4268
      %v4285 = vrcp.pop %v4269
      %v4286 = vrcp.pop %v4270
      %v4287 = vrcp.pop %v4271
      %v4288 = vrcp.pop %v4272
      %v4289 = vrcp.pop %v4273
      %v4290 = vrcp.pop %v4274
      %v4291 = vrcp.pop %v4275
      %v4292 = vrcp.pop %v4276
      %v4293 = vrcp.pop %v4277
      %v4294 = vrcp.pop %v4278
      %v4295 = vrcp.pop %v4279
      %v4296 = vrcp.pop %v4280
      %v4297 = vrcp.pop %v4281
      %v4298 = vmul.f32 %v4250, %v4282
      %v4299 = vmul.f32 %v4251, %v4283
      %v4300 = vmul.f32 %v4252, %v4284
      %v4301 = vmul.f32 %v4253, %v4285
      %v4302 = vmul.f32 %v4254, %v4286
      %v4303 = vmul.f32 %v4255, %v4287
      %v4304 = vmul.f32 %v4256, %v4288
      %v4305 = vmul.f32 %v4257, %v4289
      %v4306 = vmul.f32 %v4258, %v4290
      %v4307 = vmul.f32 %v4259, %v4291
      %v4308 = vmul.f32 %v4260, %v4292
      %v4309 = vmul.f32 %v4261, %v4293
      %v4310 = vmul.f32 %v4262, %v4294
      %v4311 = vmul.f32 %v4263, %v4295
      %v4312 = vmul.f32 %v4264, %v4296
      %v4313 = vmul.f32 %v4265, %v4297
      %v4314 = vmul.f32 %v4027, %v4298
      %v4315 = vmul.f32 %v4030, %v4299
      %v4316 = vmul.f32 %v4035, %v4300
      %v4317 = vmul.f32 %v4038, %v4301
      %v4318 = vmul.f32 %v4043, %v4302
      %v4319 = vmul.f32 %v4046, %v4303
      %v4320 = vmul.f32 %v4051, %v4304
      %v4321 = vmul.f32 %v4054, %v4305
      %v4322 = vmul.f32 %v4059, %v4306
      %v4323 = vmul.f32 %v4062, %v4307
      %v4324 = vmul.f32 %v4067, %v4308
      %v4325 = vmul.f32 %v4070, %v4309
      %v4326 = vmul.f32 %v4075, %v4310
      %v4327 = vmul.f32 %v4078, %v4311
      %v4328 = vmul.f32 %v4083, %v4312
      %v4329 = vmul.f32 %v4086, %v4313
      %v4330 = vpack.c.bf16 %v4315, %v4314
      %v4331 = vpack.c.bf16 %v4317, %v4316
      %v4332 = vpack.c.bf16 %v4319, %v4318
      %v4333 = vpack.c.bf16 %v4321, %v4320
      %v4334 = vpack.c.bf16 %v4323, %v4322
      %v4335 = vpack.c.bf16 %v4325, %v4324
      %v4336 = vpack.c.bf16 %v4327, %v4326
      %v4337 = vpack.c.bf16 %v4329, %v4328
      %v4338 = vmin.f32 %v4124, 20.0
      %v4339 = vmin.f32 %v4127, 20.0
      %v4340 = vmin.f32 %v4132, 20.0
      %v4341 = vmin.f32 %v4135, 20.0
      %v4342 = vmin.f32 %v4140, 20.0
      %v4343 = vmin.f32 %v4143, 20.0
      %v4344 = vmin.f32 %v4148, 20.0
      %v4345 = vmin.f32 %v4151, 20.0
      %v4346 = vmin.f32 %v4156, 20.0
      %v4347 = vmin.f32 %v4159, 20.0
      %v4348 = vmin.f32 %v4164, 20.0
      %v4349 = vmin.f32 %v4167, 20.0
      %v4350 = vmin.f32 %v4172, 20.0
      %v4351 = vmin.f32 %v4175, 20.0
      %v4352 = vmin.f32 %v4180, 20.0
      %v4353 = vmin.f32 %v4183, 20.0
      %v4354 = vmul.f32 %v4338, 1.442695
      %v4355 = vpow.pop %v4354
      %v4356 = vmul.f32 %v4339, 1.442695
      %v4357 = vpow.pop %v4356
      %v4358 = vmul.f32 %v4340, 1.442695
      %v4359 = vpow.pop %v4358
      %v4360 = vmul.f32 %v4341, 1.442695
      %v4361 = vpow.pop %v4360
      %v4362 = vmul.f32 %v4342, 1.442695
      %v4363 = vpow.pop %v4362
      %v4364 = vmul.f32 %v4343, 1.442695
      %v4365 = vpow.pop %v4364
      %v4366 = vmul.f32 %v4344, 1.442695
      %v4367 = vpow.pop %v4366
      %v4368 = vmul.f32 %v4345, 1.442695
      %v4369 = vpow.pop %v4368
      %v4370 = vmul.f32 %v4346, 1.442695
      %v4371 = vpow.pop %v4370
      %v4372 = vmul.f32 %v4347, 1.442695
      %v4373 = vpow.pop %v4372
      %v4374 = vmul.f32 %v4348, 1.442695
      %v4375 = vpow.pop %v4374
      %v4376 = vmul.f32 %v4349, 1.442695
      %v4377 = vpow.pop %v4376
      %v4378 = vmul.f32 %v4350, 1.442695
      %v4379 = vpow.pop %v4378
      %v4380 = vmul.f32 %v4351, 1.442695
      %v4381 = vpow.pop %v4380
      %v4382 = vmul.f32 %v4352, 1.442695
      %v4383 = vpow.pop %v4382
      %v4384 = vmul.f32 %v4353, 1.442695
      %v4385 = vpow.pop %v4384
      %v4386 = vadd.f32 %v4355, 2.0
      %v4387 = vadd.f32 %v4357, 2.0
      %v4388 = vadd.f32 %v4359, 2.0
      %v4389 = vadd.f32 %v4361, 2.0
      %v4390 = vadd.f32 %v4363, 2.0
      %v4391 = vadd.f32 %v4365, 2.0
      %v4392 = vadd.f32 %v4367, 2.0
      %v4393 = vadd.f32 %v4369, 2.0
      %v4394 = vadd.f32 %v4371, 2.0
      %v4395 = vadd.f32 %v4373, 2.0
      %v4396 = vadd.f32 %v4375, 2.0
      %v4397 = vadd.f32 %v4377, 2.0
      %v4398 = vadd.f32 %v4379, 2.0
      %v4399 = vadd.f32 %v4381, 2.0
      %v4400 = vadd.f32 %v4383, 2.0
      %v4401 = vadd.f32 %v4385, 2.0
      %v4402 = vmul.f32 %v4355, %v4386
      %v4403 = vmul.f32 %v4357, %v4387
      %v4404 = vmul.f32 %v4359, %v4388
      %v4405 = vmul.f32 %v4361, %v4389
      %v4406 = vmul.f32 %v4363, %v4390
      %v4407 = vmul.f32 %v4365, %v4391
      %v4408 = vmul.f32 %v4367, %v4392
      %v4409 = vmul.f32 %v4369, %v4393
      %v4410 = vmul.f32 %v4371, %v4394
      %v4411 = vmul.f32 %v4373, %v4395
      %v4412 = vmul.f32 %v4375, %v4396
      %v4413 = vmul.f32 %v4377, %v4397
      %v4414 = vmul.f32 %v4379, %v4398
      %v4415 = vmul.f32 %v4381, %v4399
      %v4416 = vmul.f32 %v4383, %v4400
      %v4417 = vmul.f32 %v4385, %v4401
      %v4418 = vadd.f32 %v4402, 2.0
      %v4419 = vadd.f32 %v4403, 2.0
      %v4420 = vadd.f32 %v4404, 2.0
      %v4421 = vadd.f32 %v4405, 2.0
      %v4422 = vadd.f32 %v4406, 2.0
      %v4423 = vadd.f32 %v4407, 2.0
      %v4424 = vadd.f32 %v4408, 2.0
      %v4425 = vadd.f32 %v4409, 2.0
      %v4426 = vadd.f32 %v4410, 2.0
      %v4427 = vadd.f32 %v4411, 2.0
      %v4428 = vadd.f32 %v4412, 2.0
      %v4429 = vadd.f32 %v4413, 2.0
      %v4430 = vadd.f32 %v4414, 2.0
      %v4431 = vadd.f32 %v4415, 2.0
      %v4432 = vadd.f32 %v4416, 2.0
      %v4433 = vadd.f32 %v4417, 2.0
      %v4434 = vrcp.pop %v4418
      %v4435 = vrcp.pop %v4419
      %v4436 = vrcp.pop %v4420
      %v4437 = vrcp.pop %v4421
      %v4438 = vrcp.pop %v4422
      %v4439 = vrcp.pop %v4423
      %v4440 = vrcp.pop %v4424
      %v4441 = vrcp.pop %v4425
      %v4442 = vrcp.pop %v4426
      %v4443 = vrcp.pop %v4427
      %v4444 = vrcp.pop %v4428
      %v4445 = vrcp.pop %v4429
      %v4446 = vrcp.pop %v4430
      %v4447 = vrcp.pop %v4431
      %v4448 = vrcp.pop %v4432
      %v4449 = vrcp.pop %v4433
      %v4450 = vmul.f32 %v4402, %v4434
      %v4451 = vmul.f32 %v4403, %v4435
      %v4452 = vmul.f32 %v4404, %v4436
      %v4453 = vmul.f32 %v4405, %v4437
      %v4454 = vmul.f32 %v4406, %v4438
      %v4455 = vmul.f32 %v4407, %v4439
      %v4456 = vmul.f32 %v4408, %v4440
      %v4457 = vmul.f32 %v4409, %v4441
      %v4458 = vmul.f32 %v4410, %v4442
      %v4459 = vmul.f32 %v4411, %v4443
      %v4460 = vmul.f32 %v4412, %v4444
      %v4461 = vmul.f32 %v4413, %v4445
      %v4462 = vmul.f32 %v4414, %v4446
      %v4463 = vmul.f32 %v4415, %v4447
      %v4464 = vmul.f32 %v4416, %v4448
      %v4465 = vmul.f32 %v4417, %v4449
      %v4466 = vmul.f32 %v4124, %v4450
      %v4467 = vmul.f32 %v4127, %v4451
      %v4468 = vmul.f32 %v4132, %v4452
      %v4469 = vmul.f32 %v4135, %v4453
      %v4470 = vmul.f32 %v4140, %v4454
      %v4471 = vmul.f32 %v4143, %v4455
      %v4472 = vmul.f32 %v4148, %v4456
      %v4473 = vmul.f32 %v4151, %v4457
      %v4474 = vmul.f32 %v4156, %v4458
      %v4475 = vmul.f32 %v4159, %v4459
      %v4476 = vmul.f32 %v4164, %v4460
      %v4477 = vmul.f32 %v4167, %v4461
      %v4478 = vmul.f32 %v4172, %v4462
      %v4479 = vmul.f32 %v4175, %v4463
      %v4480 = vmul.f32 %v4180, %v4464
      %v4481 = vmul.f32 %v4183, %v4465
      %v4482 = vpack.c.bf16 %v4467, %v4466
      %v4483 = vpack.c.bf16 %v4469, %v4468
      %v4484 = vpack.c.bf16 %v4471, %v4470
      %v4485 = vpack.c.bf16 %v4473, %v4472
      %v4486 = vpack.c.bf16 %v4475, %v4474
      %v4487 = vpack.c.bf16 %v4477, %v4476
      %v4488 = vpack.c.bf16 %v4479, %v4478
      %v4489 = vpack.c.bf16 %v4481, %v4480
      %v4490 = vld [vmem:[%s7] sm:$0xf]
      %v4491 = vld [vmem:[%s7 + $0x4] sm:$0xf]
      %v4492 = vld [vmem:[%s7 + $0x8] sm:$0xf]
      %v4493 = vld [vmem:[%s7 + $0xc] sm:$0xf]
      %v4494 = vld [vmem:[%s7 + $0x10] sm:$0xf]
      %v4495 = vld [vmem:[%s7 + $0x14] sm:$0xf]
      %v4496 = vld [vmem:[%s7 + $0x18] sm:$0xf]
      %v4497 = vld [vmem:[%s7 + $0x1c] sm:$0xf]
      %v4498 = vld [vmem:[%s7 + $0x20] sm:$0xf]
      %v4499 = vld [vmem:[%s7 + $0x24] sm:$0xf]
      %v4500 = vld [vmem:[%s7 + $0x28] sm:$0xf]
      %v4501 = vld [vmem:[%s7 + $0x2c] sm:$0xf]
      %v4502 = vld [vmem:[%s7 + $0x30] sm:$0xf]
      %v4503 = vld [vmem:[%s7 + $0x34] sm:$0xf]
      %v4504 = vld [vmem:[%s7 + $0x38] sm:$0xf]
      %v4505 = vld [vmem:[%s7 + $0x3c] sm:$0xf]
      %v4506 = vld [vmem:[%s8] sm:$0x1]
      %v4508 = vlaneseq
      %v4509 = vshrl.u32 %v4508, 7
      %v4510 = vsub.s32 0, %v4509
      %v4511 = vrot.slane %v4506, %v4510
      %v4529 = vunpack.c.l.b16 %v4490
      %v4530 = vunpack.c.l.b16 %v4491
      %v4531 = vunpack.c.l.b16 %v4492
      %v4532 = vunpack.c.l.b16 %v4493
      %v4533 = vunpack.c.l.b16 %v4494
      %v4534 = vunpack.c.l.b16 %v4495
      %v4535 = vunpack.c.l.b16 %v4496
      %v4536 = vunpack.c.l.b16 %v4497
      %v4537 = vunpack.c.l.b16 %v4498
      %v4538 = vunpack.c.l.b16 %v4499
      %v4539 = vunpack.c.l.b16 %v4500
      %v4540 = vunpack.c.l.b16 %v4501
      %v4541 = vunpack.c.l.b16 %v4502
      %v4542 = vunpack.c.l.b16 %v4503
      %v4543 = vunpack.c.l.b16 %v4504
      %v4544 = vunpack.c.l.b16 %v4505
      %v4545 = vpack.c.b16 %v4530, %v4529
      %v4546 = vpack.c.b16 %v4532, %v4531
      %v4547 = vpack.c.b16 %v4534, %v4533
      %v4548 = vpack.c.b16 %v4536, %v4535
      %v4549 = vpack.c.b16 %v4538, %v4537
      %v4550 = vpack.c.b16 %v4540, %v4539
      %v4551 = vpack.c.b16 %v4542, %v4541
      %v4552 = vpack.c.b16 %v4544, %v4543
      %4561 = vmatprep.subr.bf16.mxu0 0
      %4562 = vmatpush1.bf16.msra.mxu0 %v4552
      %4563 = vmatprep.subr.bf16.mxu0 0
      %4564 = vmatpush1.bf16.msra.mxu0 %v4551
      %4565 = vmatprep.subr.bf16.mxu0 0
      %4566 = vmatpush1.bf16.msra.mxu0 %v4550
      %4567 = vmatprep.subr.bf16.mxu0 0
      %4568 = vmatpush1.bf16.msra.mxu0 %v4549
      %4569 = vmatprep.subr.bf16.mxu0 0
      %4570 = vmatpush1.bf16.msra.mxu0 %v4548
      %4571 = vmatprep.subr.bf16.mxu0 0
      %4572 = vmatpush1.bf16.msra.mxu0 %v4547
      %4573 = vmatprep.subr.bf16.mxu0 0
      %4574 = vmatpush1.bf16.msra.mxu0 %v4546
      %4575 = vmatprep.subr.bf16.mxu0 0
      %4576 = vmatpush1.bf16.msra.mxu0 %v4545
      %4577 = vmatprep.subr.bf16.mxu0 0
      %4578 = vmatpush2.bf16.msra.mxu0 0
      %4579 = vmatprep.subr.bf16.mxu0 0
      %4580 = vmatpush2.bf16.msra.mxu0 0
      %4581 = vmatprep.subr.bf16.mxu0 0
      %4582 = vmatpush2.bf16.msra.mxu0 0
      %4583 = vmatprep.subr.bf16.mxu0 0
      %4584 = vmatpush2.bf16.msra.mxu0 0
      %4585 = vmatprep.subr.bf16.mxu0 0
      %4586 = vmatpush2.bf16.msra.mxu0 0
      %4587 = vmatprep.subr.bf16.mxu0 0
      %4588 = vmatpush2.bf16.msra.mxu0 0
      %4589 = vmatprep.subr.bf16.mxu0 0
      %4590 = vmatpush2.bf16.msra.mxu0 0
      %4591 = vmatprep.subr.bf16.mxu0 0
      %4592 = vmatpush2.bf16.msra.mxu0 0
      %4593 = vmatprep.mubr.bf16.mxu0 0
      %4594 = vmatmul.mubr.bf16.gmra.mxu0 %v4330
      %v4595 = vpop.f32.mrf.mxu0
      %v4596 = vadd.f32 %v4511, %v4595
      %v4597 = vpop.f32.mrf.mxu0
      %v4598 = vpop.f32.mrf.mxu0
      %v4599 = vadd.f32 %v4511, %v4598
      %v4600 = vpop.f32.mrf.mxu0
      %4601 = vmatprep.mubr.bf16.mxu0 0
      %4602 = vmatmul.mubr.bf16.gmra.mxu0 %v4331
      %v4603 = vpop.f32.mrf.mxu0
      %v4604 = vadd.f32 %v4511, %v4603
      %v4605 = vpop.f32.mrf.mxu0
      %v4606 = vpop.f32.mrf.mxu0
      %v4607 = vadd.f32 %v4511, %v4606
      %v4608 = vpop.f32.mrf.mxu0
      %4609 = vmatprep.mubr.bf16.mxu0 0
      %4610 = vmatmul.mubr.bf16.gmra.mxu0 %v4332
      %v4611 = vpop.f32.mrf.mxu0
      %v4612 = vadd.f32 %v4511, %v4611
      %v4613 = vpop.f32.mrf.mxu0
      %v4614 = vpop.f32.mrf.mxu0
      %v4615 = vadd.f32 %v4511, %v4614
      %v4616 = vpop.f32.mrf.mxu0
      %4617 = vmatprep.mubr.bf16.mxu0 0
      %4618 = vmatmul.mubr.bf16.gmra.mxu0 %v4333
      %v4619 = vpop.f32.mrf.mxu0
      %v4620 = vadd.f32 %v4511, %v4619
      %v4621 = vpop.f32.mrf.mxu0
      %v4622 = vpop.f32.mrf.mxu0
      %v4623 = vadd.f32 %v4511, %v4622
      %v4624 = vpop.f32.mrf.mxu0
      %4625 = vmatprep.mubr.bf16.mxu0 0
      %4626 = vmatmul.mubr.bf16.gmra.mxu0 %v4334
      %v4627 = vpop.f32.mrf.mxu0
      %v4628 = vadd.f32 %v4511, %v4627
      %v4629 = vpop.f32.mrf.mxu0
      %v4630 = vpop.f32.mrf.mxu0
      %v4631 = vadd.f32 %v4511, %v4630
      %v4632 = vpop.f32.mrf.mxu0
      %4633 = vmatprep.mubr.bf16.mxu0 0
      %4634 = vmatmul.mubr.bf16.gmra.mxu0 %v4335
      %v4635 = vpop.f32.mrf.mxu0
      %v4636 = vadd.f32 %v4511, %v4635
      %v4637 = vpop.f32.mrf.mxu0
      %v4638 = vpop.f32.mrf.mxu0
      %v4639 = vadd.f32 %v4511, %v4638
      %v4640 = vpop.f32.mrf.mxu0
      %4641 = vmatprep.mubr.bf16.mxu0 0
      %4642 = vmatmul.mubr.bf16.gmra.mxu0 %v4336
      %v4643 = vpop.f32.mrf.mxu0
      %v4644 = vadd.f32 %v4511, %v4643
      %v4645 = vpop.f32.mrf.mxu0
      %v4646 = vpop.f32.mrf.mxu0
      %v4647 = vadd.f32 %v4511, %v4646
      %v4648 = vpop.f32.mrf.mxu0
      %4649 = vmatprep.mubr.bf16.mxu0 0
      %4650 = vmatmul.mubr.bf16.gmra.mxu0 %v4337
      %v4651 = vpop.f32.mrf.mxu0
      %v4652 = vadd.f32 %v4511, %v4651
      %v4653 = vpop.f32.mrf.mxu0
      %v4654 = vpop.f32.mrf.mxu0
      %v4655 = vadd.f32 %v4511, %v4654
      %v4656 = vpop.f32.mrf.mxu0
      %4657 = vdwg.mxu0
      %4658 = vmatprep.subr.bf16.mxu0 0
      %4659 = vmatpush1.bf16.msra.mxu0 %v4552
      %4660 = vmatprep.subr.bf16.mxu0 0
      %4661 = vmatpush1.bf16.msra.mxu0 %v4551
      %4662 = vmatprep.subr.bf16.mxu0 0
      %4663 = vmatpush1.bf16.msra.mxu0 %v4550
      %4664 = vmatprep.subr.bf16.mxu0 0
      %4665 = vmatpush1.bf16.msra.mxu0 %v4549
      %4666 = vmatprep.subr.bf16.mxu0 0
      %4667 = vmatpush1.bf16.msra.mxu0 %v4548
      %4668 = vmatprep.subr.bf16.mxu0 0
      %4669 = vmatpush1.bf16.msra.mxu0 %v4547
      %4670 = vmatprep.subr.bf16.mxu0 0
      %4671 = vmatpush1.bf16.msra.mxu0 %v4546
      %4672 = vmatprep.subr.bf16.mxu0 0
      %4673 = vmatpush1.bf16.msra.mxu0 %v4545
      %4674 = vmatprep.subr.bf16.mxu0 0
      %4675 = vmatpush2.bf16.msra.mxu0 0
      %4676 = vmatprep.subr.bf16.mxu0 0
      %4677 = vmatpush2.bf16.msra.mxu0 0
      %4678 = vmatprep.subr.bf16.mxu0 0
      %4679 = vmatpush2.bf16.msra.mxu0 0
      %4680 = vmatprep.subr.bf16.mxu0 0
      %4681 = vmatpush2.bf16.msra.mxu0 0
      %4682 = vmatprep.subr.bf16.mxu0 0
      %4683 = vmatpush2.bf16.msra.mxu0 0
      %4684 = vmatprep.subr.bf16.mxu0 0
      %4685 = vmatpush2.bf16.msra.mxu0 0
      %4686 = vmatprep.subr.bf16.mxu0 0
      %4687 = vmatpush2.bf16.msra.mxu0 0
      %4688 = vmatprep.subr.bf16.mxu0 0
      %4689 = vmatpush2.bf16.msra.mxu0 0
      %4690 = vmatprep.mubr.bf16.mxu0 0
      %4691 = vmatmul.mubr.bf16.gmra.mxu0 %v4482
      %v4692 = vpop.f32.mrf.mxu0
      %v4693 = vadd.f32 %v4511, %v4692
      %v4694 = vpop.f32.mrf.mxu0
      %v4695 = vpop.f32.mrf.mxu0
      %v4696 = vadd.f32 %v4511, %v4695
      %v4697 = vpop.f32.mrf.mxu0
      %4698 = vmatprep.mubr.bf16.mxu0 0
      %4699 = vmatmul.mubr.bf16.gmra.mxu0 %v4483
      %v4700 = vpop.f32.mrf.mxu0
      %v4701 = vadd.f32 %v4511, %v4700
      %v4702 = vpop.f32.mrf.mxu0
      %v4703 = vpop.f32.mrf.mxu0
      %v4704 = vadd.f32 %v4511, %v4703
      %v4705 = vpop.f32.mrf.mxu0
      %4706 = vmatprep.mubr.bf16.mxu0 0
      %4707 = vmatmul.mubr.bf16.gmra.mxu0 %v4484
      %v4708 = vpop.f32.mrf.mxu0
      %v4709 = vadd.f32 %v4511, %v4708
      %v4710 = vpop.f32.mrf.mxu0
      %v4711 = vpop.f32.mrf.mxu0
      %v4712 = vadd.f32 %v4511, %v4711
      %v4713 = vpop.f32.mrf.mxu0
      %4714 = vmatprep.mubr.bf16.mxu0 0
      %4715 = vmatmul.mubr.bf16.gmra.mxu0 %v4485
      %v4716 = vpop.f32.mrf.mxu0
      %v4717 = vadd.f32 %v4511, %v4716
      %v4718 = vpop.f32.mrf.mxu0
      %v4719 = vpop.f32.mrf.mxu0
      %v4720 = vadd.f32 %v4511, %v4719
      %v4721 = vpop.f32.mrf.mxu0
      %4722 = vmatprep.mubr.bf16.mxu0 0
      %4723 = vmatmul.mubr.bf16.gmra.mxu0 %v4486
      %v4724 = vpop.f32.mrf.mxu0
      %v4725 = vadd.f32 %v4511, %v4724
      %v4726 = vpop.f32.mrf.mxu0
      %v4727 = vpop.f32.mrf.mxu0
      %v4728 = vadd.f32 %v4511, %v4727
      %v4729 = vpop.f32.mrf.mxu0
      %4730 = vmatprep.mubr.bf16.mxu0 0
      %4731 = vmatmul.mubr.bf16.gmra.mxu0 %v4487
      %v4732 = vpop.f32.mrf.mxu0
      %v4733 = vadd.f32 %v4511, %v4732
      %v4734 = vpop.f32.mrf.mxu0
      %v4735 = vpop.f32.mrf.mxu0
      %v4736 = vadd.f32 %v4511, %v4735
      %v4737 = vpop.f32.mrf.mxu0
      %4738 = vmatprep.mubr.bf16.mxu0 0
      %4739 = vmatmul.mubr.bf16.gmra.mxu0 %v4488
      %v4740 = vpop.f32.mrf.mxu0
      %v4741 = vadd.f32 %v4511, %v4740
      %v4742 = vpop.f32.mrf.mxu0
      %v4743 = vpop.f32.mrf.mxu0
      %v4744 = vadd.f32 %v4511, %v4743
      %v4745 = vpop.f32.mrf.mxu0
      %4746 = vmatprep.mubr.bf16.mxu0 0
      %4747 = vmatmul.mubr.bf16.gmra.mxu0 %v4489
      %v4748 = vpop.f32.mrf.mxu0
      %v4749 = vadd.f32 %v4511, %v4748
      %v4750 = vpop.f32.mrf.mxu0
      %v4751 = vpop.f32.mrf.mxu0
      %v4752 = vadd.f32 %v4511, %v4751
      %v4753 = vpop.f32.mrf.mxu0
      %4754 = vdwg.mxu0
      %v4755 = vmin.f32 %v4596, 20.0
      %v4756 = vmin.f32 %v4599, 20.0
      %v4757 = vmin.f32 %v4604, 20.0
      %v4758 = vmin.f32 %v4607, 20.0
      %v4759 = vmin.f32 %v4612, 20.0
      %v4760 = vmin.f32 %v4615, 20.0
      %v4761 = vmin.f32 %v4620, 20.0
      %v4762 = vmin.f32 %v4623, 20.0
      %v4763 = vmin.f32 %v4628, 20.0
      %v4764 = vmin.f32 %v4631, 20.0
      %v4765 = vmin.f32 %v4636, 20.0
      %v4766 = vmin.f32 %v4639, 20.0
      %v4767 = vmin.f32 %v4644, 20.0
      %v4768 = vmin.f32 %v4647, 20.0
      %v4769 = vmin.f32 %v4652, 20.0
      %v4770 = vmin.f32 %v4655, 20.0
      %v4771 = vmul.f32 %v4755, 1.442695
      %v4772 = vpow.pop %v4771
      %v4773 = vmul.f32 %v4756, 1.442695
      %v4774 = vpow.pop %v4773
      %v4775 = vmul.f32 %v4757, 1.442695
      %v4776 = vpow.pop %v4775
      %v4777 = vmul.f32 %v4758, 1.442695
      %v4778 = vpow.pop %v4777
      %v4779 = vmul.f32 %v4759, 1.442695
      %v4780 = vpow.pop %v4779
      %v4781 = vmul.f32 %v4760, 1.442695
      %v4782 = vpow.pop %v4781
      %v4783 = vmul.f32 %v4761, 1.442695
      %v4784 = vpow.pop %v4783
      %v4785 = vmul.f32 %v4762, 1.442695
      %v4786 = vpow.pop %v4785
      %v4787 = vmul.f32 %v4763, 1.442695
      %v4788 = vpow.pop %v4787
      %v4789 = vmul.f32 %v4764, 1.442695
      %v4790 = vpow.pop %v4789
      %v4791 = vmul.f32 %v4765, 1.442695
      %v4792 = vpow.pop %v4791
      %v4793 = vmul.f32 %v4766, 1.442695
      %v4794 = vpow.pop %v4793
      %v4795 = vmul.f32 %v4767, 1.442695
      %v4796 = vpow.pop %v4795
      %v4797 = vmul.f32 %v4768, 1.442695
      %v4798 = vpow.pop %v4797
      %v4799 = vmul.f32 %v4769, 1.442695
      %v4800 = vpow.pop %v4799
      %v4801 = vmul.f32 %v4770, 1.442695
      %v4802 = vpow.pop %v4801
      %v4803 = vadd.f32 %v4772, 2.0
      %v4804 = vadd.f32 %v4774, 2.0
      %v4805 = vadd.f32 %v4776, 2.0
      %v4806 = vadd.f32 %v4778, 2.0
      %v4807 = vadd.f32 %v4780, 2.0
      %v4808 = vadd.f32 %v4782, 2.0
      %v4809 = vadd.f32 %v4784, 2.0
      %v4810 = vadd.f32 %v4786, 2.0
      %v4811 = vadd.f32 %v4788, 2.0
      %v4812 = vadd.f32 %v4790, 2.0
      %v4813 = vadd.f32 %v4792, 2.0
      %v4814 = vadd.f32 %v4794, 2.0
      %v4815 = vadd.f32 %v4796, 2.0
      %v4816 = vadd.f32 %v4798, 2.0
      %v4817 = vadd.f32 %v4800, 2.0
      %v4818 = vadd.f32 %v4802, 2.0
      %v4819 = vmul.f32 %v4772, %v4803
      %v4820 = vmul.f32 %v4774, %v4804
      %v4821 = vmul.f32 %v4776, %v4805
      %v4822 = vmul.f32 %v4778, %v4806
      %v4823 = vmul.f32 %v4780, %v4807
      %v4824 = vmul.f32 %v4782, %v4808
      %v4825 = vmul.f32 %v4784, %v4809
      %v4826 = vmul.f32 %v4786, %v4810
      %v4827 = vmul.f32 %v4788, %v4811
      %v4828 = vmul.f32 %v4790, %v4812
      %v4829 = vmul.f32 %v4792, %v4813
      %v4830 = vmul.f32 %v4794, %v4814
      %v4831 = vmul.f32 %v4796, %v4815
      %v4832 = vmul.f32 %v4798, %v4816
      %v4833 = vmul.f32 %v4800, %v4817
      %v4834 = vmul.f32 %v4802, %v4818
      %v4835 = vadd.f32 %v4819, 2.0
      %v4836 = vadd.f32 %v4820, 2.0
      %v4837 = vadd.f32 %v4821, 2.0
      %v4838 = vadd.f32 %v4822, 2.0
      %v4839 = vadd.f32 %v4823, 2.0
      %v4840 = vadd.f32 %v4824, 2.0
      %v4841 = vadd.f32 %v4825, 2.0
      %v4842 = vadd.f32 %v4826, 2.0
      %v4843 = vadd.f32 %v4827, 2.0
      %v4844 = vadd.f32 %v4828, 2.0
      %v4845 = vadd.f32 %v4829, 2.0
      %v4846 = vadd.f32 %v4830, 2.0
      %v4847 = vadd.f32 %v4831, 2.0
      %v4848 = vadd.f32 %v4832, 2.0
      %v4849 = vadd.f32 %v4833, 2.0
      %v4850 = vadd.f32 %v4834, 2.0
      %v4851 = vrcp.pop %v4835
      %v4852 = vrcp.pop %v4836
      %v4853 = vrcp.pop %v4837
      %v4854 = vrcp.pop %v4838
      %v4855 = vrcp.pop %v4839
      %v4856 = vrcp.pop %v4840
      %v4857 = vrcp.pop %v4841
      %v4858 = vrcp.pop %v4842
      %v4859 = vrcp.pop %v4843
      %v4860 = vrcp.pop %v4844
      %v4861 = vrcp.pop %v4845
      %v4862 = vrcp.pop %v4846
      %v4863 = vrcp.pop %v4847
      %v4864 = vrcp.pop %v4848
      %v4865 = vrcp.pop %v4849
      %v4866 = vrcp.pop %v4850
      %v4867 = vmul.f32 %v4819, %v4851
      %v4868 = vmul.f32 %v4820, %v4852
      %v4869 = vmul.f32 %v4821, %v4853
      %v4870 = vmul.f32 %v4822, %v4854
      %v4871 = vmul.f32 %v4823, %v4855
      %v4872 = vmul.f32 %v4824, %v4856
      %v4873 = vmul.f32 %v4825, %v4857
      %v4874 = vmul.f32 %v4826, %v4858
      %v4875 = vmul.f32 %v4827, %v4859
      %v4876 = vmul.f32 %v4828, %v4860
      %v4877 = vmul.f32 %v4829, %v4861
      %v4878 = vmul.f32 %v4830, %v4862
      %v4879 = vmul.f32 %v4831, %v4863
      %v4880 = vmul.f32 %v4832, %v4864
      %v4881 = vmul.f32 %v4833, %v4865
      %v4882 = vmul.f32 %v4834, %v4866
      %v4883 = vmul.f32 %v4596, %v4867
      %v4884 = vmul.f32 %v4599, %v4868
      %v4885 = vmul.f32 %v4604, %v4869
      %v4886 = vmul.f32 %v4607, %v4870
      %v4887 = vmul.f32 %v4612, %v4871
      %v4888 = vmul.f32 %v4615, %v4872
      %v4889 = vmul.f32 %v4620, %v4873
      %v4890 = vmul.f32 %v4623, %v4874
      %v4891 = vmul.f32 %v4628, %v4875
      %v4892 = vmul.f32 %v4631, %v4876
      %v4893 = vmul.f32 %v4636, %v4877
      %v4894 = vmul.f32 %v4639, %v4878
      %v4895 = vmul.f32 %v4644, %v4879
      %v4896 = vmul.f32 %v4647, %v4880
      %v4897 = vmul.f32 %v4652, %v4881
      %v4898 = vmul.f32 %v4655, %v4882
      %v4899 = vpack.c.bf16 %v4884, %v4883
      %v4900 = vpack.c.bf16 %v4886, %v4885
      %v4901 = vpack.c.bf16 %v4888, %v4887
      %v4902 = vpack.c.bf16 %v4890, %v4889
      %v4903 = vpack.c.bf16 %v4892, %v4891
      %v4904 = vpack.c.bf16 %v4894, %v4893
      %v4905 = vpack.c.bf16 %v4896, %v4895
      %v4906 = vpack.c.bf16 %v4898, %v4897
      %v4907 = vmin.f32 %v4693, 20.0
      %v4908 = vmin.f32 %v4696, 20.0
      %v4909 = vmin.f32 %v4701, 20.0
      %v4910 = vmin.f32 %v4704, 20.0
      %v4911 = vmin.f32 %v4709, 20.0
      %v4912 = vmin.f32 %v4712, 20.0
      %v4913 = vmin.f32 %v4717, 20.0
      %v4914 = vmin.f32 %v4720, 20.0
      %v4915 = vmin.f32 %v4725, 20.0
      %v4916 = vmin.f32 %v4728, 20.0
      %v4917 = vmin.f32 %v4733, 20.0
      %v4918 = vmin.f32 %v4736, 20.0
      %v4919 = vmin.f32 %v4741, 20.0
      %v4920 = vmin.f32 %v4744, 20.0
      %v4921 = vmin.f32 %v4749, 20.0
      %v4922 = vmin.f32 %v4752, 20.0
      %v4923 = vmul.f32 %v4907, 1.442695
      %v4924 = vpow.pop %v4923
      %v4925 = vmul.f32 %v4908, 1.442695
      %v4926 = vpow.pop %v4925
      %v4927 = vmul.f32 %v4909, 1.442695
      %v4928 = vpow.pop %v4927
      %v4929 = vmul.f32 %v4910, 1.442695
      %v4930 = vpow.pop %v4929
      %v4931 = vmul.f32 %v4911, 1.442695
      %v4932 = vpow.pop %v4931
      %v4933 = vmul.f32 %v4912, 1.442695
      %v4934 = vpow.pop %v4933
      %v4935 = vmul.f32 %v4913, 1.442695
      %v4936 = vpow.pop %v4935
      %v4937 = vmul.f32 %v4914, 1.442695
      %v4938 = vpow.pop %v4937
      %v4939 = vmul.f32 %v4915, 1.442695
      %v4940 = vpow.pop %v4939
      %v4941 = vmul.f32 %v4916, 1.442695
      %v4942 = vpow.pop %v4941
      %v4943 = vmul.f32 %v4917, 1.442695
      %v4944 = vpow.pop %v4943
      %v4945 = vmul.f32 %v4918, 1.442695
      %v4946 = vpow.pop %v4945
      %v4947 = vmul.f32 %v4919, 1.442695
      %v4948 = vpow.pop %v4947
      %v4949 = vmul.f32 %v4920, 1.442695
      %v4950 = vpow.pop %v4949
      %v4951 = vmul.f32 %v4921, 1.442695
      %v4952 = vpow.pop %v4951
      %v4953 = vmul.f32 %v4922, 1.442695
      %v4954 = vpow.pop %v4953
      %v4955 = vadd.f32 %v4924, 2.0
      %v4956 = vadd.f32 %v4926, 2.0
      %v4957 = vadd.f32 %v4928, 2.0
      %v4958 = vadd.f32 %v4930, 2.0
      %v4959 = vadd.f32 %v4932, 2.0
      %v4960 = vadd.f32 %v4934, 2.0
      %v4961 = vadd.f32 %v4936, 2.0
      %v4962 = vadd.f32 %v4938, 2.0
      %v4963 = vadd.f32 %v4940, 2.0
      %v4964 = vadd.f32 %v4942, 2.0
      %v4965 = vadd.f32 %v4944, 2.0
      %v4966 = vadd.f32 %v4946, 2.0
      %v4967 = vadd.f32 %v4948, 2.0
      %v4968 = vadd.f32 %v4950, 2.0
      %v4969 = vadd.f32 %v4952, 2.0
      %v4970 = vadd.f32 %v4954, 2.0
      %v4971 = vmul.f32 %v4924, %v4955
      %v4972 = vmul.f32 %v4926, %v4956
      %v4973 = vmul.f32 %v4928, %v4957
      %v4974 = vmul.f32 %v4930, %v4958
      %v4975 = vmul.f32 %v4932, %v4959
      %v4976 = vmul.f32 %v4934, %v4960
      %v4977 = vmul.f32 %v4936, %v4961
      %v4978 = vmul.f32 %v4938, %v4962
      %v4979 = vmul.f32 %v4940, %v4963
      %v4980 = vmul.f32 %v4942, %v4964
      %v4981 = vmul.f32 %v4944, %v4965
      %v4982 = vmul.f32 %v4946, %v4966
      %v4983 = vmul.f32 %v4948, %v4967
      %v4984 = vmul.f32 %v4950, %v4968
      %v4985 = vmul.f32 %v4952, %v4969
      %v4986 = vmul.f32 %v4954, %v4970
      %v4987 = vadd.f32 %v4971, 2.0
      %v4988 = vadd.f32 %v4972, 2.0
      %v4989 = vadd.f32 %v4973, 2.0
      %v4990 = vadd.f32 %v4974, 2.0
      %v4991 = vadd.f32 %v4975, 2.0
      %v4992 = vadd.f32 %v4976, 2.0
      %v4993 = vadd.f32 %v4977, 2.0
      %v4994 = vadd.f32 %v4978, 2.0
      %v4995 = vadd.f32 %v4979, 2.0
      %v4996 = vadd.f32 %v4980, 2.0
      %v4997 = vadd.f32 %v4981, 2.0
      %v4998 = vadd.f32 %v4982, 2.0
      %v4999 = vadd.f32 %v4983, 2.0
      %v5000 = vadd.f32 %v4984, 2.0
      %v5001 = vadd.f32 %v4985, 2.0
      %v5002 = vadd.f32 %v4986, 2.0
      %v5003 = vrcp.pop %v4987
      %v5004 = vrcp.pop %v4988
      %v5005 = vrcp.pop %v4989
      %v5006 = vrcp.pop %v4990
      %v5007 = vrcp.pop %v4991
      %v5008 = vrcp.pop %v4992
      %v5009 = vrcp.pop %v4993
      %v5010 = vrcp.pop %v4994
      %v5011 = vrcp.pop %v4995
      %v5012 = vrcp.pop %v4996
      %v5013 = vrcp.pop %v4997
      %v5014 = vrcp.pop %v4998
      %v5015 = vrcp.pop %v4999
      %v5016 = vrcp.pop %v5000
      %v5017 = vrcp.pop %v5001
      %v5018 = vrcp.pop %v5002
      %v5019 = vmul.f32 %v4971, %v5003
      %v5020 = vmul.f32 %v4972, %v5004
      %v5021 = vmul.f32 %v4973, %v5005
      %v5022 = vmul.f32 %v4974, %v5006
      %v5023 = vmul.f32 %v4975, %v5007
      %v5024 = vmul.f32 %v4976, %v5008
      %v5025 = vmul.f32 %v4977, %v5009
      %v5026 = vmul.f32 %v4978, %v5010
      %v5027 = vmul.f32 %v4979, %v5011
      %v5028 = vmul.f32 %v4980, %v5012
      %v5029 = vmul.f32 %v4981, %v5013
      %v5030 = vmul.f32 %v4982, %v5014
      %v5031 = vmul.f32 %v4983, %v5015
      %v5032 = vmul.f32 %v4984, %v5016
      %v5033 = vmul.f32 %v4985, %v5017
      %v5034 = vmul.f32 %v4986, %v5018
      %v5035 = vmul.f32 %v4693, %v5019
      %v5036 = vmul.f32 %v4696, %v5020
      %v5037 = vmul.f32 %v4701, %v5021
      %v5038 = vmul.f32 %v4704, %v5022
      %v5039 = vmul.f32 %v4709, %v5023
      %v5040 = vmul.f32 %v4712, %v5024
      %v5041 = vmul.f32 %v4717, %v5025
      %v5042 = vmul.f32 %v4720, %v5026
      %v5043 = vmul.f32 %v4725, %v5027
      %v5044 = vmul.f32 %v4728, %v5028
      %v5045 = vmul.f32 %v4733, %v5029
      %v5046 = vmul.f32 %v4736, %v5030
      %v5047 = vmul.f32 %v4741, %v5031
      %v5048 = vmul.f32 %v4744, %v5032
      %v5049 = vmul.f32 %v4749, %v5033
      %v5050 = vmul.f32 %v4752, %v5034
      %v5051 = vpack.c.bf16 %v5036, %v5035
      %v5052 = vpack.c.bf16 %v5038, %v5037
      %v5053 = vpack.c.bf16 %v5040, %v5039
      %v5054 = vpack.c.bf16 %v5042, %v5041
      %v5055 = vpack.c.bf16 %v5044, %v5043
      %v5056 = vpack.c.bf16 %v5046, %v5045
      %v5057 = vpack.c.bf16 %v5048, %v5047
      %v5058 = vpack.c.bf16 %v5050, %v5049
      %v5059 = vld [vmem:[%s9] sm:$0xf]
      %v5060 = vld [vmem:[%s9 + $0x4] sm:$0xf]
      %v5061 = vld [vmem:[%s9 + $0x8] sm:$0xf]
      %v5062 = vld [vmem:[%s9 + $0xc] sm:$0xf]
      %v5063 = vld [vmem:[%s9 + $0x10] sm:$0xf]
      %v5064 = vld [vmem:[%s9 + $0x14] sm:$0xf]
      %v5065 = vld [vmem:[%s9 + $0x18] sm:$0xf]
      %v5066 = vld [vmem:[%s9 + $0x1c] sm:$0xf]
      %v5067 = vld [vmem:[%s9 + $0x20] sm:$0xf]
      %v5068 = vld [vmem:[%s9 + $0x24] sm:$0xf]
      %v5069 = vld [vmem:[%s9 + $0x28] sm:$0xf]
      %v5070 = vld [vmem:[%s9 + $0x2c] sm:$0xf]
      %v5071 = vld [vmem:[%s9 + $0x30] sm:$0xf]
      %v5072 = vld [vmem:[%s9 + $0x34] sm:$0xf]
      %v5073 = vld [vmem:[%s9 + $0x38] sm:$0xf]
      %v5074 = vld [vmem:[%s9 + $0x3c] sm:$0xf]
      %v5075 = vld [vmem:[%s10] sm:$0x1]
      %v5077 = vlaneseq
      %v5078 = vshrl.u32 %v5077, 7
      %v5079 = vsub.s32 0, %v5078
      %v5080 = vrot.slane %v5075, %v5079
      %v5098 = vunpack.c.l.b16 %v5059
      %v5099 = vunpack.c.l.b16 %v5060
      %v5100 = vunpack.c.l.b16 %v5061
      %v5101 = vunpack.c.l.b16 %v5062
      %v5102 = vunpack.c.l.b16 %v5063
      %v5103 = vunpack.c.l.b16 %v5064
      %v5104 = vunpack.c.l.b16 %v5065
      %v5105 = vunpack.c.l.b16 %v5066
      %v5106 = vunpack.c.l.b16 %v5067
      %v5107 = vunpack.c.l.b16 %v5068
      %v5108 = vunpack.c.l.b16 %v5069
      %v5109 = vunpack.c.l.b16 %v5070
      %v5110 = vunpack.c.l.b16 %v5071
      %v5111 = vunpack.c.l.b16 %v5072
      %v5112 = vunpack.c.l.b16 %v5073
      %v5113 = vunpack.c.l.b16 %v5074
      %v5114 = vpack.c.b16 %v5099, %v5098
      %v5115 = vpack.c.b16 %v5101, %v5100
      %v5116 = vpack.c.b16 %v5103, %v5102
      %v5117 = vpack.c.b16 %v5105, %v5104
      %v5118 = vpack.c.b16 %v5107, %v5106
      %v5119 = vpack.c.b16 %v5109, %v5108
      %v5120 = vpack.c.b16 %v5111, %v5110
      %v5121 = vpack.c.b16 %v5113, %v5112
      %5130 = vmatprep.subr.bf16.mxu0 0
      %5131 = vmatpush1.bf16.msra.mxu0 %v5121
      %5132 = vmatprep.subr.bf16.mxu0 0
      %5133 = vmatpush1.bf16.msra.mxu0 %v5120
      %5134 = vmatprep.subr.bf16.mxu0 0
      %5135 = vmatpush1.bf16.msra.mxu0 %v5119
      %5136 = vmatprep.subr.bf16.mxu0 0
      %5137 = vmatpush1.bf16.msra.mxu0 %v5118
      %5138 = vmatprep.subr.bf16.mxu0 0
      %5139 = vmatpush1.bf16.msra.mxu0 %v5117
      %5140 = vmatprep.subr.bf16.mxu0 0
      %5141 = vmatpush1.bf16.msra.mxu0 %v5116
      %5142 = vmatprep.subr.bf16.mxu0 0
      %5143 = vmatpush1.bf16.msra.mxu0 %v5115
      %5144 = vmatprep.subr.bf16.mxu0 0
      %5145 = vmatpush1.bf16.msra.mxu0 %v5114
      %5146 = vmatprep.subr.bf16.mxu0 0
      %5147 = vmatpush2.bf16.msra.mxu0 0
      %5148 = vmatprep.subr.bf16.mxu0 0
      %5149 = vmatpush2.bf16.msra.mxu0 0
      %5150 = vmatprep.subr.bf16.mxu0 0
      %5151 = vmatpush2.bf16.msra.mxu0 0
      %5152 = vmatprep.subr.bf16.mxu0 0
      %5153 = vmatpush2.bf16.msra.mxu0 0
      %5154 = vmatprep.subr.bf16.mxu0 0
      %5155 = vmatpush2.bf16.msra.mxu0 0
      %5156 = vmatprep.subr.bf16.mxu0 0
      %5157 = vmatpush2.bf16.msra.mxu0 0
      %5158 = vmatprep.subr.bf16.mxu0 0
      %5159 = vmatpush2.bf16.msra.mxu0 0
      %5160 = vmatprep.subr.bf16.mxu0 0
      %5161 = vmatpush2.bf16.msra.mxu0 0
      %5162 = vmatprep.mubr.bf16.mxu0 0
      %5163 = vmatmul.mubr.bf16.gmra.mxu0 %v4899
      %v5164 = vpop.f32.mrf.mxu0
      %v5165 = vadd.f32 %v5080, %v5164
      %v5166 = vpop.f32.mrf.mxu0
      %v5167 = vpop.f32.mrf.mxu0
      %v5168 = vadd.f32 %v5080, %v5167
      %v5169 = vpop.f32.mrf.mxu0
      %5170 = vmatprep.mubr.bf16.mxu0 0
      %5171 = vmatmul.mubr.bf16.gmra.mxu0 %v4900
      %v5172 = vpop.f32.mrf.mxu0
      %v5173 = vadd.f32 %v5080, %v5172
      %v5174 = vpop.f32.mrf.mxu0
      %v5175 = vpop.f32.mrf.mxu0
      %v5176 = vadd.f32 %v5080, %v5175
      %v5177 = vpop.f32.mrf.mxu0
      %5178 = vmatprep.mubr.bf16.mxu0 0
      %5179 = vmatmul.mubr.bf16.gmra.mxu0 %v4901
      %v5180 = vpop.f32.mrf.mxu0
      %v5181 = vadd.f32 %v5080, %v5180
      %v5182 = vpop.f32.mrf.mxu0
      %v5183 = vpop.f32.mrf.mxu0
      %v5184 = vadd.f32 %v5080, %v5183
      %v5185 = vpop.f32.mrf.mxu0
      %5186 = vmatprep.mubr.bf16.mxu0 0
      %5187 = vmatmul.mubr.bf16.gmra.mxu0 %v4902
      %v5188 = vpop.f32.mrf.mxu0
      %v5189 = vadd.f32 %v5080, %v5188
      %v5190 = vpop.f32.mrf.mxu0
      %v5191 = vpop.f32.mrf.mxu0
      %v5192 = vadd.f32 %v5080, %v5191
      %v5193 = vpop.f32.mrf.mxu0
      %5194 = vmatprep.mubr.bf16.mxu0 0
      %5195 = vmatmul.mubr.bf16.gmra.mxu0 %v4903
      %v5196 = vpop.f32.mrf.mxu0
      %v5197 = vadd.f32 %v5080, %v5196
      %v5198 = vpop.f32.mrf.mxu0
      %v5199 = vpop.f32.mrf.mxu0
      %v5200 = vadd.f32 %v5080, %v5199
      %v5201 = vpop.f32.mrf.mxu0
      %5202 = vmatprep.mubr.bf16.mxu0 0
      %5203 = vmatmul.mubr.bf16.gmra.mxu0 %v4904
      %v5204 = vpop.f32.mrf.mxu0
      %v5205 = vadd.f32 %v5080, %v5204
      %v5206 = vpop.f32.mrf.mxu0
      %v5207 = vpop.f32.mrf.mxu0
      %v5208 = vadd.f32 %v5080, %v5207
      %v5209 = vpop.f32.mrf.mxu0
      %5210 = vmatprep.mubr.bf16.mxu0 0
      %5211 = vmatmul.mubr.bf16.gmra.mxu0 %v4905
      %v5212 = vpop.f32.mrf.mxu0
      %v5213 = vadd.f32 %v5080, %v5212
      %v5214 = vpop.f32.mrf.mxu0
      %v5215 = vpop.f32.mrf.mxu0
      %v5216 = vadd.f32 %v5080, %v5215
      %v5217 = vpop.f32.mrf.mxu0
      %5218 = vmatprep.mubr.bf16.mxu0 0
      %5219 = vmatmul.mubr.bf16.gmra.mxu0 %v4906
      %v5220 = vpop.f32.mrf.mxu0
      %v5221 = vadd.f32 %v5080, %v5220
      %v5222 = vpop.f32.mrf.mxu0
      %v5223 = vpop.f32.mrf.mxu0
      %v5224 = vadd.f32 %v5080, %v5223
      %v5225 = vpop.f32.mrf.mxu0
      %5226 = vdwg.mxu0
      %5227 = vmatprep.subr.bf16.mxu0 0
      %5228 = vmatpush1.bf16.msra.mxu0 %v5121
      %5229 = vmatprep.subr.bf16.mxu0 0
      %5230 = vmatpush1.bf16.msra.mxu0 %v5120
      %5231 = vmatprep.subr.bf16.mxu0 0
      %5232 = vmatpush1.bf16.msra.mxu0 %v5119
      %5233 = vmatprep.subr.bf16.mxu0 0
      %5234 = vmatpush1.bf16.msra.mxu0 %v5118
      %5235 = vmatprep.subr.bf16.mxu0 0
      %5236 = vmatpush1.bf16.msra.mxu0 %v5117
      %5237 = vmatprep.subr.bf16.mxu0 0
      %5238 = vmatpush1.bf16.msra.mxu0 %v5116
      %5239 = vmatprep.subr.bf16.mxu0 0
      %5240 = vmatpush1.bf16.msra.mxu0 %v5115
      %5241 = vmatprep.subr.bf16.mxu0 0
      %5242 = vmatpush1.bf16.msra.mxu0 %v5114
      %5243 = vmatprep.subr.bf16.mxu0 0
      %5244 = vmatpush2.bf16.msra.mxu0 0
      %5245 = vmatprep.subr.bf16.mxu0 0
      %5246 = vmatpush2.bf16.msra.mxu0 0
      %5247 = vmatprep.subr.bf16.mxu0 0
      %5248 = vmatpush2.bf16.msra.mxu0 0
      %5249 = vmatprep.subr.bf16.mxu0 0
      %5250 = vmatpush2.bf16.msra.mxu0 0
      %5251 = vmatprep.subr.bf16.mxu0 0
      %5252 = vmatpush2.bf16.msra.mxu0 0
      %5253 = vmatprep.subr.bf16.mxu0 0
      %5254 = vmatpush2.bf16.msra.mxu0 0
      %5255 = vmatprep.subr.bf16.mxu0 0
      %5256 = vmatpush2.bf16.msra.mxu0 0
      %5257 = vmatprep.subr.bf16.mxu0 0
      %5258 = vmatpush2.bf16.msra.mxu0 0
      %5259 = vmatprep.mubr.bf16.mxu0 0
      %5260 = vmatmul.mubr.bf16.gmra.mxu0 %v5051
      %v5261 = vpop.f32.mrf.mxu0
      %v5262 = vadd.f32 %v5080, %v5261
      %v5263 = vpop.f32.mrf.mxu0
      %v5264 = vpop.f32.mrf.mxu0
      %v5265 = vadd.f32 %v5080, %v5264
      %v5266 = vpop.f32.mrf.mxu0
      %5267 = vmatprep.mubr.bf16.mxu0 0
      %5268 = vmatmul.mubr.bf16.gmra.mxu0 %v5052
      %v5269 = vpop.f32.mrf.mxu0
      %v5270 = vadd.f32 %v5080, %v5269
      %v5271 = vpop.f32.mrf.mxu0
      %v5272 = vpop.f32.mrf.mxu0
      %v5273 = vadd.f32 %v5080, %v5272
      %v5274 = vpop.f32.mrf.mxu0
      %5275 = vmatprep.mubr.bf16.mxu0 0
      %5276 = vmatmul.mubr.bf16.gmra.mxu0 %v5053
      %v5277 = vpop.f32.mrf.mxu0
      %v5278 = vadd.f32 %v5080, %v5277
      %v5279 = vpop.f32.mrf.mxu0
      %v5280 = vpop.f32.mrf.mxu0
      %v5281 = vadd.f32 %v5080, %v5280
      %v5282 = vpop.f32.mrf.mxu0
      %5283 = vmatprep.mubr.bf16.mxu0 0
      %5284 = vmatmul.mubr.bf16.gmra.mxu0 %v5054
      %v5285 = vpop.f32.mrf.mxu0
      %v5286 = vadd.f32 %v5080, %v5285
      %v5287 = vpop.f32.mrf.mxu0
      %v5288 = vpop.f32.mrf.mxu0
      %v5289 = vadd.f32 %v5080, %v5288
      %v5290 = vpop.f32.mrf.mxu0
      %5291 = vmatprep.mubr.bf16.mxu0 0
      %5292 = vmatmul.mubr.bf16.gmra.mxu0 %v5055
      %v5293 = vpop.f32.mrf.mxu0
      %v5294 = vadd.f32 %v5080, %v5293
      %v5295 = vpop.f32.mrf.mxu0
      %v5296 = vpop.f32.mrf.mxu0
      %v5297 = vadd.f32 %v5080, %v5296
      %v5298 = vpop.f32.mrf.mxu0
      %5299 = vmatprep.mubr.bf16.mxu0 0
      %5300 = vmatmul.mubr.bf16.gmra.mxu0 %v5056
      %v5301 = vpop.f32.mrf.mxu0
      %v5302 = vadd.f32 %v5080, %v5301
      %v5303 = vpop.f32.mrf.mxu0
      %v5304 = vpop.f32.mrf.mxu0
      %v5305 = vadd.f32 %v5080, %v5304
      %v5306 = vpop.f32.mrf.mxu0
      %5307 = vmatprep.mubr.bf16.mxu0 0
      %5308 = vmatmul.mubr.bf16.gmra.mxu0 %v5057
      %v5309 = vpop.f32.mrf.mxu0
      %v5310 = vadd.f32 %v5080, %v5309
      %v5311 = vpop.f32.mrf.mxu0
      %v5312 = vpop.f32.mrf.mxu0
      %v5313 = vadd.f32 %v5080, %v5312
      %v5314 = vpop.f32.mrf.mxu0
      %5315 = vmatprep.mubr.bf16.mxu0 0
      %5316 = vmatmul.mubr.bf16.gmra.mxu0 %v5058
      %v5317 = vpop.f32.mrf.mxu0
      %v5318 = vadd.f32 %v5080, %v5317
      %v5319 = vpop.f32.mrf.mxu0
      %v5320 = vpop.f32.mrf.mxu0
      %v5321 = vadd.f32 %v5080, %v5320
      %v5322 = vpop.f32.mrf.mxu0
      %5323 = vdwg.mxu0
      %5324 = vst [vmem:[%s388] sm:$0xff] %v5165
      %5325 = vst [vmem:[%s388 + $0x8] sm:$0xff] %v5168
      %5326 = vst [vmem:[%s388 + $0x10] sm:$0xff] %v5173
      %5327 = vst [vmem:[%s388 + $0x18] sm:$0xff] %v5176
      %5328 = vst [vmem:[%s388 + $0x20] sm:$0xff] %v5181
      %5329 = vst [vmem:[%s388 + $0x28] sm:$0xff] %v5184
      %5330 = vst [vmem:[%s388 + $0x30] sm:$0xff] %v5189
      %5331 = vst [vmem:[%s388 + $0x38] sm:$0xff] %v5192
      %5332 = vst [vmem:[%s388 + $0x40] sm:$0xff] %v5197
      %5333 = vst [vmem:[%s388 + $0x48] sm:$0xff] %v5200
      %5334 = vst [vmem:[%s388 + $0x50] sm:$0xff] %v5205
      %5335 = vst [vmem:[%s388 + $0x58] sm:$0xff] %v5208
      %5336 = vst [vmem:[%s388 + $0x60] sm:$0xff] %v5213
      %5337 = vst [vmem:[%s388 + $0x68] sm:$0xff] %v5216
      %5338 = vst [vmem:[%s388 + $0x70] sm:$0xff] %v5221
      %5339 = vst [vmem:[%s388 + $0x78] sm:$0xff] %v5224
      %5340 = vst [vmem:[%s388 + $0x80] sm:$0xff] %v5262
      %5341 = vst [vmem:[%s388 + $0x88] sm:$0xff] %v5265
      %5342 = vst [vmem:[%s388 + $0x90] sm:$0xff] %v5270
      %5343 = vst [vmem:[%s388 + $0x98] sm:$0xff] %v5273
      %5344 = vst [vmem:[%s388 + $0xa0] sm:$0xff] %v5278
      %5345 = vst [vmem:[%s388 + $0xa8] sm:$0xff] %v5281
      %5346 = vst [vmem:[%s388 + $0xb0] sm:$0xff] %v5286
      %5347 = vst [vmem:[%s388 + $0xb8] sm:$0xff] %v5289
      %5348 = vst [vmem:[%s388 + $0xc0] sm:$0xff] %v5294
      %5349 = vst [vmem:[%s388 + $0xc8] sm:$0xff] %v5297
      %5350 = vst [vmem:[%s388 + $0xd0] sm:$0xff] %v5302
      %5351 = vst [vmem:[%s388 + $0xd8] sm:$0xff] %v5305
      %5352 = vst [vmem:[%s388 + $0xe0] sm:$0xff] %v5310
      %5353 = vst [vmem:[%s388 + $0xe8] sm:$0xff] %v5313
      %5354 = vst [vmem:[%s388 + $0xf0] sm:$0xff] %v5318
      %5355 = vst [vmem:[%s388 + $0xf8] sm:$0xff] %v5321
      %s5356 = smul.u32 32, %s22
      %p5357 = scmp.lt.s32.totalorder %s5356, 63
      %s5358 = scalar_select %p5357, %s5356, 63
      %s5359 = smul.addr %s5358, 8
      %s5360 = scalar_lea.vmem %s11, %s5359
      // Predicated region
      $region65: #{autoencoder_forward.1} parent=63 // pred_check
        %p5361 = pneg %p276
      $region66: #{autoencoder_forward.1} parent=63 // pred_check_branch
        %5363 = sbr.rel (%p5361) target = $region68
      $region67: #{autoencoder_forward.1} parent=63 // pred_region
        %s5364 = smul.u32 32, %s22
      $region68: #{autoencoder_forward.1} parent=63 // pred_fallthru
        _
    $region64: #{autoencoder_forward.1} parent=5 // pred_fallthru
      _
    %p5365 = scmp.le.s32.totalorder 2, %s17
    // Predicated region
    $region69: #{autoencoder_forward.1} parent=5 // pred_check
      %p5366 = pneg %p5365
    $region70: #{autoencoder_forward.1} parent=5 // pred_check_branch
      %5368 = sbr.rel (%p5366) target = $region72
    $region71: #{autoencoder_forward.1} parent=5 // pred_region
      %s5369 = ssub.s32 %s17, 2
      // Predicated region
      $region73: #{autoencoder_forward.1} parent=71 // pred_check
        %p5370 = pneg %p282
      $region74: #{autoencoder_forward.1} parent=71 // pred_check_branch
        %5372 = sbr.rel (%p5370) target = $region76
      $region75: #{autoencoder_forward.1} parent=71 // pred_region
        %s5373 = smul.u32 32, %s23
        %p5374 = scmp.lt.s32.totalorder %s5373, 63
        %s5375 = scalar_select %p5374, %s5373, 63
        %s5376 = smul.addr %s5375, 8
        %s5377 = scalar_lea.vmem %s11, %s5376
      $region76: #{autoencoder_forward.1} parent=71 // pred_fallthru
        _
    $region72: #{autoencoder_forward.1} parent=5 // pred_fallthru
      _
  $region6: #{autoencoder_forward.1} parent=0 // loop_footer
    %s21 = sadd.s32 1, %s17
  $region7: #{autoencoder_forward.1} parent=0 // loop_footer_branch
    %16 = sbr.rel target = $region3
  $region8: #{autoencoder_forward.1} parent=0 // loop_exit
    _

</llo_original>
